<compile_context>
chip_gen: v7x
topology: tpu7x:2x2x1
jax: 0.10.0
libtpu: 0.0.40
codegen_flags: <defaults>
</compile_context>

<pallas_src>
import functools

import jax
import jax.numpy as jnp
from jax.experimental import pallas as pl
from jax.experimental.pallas import tpu as pltpu

BATCH_SIZE = 64   # hard-coded in the PyTorch module
SEQ = 4           # x.expand(BATCH_SIZE, 4, 128)
HIDDEN = 128
OUT_DIM = 10
OUT_PAD = 128     # lane-dense padded output width


def _detect_num_cores():
    """2 TensorCores per chip on v7x; 1 elsewhere (v5e/v6e)."""
    try:
        kind = jax.devices()[0].device_kind.lower()
    except Exception:
        return 1
    return 2 if ("v7" in kind or "7x" in kind) else 1


def _decoder_kernel(x_ref, w_ref, wo_ref, b_ref, out_ref):
    """Per-core blocks (all VMEM):
      x_ref  : (BPC, 128)  f32        input row (identical at every time step)
      w_ref  : (512, 512)  f32/bf16   rows   0:256 = [W_ih0^T ; W_hh0^T]
                                      rows 256:512 = [W_ih1^T ; W_hh1^T]
      wo_ref : (128, 128)  f32/bf16   W_out^T padded to 128 lanes (cols 10: = 0)
      b_ref  : (8, 512)    f32        row 0 = b0, row 1 = b1, row 2[:128] = b_out pad
      out_ref: (SEQ, BPC, 128) f32    t-major lane-dense padded outputs
    """
    H = HIDDEN
    wdt = w_ref.dtype

    def sigmoid(v):
        # One EUP op (tanh) + cheap VPU fma; mathematically identical to sigmoid.
        return 0.5 * jnp.tanh(0.5 * v) + 0.5

    def cell(gates, c, first):
        i = sigmoid(gates[:, 0 * H:1 * H])
        g = jnp.tanh(gates[:, 2 * H:3 * H])
        o = sigmoid(gates[:, 3 * H:4 * H])
        if first:
            c_new = i * g                      # c == 0: skip dead f-gate work
        else:
            f = sigmoid(gates[:, 1 * H:2 * H])
            c_new = f * c + i * g
        return o * jnp.tanh(c_new), c_new

    h0 = c0 = h1 = c1 = None
    for t in range(SEQ):                       # fully unrolled (SEQ = 4)
        if t == 0:
            # h0 == h1 == 0: recurrent halves of the K=256 dots are exactly zero.
            g0 = (jnp.dot(x_ref[...].astype(wdt), w_ref[0:H, :],
                          preferred_element_type=jnp.float32)
                  + b_ref[0:1, :])
            h0, c0 = cell(g0, None, True)
            g1 = (jnp.dot(h0.astype(wdt), w_ref[2 * H:3 * H, :],
                          preferred_element_type=jnp.float32)
                  + b_ref[1:2, :])
            h1, c1 = cell(g1, None, True)
        else:
            # Fused K=256 dots: [x ; h0_prev] and [h0_new ; h1_prev].
            xh = jnp.concatenate([x_ref[...], h0], axis=1).astype(wdt)
            g0 = (jnp.dot(xh, w_ref[0:2 * H, :],
                          preferred_element_type=jnp.float32)
                  + b_ref[0:1, :])
            h0, c0 = cell(g0, c0, False)
            hh = jnp.concatenate([h0, h1], axis=1).astype(wdt)
            g1 = (jnp.dot(hh, w_ref[2 * H:4 * H, :],
                          preferred_element_type=jnp.float32)
                  + b_ref[1:2, :])
            h1, c1 = cell(g1, c1, False)

        # Per-step lane-dense projection + store (nothing carried in a list).
        out_ref[t, :, :] = (jnp.dot(h1.astype(wdt), wo_ref[...],
                                    preferred_element_type=jnp.float32)
                            + b_ref[2:3, 0:OUT_PAD])


def init_params(key):
    """Deterministic PyTorch-style init: U(-1/sqrt(H), 1/sqrt(H))."""
    bound = 1.0 / jnp.sqrt(jnp.float32(HIDDEN))
    keys = jax.random.split(key, 10)

    def u(k, shape):
        return jax.random.uniform(k, shape, jnp.float32, -bound, bound)

    return {
        "w_ih_l0": u(keys[0], (4 * HIDDEN, HIDDEN)),
        "w_hh_l0": u(keys[1], (4 * HIDDEN, HIDDEN)),
        "b_ih_l0": u(keys[2], (4 * HIDDEN,)),
        "b_hh_l0": u(keys[3], (4 * HIDDEN,)),
        "w_ih_l1": u(keys[4], (4 * HIDDEN, HIDDEN)),
        "w_hh_l1": u(keys[5], (4 * HIDDEN, HIDDEN)),
        "b_ih_l1": u(keys[6], (4 * HIDDEN,)),
        "b_hh_l1": u(keys[7], (4 * HIDDEN,)),
        "w_out": u(keys[8], (OUT_DIM, HIDDEN)),
        "b_out": u(keys[9], (OUT_DIM,)),
    }


def pack_params(params, weight_dtype=jnp.bfloat16):
    """One-time slab packing (hoisted out of the per-call forward path).

    Activations multiply W from the right, so PyTorch weights are transposed.
    """
    w_slab = jnp.concatenate(
        [params["w_ih_l0"].T, params["w_hh_l0"].T,
         params["w_ih_l1"].T, params["w_hh_l1"].T], axis=0).astype(weight_dtype)

    wo_slab = (jnp.zeros((HIDDEN, OUT_PAD), jnp.float32)
               .at[:, :OUT_DIM].set(params["w_out"].T).astype(weight_dtype))

    b_slab = jnp.zeros((8, 4 * HIDDEN), jnp.float32)          # biases stay f32
    b_slab = b_slab.at[0, :].set(params["b_ih_l0"] + params["b_hh_l0"])
    b_slab = b_slab.at[1, :].set(params["b_ih_l1"] + params["b_hh_l1"])
    b_slab = b_slab.at[2, :OUT_DIM].set(params["b_out"])
    return w_slab, wo_slab, b_slab


@functools.partial(jax.jit, static_argnames=("num_cores",))
def decoder_forward_packed(x, w_slab, wo_slab, b_slab, *, num_cores=1):
    """x: (64, 128) f32 -> (64, 4, 10) f32 (same semantics as the PyTorch module)."""
    x = x.reshape(BATCH_SIZE, HIDDEN).astype(jnp.float32)
    bpc = BATCH_SIZE // num_cores
    wbytes = int(w_slab.dtype.itemsize)

    flops = 2 * SEQ * BATCH_SIZE * (2 * 2 * HIDDEN * 4 * HIDDEN + HIDDEN * OUT_PAD)
    transcendentals = 5 * 2 * SEQ * BATCH_SIZE * HIDDEN
    bytes_accessed = (BATCH_SIZE * HIDDEN * 4
                      + w_slab.size * wbytes + wo_slab.size * wbytes
                      + b_slab.size * 4
                      + SEQ * BATCH_SIZE * OUT_PAD * 4)

    out = pl.pallas_call(
        _decoder_kernel,
        out_shape=jax.ShapeDtypeStruct((SEQ, BATCH_SIZE, OUT_PAD), jnp.float32),
        grid=(num_cores,),
        in_specs=[
            pl.BlockSpec((bpc, HIDDEN), lambda i: (i, 0)),
            pl.BlockSpec((4 * HIDDEN, 4 * HIDDEN), lambda i: (0, 0)),
            pl.BlockSpec((HIDDEN, OUT_PAD), lambda i: (0, 0)),
            pl.BlockSpec((8, 4 * HIDDEN), lambda i: (0, 0)),
        ],
        out_specs=pl.BlockSpec((SEQ, bpc, OUT_PAD), lambda i: (0, i, 0)),
        compiler_params=pltpu.CompilerParams(
            dimension_semantics=("parallel",)),
        cost_estimate=pl.CostEstimate(flops=flops,
                                      transcendentals=transcendentals,
                                      bytes_accessed=bytes_accessed),
    )(x, w_slab, wo_slab, b_slab)

    # (seq, batch, 128) -> slice real lanes -> (batch, seq, out)
    return jnp.transpose(out[:, :, :OUT_DIM], (1, 0, 2))


def decoder_forward(x, params, weight_dtype=jnp.bfloat16, num_cores=None):
    """Convenience wrapper. For repeated calls, pack once and call
    decoder_forward_packed() directly (slab packing is hoisted)."""
    if num_cores is None:
        num_cores = _detect_num_cores()
    w_slab, wo_slab, b_slab = pack_params(params, weight_dtype)
    return decoder_forward_packed(x, w_slab, wo_slab, b_slab,
                                  num_cores=num_cores)


def decoder_reference(x, params):
    """Pure-JAX reference mirroring the PyTorch forward (for correctness check)."""
    H = HIDDEN
    x = x.reshape(BATCH_SIZE, H).astype(jnp.float32)

    def cell(inp, h, c, w_ih, w_hh, b_ih, b_hh):
        gates = inp @ w_ih.T + b_ih + h @ w_hh.T + b_hh
        i = jax.nn.sigmoid(gates[:, 0 * H:1 * H])
        f = jax.nn.sigmoid(gates[:, 1 * H:2 * H])
        g = jnp.tanh(gates[:, 2 * H:3 * H])
        o = jax.nn.sigmoid(gates[:, 3 * H:4 * H])
        c = f * c + i * g
        h = o * jnp.tanh(c)
        return h, c

    h0 = jnp.zeros((BATCH_SIZE, H)); c0 = jnp.zeros((BATCH_SIZE, H))
    h1 = jnp.zeros((BATCH_SIZE, H)); c1 = jnp.zeros((BATCH_SIZE, H))
    outs = []
    for _ in range(SEQ):
        h0, c0 = cell(x, h0, c0, params["w_ih_l0"], params["w_hh_l0"],
                      params["b_ih_l0"], params["b_hh_l0"])
        h1, c1 = cell(h0, h1, c1, params["w_ih_l1"], params["w_hh_l1"],
                      params["b_ih_l1"], params["b_hh_l1"])
        outs.append(h1 @ params["w_out"].T + params["b_out"])
    return jnp.stack(outs, axis=1)  # (batch, seq, out)


if __name__ == "__main__":
    key = jax.random.PRNGKey(0)
    k_param, k_x = jax.random.split(key)
    params = init_params(k_param)

    # Input consistent with the module: reshapeable to (-1, 1, 128) with -1 == 64.
    x = jax.random.normal(k_x, (BATCH_SIZE, HIDDEN), jnp.float32)

    ref = decoder_reference(x, params)
    nc = _detect_num_cores()

    # Default bf16 MXU-operand path (halved weight DMA, single-pass MXU matmuls,
    # f32 accumulation + f32 elementwise). Packing done once, outside the call.
    packed_bf16 = pack_params(params, jnp.bfloat16)
    out = jax.block_until_ready(
        decoder_forward_packed(x, *packed_bf16, num_cores=nc))
    assert out.shape == (BATCH_SIZE, SEQ, OUT_DIM), out.shape
    assert jnp.allclose(out, ref, atol=1e-1, rtol=1e-1)

    # f32-weight path: tight agreement with the f32 reference math.
    packed_f32 = pack_params(params, jnp.float32)
    out_f32 = jax.block_until_ready(
        decoder_forward_packed(x, *packed_f32, num_cores=nc))
    assert jnp.allclose(out_f32, ref, atol=1e-4, rtol=1e-4)

    print("KERNEL_OK")
</pallas_src>

<mosaic_0001>
module attributes {stable_mosaic.version = 11 : i64} {
  func.func @_decoder_kernel(%arg0: i32, %arg1: memref<64x128xf32, #tpu.memory_space<vmem>>, %arg2: memref<512x512xbf16, #tpu.memory_space<vmem>>, %arg3: memref<128x128xbf16, #tpu.memory_space<vmem>>, %arg4: memref<8x512xf32, #tpu.memory_space<vmem>>, %arg5: memref<4x64x128xf32, #tpu.memory_space<vmem>>) attributes {dimension_semantics = [#tpu.dimension_semantics<parallel>], iteration_bounds = array<i64: 1>, scalar_prefetch = 0 : i64, scratch_operands = 0 : i64, tpu.core_type = #tpu.core_type<tc>, window_params = [{transform_indices = @transform_0, window_bounds = array<i64: 64, 128>}, {pipeline_mode = #tpu.pipeline_mode<synchronous>, transform_indices = @transform_1, window_bounds = array<i64: 512, 512>}, {pipeline_mode = #tpu.pipeline_mode<synchronous>, transform_indices = @transform_2, window_bounds = array<i64: 128, 128>}, {pipeline_mode = #tpu.pipeline_mode<synchronous>, transform_indices = @transform_3, window_bounds = array<i64: 8, 512>}, {transform_indices = @transform_4, window_bounds = array<i64: 4, 64, 128>}]} {
    %c0 = arith.constant 0 : index
    %c0_0 = arith.constant 0 : index
    %0 = vector.load %arg1[%c0, %c0_0] : memref<64x128xf32, #tpu.memory_space<vmem>>, vector<64x128xf32>
    %1 = arith.truncf %0 : vector<64x128xf32> to vector<64x128xbf16>
    %c0_1 = arith.constant 0 : index
    %c0_2 = arith.constant 0 : index
    %2 = vector.load %arg2[%c0_1, %c0_2] : memref<512x512xbf16, #tpu.memory_space<vmem>>, vector<128x512xbf16>
    %cst = arith.constant dense<0.000000e+00> : vector<64x512xf32>
    %3 = tpu.matmul %1, %2, %cst {dimension_numbers = #tpu.dot_dimension_numbers<[1], [0], [0], [1], [0, 0, 1, 1], [], []>} : vector<64x128xbf16>, vector<128x512xbf16>, vector<64x512xf32> -> vector<64x512xf32>
    %c0_3 = arith.constant 0 : index
    %c0_4 = arith.constant 0 : index
    %4 = vector.load %arg4[%c0_3, %c0_4] : memref<8x512xf32, #tpu.memory_space<vmem>>, vector<1x512xf32>
    %5 = vector.broadcast %4 : vector<1x512xf32> to vector<64x512xf32>
    %6 = arith.addf %3, %5 : vector<64x512xf32>
    %7 = vector.extract_strided_slice %6 {offsets = [0, 0], sizes = [64, 128], strides = [1, 1]} : vector<64x512xf32> to vector<64x128xf32>
    %cst_5 = arith.constant 5.000000e-01 : f32
    %8 = vector.broadcast %cst_5 : f32 to vector<64x128xf32>
    %9 = arith.mulf %8, %7 : vector<64x128xf32>
    %10 = math.tanh %9 : vector<64x128xf32>
    %cst_6 = arith.constant 5.000000e-01 : f32
    %11 = vector.broadcast %cst_6 : f32 to vector<64x128xf32>
    %12 = arith.mulf %11, %10 : vector<64x128xf32>
    %cst_7 = arith.constant 5.000000e-01 : f32
    %13 = vector.broadcast %cst_7 : f32 to vector<64x128xf32>
    %14 = arith.addf %12, %13 : vector<64x128xf32>
    %15 = vector.extract_strided_slice %6 {offsets = [0, 256], sizes = [64, 128], strides = [1, 1]} : vector<64x512xf32> to vector<64x128xf32>
    %16 = math.tanh %15 : vector<64x128xf32>
    %17 = vector.extract_strided_slice %6 {offsets = [0, 384], sizes = [64, 128], strides = [1, 1]} : vector<64x512xf32> to vector<64x128xf32>
    %cst_8 = arith.constant 5.000000e-01 : f32
    %18 = vector.broadcast %cst_8 : f32 to vector<64x128xf32>
    %19 = arith.mulf %18, %17 : vector<64x128xf32>
    %20 = math.tanh %19 : vector<64x128xf32>
    %cst_9 = arith.constant 5.000000e-01 : f32
    %21 = vector.broadcast %cst_9 : f32 to vector<64x128xf32>
    %22 = arith.mulf %21, %20 : vector<64x128xf32>
    %cst_10 = arith.constant 5.000000e-01 : f32
    %23 = vector.broadcast %cst_10 : f32 to vector<64x128xf32>
    %24 = arith.addf %22, %23 : vector<64x128xf32>
    %25 = arith.mulf %14, %16 : vector<64x128xf32>
    %26 = math.tanh %25 : vector<64x128xf32>
    %27 = arith.mulf %24, %26 : vector<64x128xf32>
    %28 = arith.truncf %27 : vector<64x128xf32> to vector<64x128xbf16>
    %c256 = arith.constant 256 : index
    %c0_11 = arith.constant 0 : index
    %29 = vector.load %arg2[%c256, %c0_11] : memref<512x512xbf16, #tpu.memory_space<vmem>>, vector<128x512xbf16>
    %cst_12 = arith.constant dense<0.000000e+00> : vector<64x512xf32>
    %30 = tpu.matmul %28, %29, %cst_12 {dimension_numbers = #tpu.dot_dimension_numbers<[1], [0], [0], [1], [0, 0, 1, 1], [], []>} : vector<64x128xbf16>, vector<128x512xbf16>, vector<64x512xf32> -> vector<64x512xf32>
    %c1 = arith.constant 1 : index
    %c0_13 = arith.constant 0 : index
    %31 = vector.load %arg4[%c1, %c0_13] : memref<8x512xf32, #tpu.memory_space<vmem>>, vector<1x512xf32>
    %32 = vector.broadcast %31 : vector<1x512xf32> to vector<64x512xf32>
    %33 = arith.addf %30, %32 : vector<64x512xf32>
    %34 = vector.extract_strided_slice %33 {offsets = [0, 0], sizes = [64, 128], strides = [1, 1]} : vector<64x512xf32> to vector<64x128xf32>
    %cst_14 = arith.constant 5.000000e-01 : f32
    %35 = vector.broadcast %cst_14 : f32 to vector<64x128xf32>
    %36 = arith.mulf %35, %34 : vector<64x128xf32>
    %37 = math.tanh %36 : vector<64x128xf32>
    %cst_15 = arith.constant 5.000000e-01 : f32
    %38 = vector.broadcast %cst_15 : f32 to vector<64x128xf32>
    %39 = arith.mulf %38, %37 : vector<64x128xf32>
    %cst_16 = arith.constant 5.000000e-01 : f32
    %40 = vector.broadcast %cst_16 : f32 to vector<64x128xf32>
    %41 = arith.addf %39, %40 : vector<64x128xf32>
    %42 = vector.extract_strided_slice %33 {offsets = [0, 256], sizes = [64, 128], strides = [1, 1]} : vector<64x512xf32> to vector<64x128xf32>
    %43 = math.tanh %42 : vector<64x128xf32>
    %44 = vector.extract_strided_slice %33 {offsets = [0, 384], sizes = [64, 128], strides = [1, 1]} : vector<64x512xf32> to vector<64x128xf32>
    %cst_17 = arith.constant 5.000000e-01 : f32
    %45 = vector.broadcast %cst_17 : f32 to vector<64x128xf32>
    %46 = arith.mulf %45, %44 : vector<64x128xf32>
    %47 = math.tanh %46 : vector<64x128xf32>
    %cst_18 = arith.constant 5.000000e-01 : f32
    %48 = vector.broadcast %cst_18 : f32 to vector<64x128xf32>
    %49 = arith.mulf %48, %47 : vector<64x128xf32>
    %cst_19 = arith.constant 5.000000e-01 : f32
    %50 = vector.broadcast %cst_19 : f32 to vector<64x128xf32>
    %51 = arith.addf %49, %50 : vector<64x128xf32>
    %52 = arith.mulf %41, %43 : vector<64x128xf32>
    %53 = math.tanh %52 : vector<64x128xf32>
    %54 = arith.mulf %51, %53 : vector<64x128xf32>
    %55 = arith.truncf %54 : vector<64x128xf32> to vector<64x128xbf16>
    %c0_20 = arith.constant 0 : index
    %c0_21 = arith.constant 0 : index
    %56 = vector.load %arg3[%c0_20, %c0_21] : memref<128x128xbf16, #tpu.memory_space<vmem>>, vector<128x128xbf16>
    %cst_22 = arith.constant dense<0.000000e+00> : vector<64x128xf32>
    %57 = tpu.matmul %55, %56, %cst_22 {dimension_numbers = #tpu.dot_dimension_numbers<[1], [0], [0], [1], [0, 0, 1, 1], [], []>} : vector<64x128xbf16>, vector<128x128xbf16>, vector<64x128xf32> -> vector<64x128xf32>
    %c2 = arith.constant 2 : index
    %c0_23 = arith.constant 0 : index
    %58 = vector.load %arg4[%c2, %c0_23] : memref<8x512xf32, #tpu.memory_space<vmem>>, vector<1x128xf32>
    %59 = vector.broadcast %58 : vector<1x128xf32> to vector<64x128xf32>
    %60 = arith.addf %57, %59 : vector<64x128xf32>
    %c0_24 = arith.constant 0 : index
    %c0_25 = arith.constant 0 : index
    %c0_26 = arith.constant 0 : index
    %61 = vector.load %arg5[%c0_24, %c0_25, %c0_26] : memref<4x64x128xf32, #tpu.memory_space<vmem>>, vector<1x64x128xf32>
    %62 = vector.shape_cast %61 : vector<1x64x128xf32> to vector<64x128xf32>
    %63 = vector.shape_cast %60 : vector<64x128xf32> to vector<1x64x128xf32>
    tpu.vector_store %arg5[%c0_24, %c0_25, %c0_26], %63 {strides = array<i32>} : memref<4x64x128xf32, #tpu.memory_space<vmem>>, vector<1x64x128xf32>,
    %c0_27 = arith.constant 0 : index
    %c0_28 = arith.constant 0 : index
    %64 = vector.load %arg1[%c0_27, %c0_28] : memref<64x128xf32, #tpu.memory_space<vmem>>, vector<64x128xf32>
    %65 = tpu.concatenate %64, %27 in 1 : vector<64x128xf32>, vector<64x128xf32> -> vector<64x256xf32>
    %66 = arith.truncf %65 : vector<64x256xf32> to vector<64x256xbf16>
    %c0_29 = arith.constant 0 : index
    %c0_30 = arith.constant 0 : index
    %67 = vector.load %arg2[%c0_29, %c0_30] : memref<512x512xbf16, #tpu.memory_space<vmem>>, vector<256x512xbf16>
    %cst_31 = arith.constant dense<0.000000e+00> : vector<64x512xf32>
    %68 = tpu.matmul %66, %67, %cst_31 {dimension_numbers = #tpu.dot_dimension_numbers<[1], [0], [0], [1], [0, 0, 1, 1], [], []>} : vector<64x256xbf16>, vector<256x512xbf16>, vector<64x512xf32> -> vector<64x512xf32>
    %c0_32 = arith.constant 0 : index
    %c0_33 = arith.constant 0 : index
    %69 = vector.load %arg4[%c0_32, %c0_33] : memref<8x512xf32, #tpu.memory_space<vmem>>, vector<1x512xf32>
    %70 = vector.broadcast %69 : vector<1x512xf32> to vector<64x512xf32>
    %71 = arith.addf %68, %70 : vector<64x512xf32>
    %72 = vector.extract_strided_slice %71 {offsets = [0, 0], sizes = [64, 128], strides = [1, 1]} : vector<64x512xf32> to vector<64x128xf32>
    %cst_34 = arith.constant 5.000000e-01 : f32
    %73 = vector.broadcast %cst_34 : f32 to vector<64x128xf32>
    %74 = arith.mulf %73, %72 : vector<64x128xf32>
    %75 = math.tanh %74 : vector<64x128xf32>
    %cst_35 = arith.constant 5.000000e-01 : f32
    %76 = vector.broadcast %cst_35 : f32 to vector<64x128xf32>
    %77 = arith.mulf %76, %75 : vector<64x128xf32>
    %cst_36 = arith.constant 5.000000e-01 : f32
    %78 = vector.broadcast %cst_36 : f32 to vector<64x128xf32>
    %79 = arith.addf %77, %78 : vector<64x128xf32>
    %80 = vector.extract_strided_slice %71 {offsets = [0, 256], sizes = [64, 128], strides = [1, 1]} : vector<64x512xf32> to vector<64x128xf32>
    %81 = math.tanh %80 : vector<64x128xf32>
    %82 = vector.extract_strided_slice %71 {offsets = [0, 384], sizes = [64, 128], strides = [1, 1]} : vector<64x512xf32> to vector<64x128xf32>
    %cst_37 = arith.constant 5.000000e-01 : f32
    %83 = vector.broadcast %cst_37 : f32 to vector<64x128xf32>
    %84 = arith.mulf %83, %82 : vector<64x128xf32>
    %85 = math.tanh %84 : vector<64x128xf32>
    %cst_38 = arith.constant 5.000000e-01 : f32
    %86 = vector.broadcast %cst_38 : f32 to vector<64x128xf32>
    %87 = arith.mulf %86, %85 : vector<64x128xf32>
    %cst_39 = arith.constant 5.000000e-01 : f32
    %88 = vector.broadcast %cst_39 : f32 to vector<64x128xf32>
    %89 = arith.addf %87, %88 : vector<64x128xf32>
    %90 = vector.extract_strided_slice %71 {offsets = [0, 128], sizes = [64, 128], strides = [1, 1]} : vector<64x512xf32> to vector<64x128xf32>
    %cst_40 = arith.constant 5.000000e-01 : f32
    %91 = vector.broadcast %cst_40 : f32 to vector<64x128xf32>
    %92 = arith.mulf %91, %90 : vector<64x128xf32>
    %93 = math.tanh %92 : vector<64x128xf32>
    %cst_41 = arith.constant 5.000000e-01 : f32
    %94 = vector.broadcast %cst_41 : f32 to vector<64x128xf32>
    %95 = arith.mulf %94, %93 : vector<64x128xf32>
    %cst_42 = arith.constant 5.000000e-01 : f32
    %96 = vector.broadcast %cst_42 : f32 to vector<64x128xf32>
    %97 = arith.addf %95, %96 : vector<64x128xf32>
    %98 = arith.mulf %97, %25 : vector<64x128xf32>
    %99 = arith.mulf %79, %81 : vector<64x128xf32>
    %100 = arith.addf %98, %99 : vector<64x128xf32>
    %101 = math.tanh %100 : vector<64x128xf32>
    %102 = arith.mulf %89, %101 : vector<64x128xf32>
    %103 = tpu.concatenate %102, %54 in 1 : vector<64x128xf32>, vector<64x128xf32> -> vector<64x256xf32>
    %104 = arith.truncf %103 : vector<64x256xf32> to vector<64x256xbf16>
    %c256_43 = arith.constant 256 : index
    %c0_44 = arith.constant 0 : index
    %105 = vector.load %arg2[%c256_43, %c0_44] : memref<512x512xbf16, #tpu.memory_space<vmem>>, vector<256x512xbf16>
    %cst_45 = arith.constant dense<0.000000e+00> : vector<64x512xf32>
    %106 = tpu.matmul %104, %105, %cst_45 {dimension_numbers = #tpu.dot_dimension_numbers<[1], [0], [0], [1], [0, 0, 1, 1], [], []>} : vector<64x256xbf16>, vector<256x512xbf16>, vector<64x512xf32> -> vector<64x512xf32>
    %c1_46 = arith.constant 1 : index
    %c0_47 = arith.constant 0 : index
    %107 = vector.load %arg4[%c1_46, %c0_47] : memref<8x512xf32, #tpu.memory_space<vmem>>, vector<1x512xf32>
    %108 = vector.broadcast %107 : vector<1x512xf32> to vector<64x512xf32>
    %109 = arith.addf %106, %108 : vector<64x512xf32>
    %110 = vector.extract_strided_slice %109 {offsets = [0, 0], sizes = [64, 128], strides = [1, 1]} : vector<64x512xf32> to vector<64x128xf32>
    %cst_48 = arith.constant 5.000000e-01 : f32
    %111 = vector.broadcast %cst_48 : f32 to vector<64x128xf32>
    %112 = arith.mulf %111, %110 : vector<64x128xf32>
    %113 = math.tanh %112 : vector<64x128xf32>
    %cst_49 = arith.constant 5.000000e-01 : f32
    %114 = vector.broadcast %cst_49 : f32 to vector<64x128xf32>
    %115 = arith.mulf %114, %113 : vector<64x128xf32>
    %cst_50 = arith.constant 5.000000e-01 : f32
    %116 = vector.broadcast %cst_50 : f32 to vector<64x128xf32>
    %117 = arith.addf %115, %116 : vector<64x128xf32>
    %118 = vector.extract_strided_slice %109 {offsets = [0, 256], sizes = [64, 128], strides = [1, 1]} : vector<64x512xf32> to vector<64x128xf32>
    %119 = math.tanh %118 : vector<64x128xf32>
    %120 = vector.extract_strided_slice %109 {offsets = [0, 384], sizes = [64, 128], strides = [1, 1]} : vector<64x512xf32> to vector<64x128xf32>
    %cst_51 = arith.constant 5.000000e-01 : f32
    %121 = vector.broadcast %cst_51 : f32 to vector<64x128xf32>
    %122 = arith.mulf %121, %120 : vector<64x128xf32>
    %123 = math.tanh %122 : vector<64x128xf32>
    %cst_52 = arith.constant 5.000000e-01 : f32
    %124 = vector.broadcast %cst_52 : f32 to vector<64x128xf32>
    %125 = arith.mulf %124, %123 : vector<64x128xf32>
    %cst_53 = arith.constant 5.000000e-01 : f32
    %126 = vector.broadcast %cst_53 : f32 to vector<64x128xf32>
    %127 = arith.addf %125, %126 : vector<64x128xf32>
    %128 = vector.extract_strided_slice %109 {offsets = [0, 128], sizes = [64, 128], strides = [1, 1]} : vector<64x512xf32> to vector<64x128xf32>
    %cst_54 = arith.constant 5.000000e-01 : f32
    %129 = vector.broadcast %cst_54 : f32 to vector<64x128xf32>
    %130 = arith.mulf %129, %128 : vector<64x128xf32>
    %131 = math.tanh %130 : vector<64x128xf32>
    %cst_55 = arith.constant 5.000000e-01 : f32
    %132 = vector.broadcast %cst_55 : f32 to vector<64x128xf32>
    %133 = arith.mulf %132, %131 : vector<64x128xf32>
    %cst_56 = arith.constant 5.000000e-01 : f32
    %134 = vector.broadcast %cst_56 : f32 to vector<64x128xf32>
    %135 = arith.addf %133, %134 : vector<64x128xf32>
    %136 = arith.mulf %135, %52 : vector<64x128xf32>
    %137 = arith.mulf %117, %119 : vector<64x128xf32>
    %138 = arith.addf %136, %137 : vector<64x128xf32>
    %139 = math.tanh %138 : vector<64x128xf32>
    %140 = arith.mulf %127, %139 : vector<64x128xf32>
    %141 = arith.truncf %140 : vector<64x128xf32> to vector<64x128xbf16>
    %c0_57 = arith.constant 0 : index
    %c0_58 = arith.constant 0 : index
    %142 = vector.load %arg3[%c0_57, %c0_58] : memref<128x128xbf16, #tpu.memory_space<vmem>>, vector<128x128xbf16>
    %cst_59 = arith.constant dense<0.000000e+00> : vector<64x128xf32>
    %143 = tpu.matmul %141, %142, %cst_59 {dimension_numbers = #tpu.dot_dimension_numbers<[1], [0], [0], [1], [0, 0, 1, 1], [], []>} : vector<64x128xbf16>, vector<128x128xbf16>, vector<64x128xf32> -> vector<64x128xf32>
    %c2_60 = arith.constant 2 : index
    %c0_61 = arith.constant 0 : index
    %144 = vector.load %arg4[%c2_60, %c0_61] : memref<8x512xf32, #tpu.memory_space<vmem>>, vector<1x128xf32>
    %145 = vector.broadcast %144 : vector<1x128xf32> to vector<64x128xf32>
    %146 = arith.addf %143, %145 : vector<64x128xf32>
    %c1_62 = arith.constant 1 : index
    %c0_63 = arith.constant 0 : index
    %c0_64 = arith.constant 0 : index
    %147 = vector.load %arg5[%c1_62, %c0_63, %c0_64] : memref<4x64x128xf32, #tpu.memory_space<vmem>>, vector<1x64x128xf32>
    %148 = vector.shape_cast %147 : vector<1x64x128xf32> to vector<64x128xf32>
    %149 = vector.shape_cast %146 : vector<64x128xf32> to vector<1x64x128xf32>
    tpu.vector_store %arg5[%c1_62, %c0_63, %c0_64], %149 {strides = array<i32>} : memref<4x64x128xf32, #tpu.memory_space<vmem>>, vector<1x64x128xf32>,
    %c0_65 = arith.constant 0 : index
    %c0_66 = arith.constant 0 : index
    %150 = vector.load %arg1[%c0_65, %c0_66] : memref<64x128xf32, #tpu.memory_space<vmem>>, vector<64x128xf32>
    %151 = tpu.concatenate %150, %102 in 1 : vector<64x128xf32>, vector<64x128xf32> -> vector<64x256xf32>
    %152 = arith.truncf %151 : vector<64x256xf32> to vector<64x256xbf16>
    %c0_67 = arith.constant 0 : index
    %c0_68 = arith.constant 0 : index
    %153 = vector.load %arg2[%c0_67, %c0_68] : memref<512x512xbf16, #tpu.memory_space<vmem>>, vector<256x512xbf16>
    %cst_69 = arith.constant dense<0.000000e+00> : vector<64x512xf32>
    %154 = tpu.matmul %152, %153, %cst_69 {dimension_numbers = #tpu.dot_dimension_numbers<[1], [0], [0], [1], [0, 0, 1, 1], [], []>} : vector<64x256xbf16>, vector<256x512xbf16>, vector<64x512xf32> -> vector<64x512xf32>
    %c0_70 = arith.constant 0 : index
    %c0_71 = arith.constant 0 : index
    %155 = vector.load %arg4[%c0_70, %c0_71] : memref<8x512xf32, #tpu.memory_space<vmem>>, vector<1x512xf32>
    %156 = vector.broadcast %155 : vector<1x512xf32> to vector<64x512xf32>
    %157 = arith.addf %154, %156 : vector<64x512xf32>
    %158 = vector.extract_strided_slice %157 {offsets = [0, 0], sizes = [64, 128], strides = [1, 1]} : vector<64x512xf32> to vector<64x128xf32>
    %cst_72 = arith.constant 5.000000e-01 : f32
    %159 = vector.broadcast %cst_72 : f32 to vector<64x128xf32>
    %160 = arith.mulf %159, %158 : vector<64x128xf32>
    %161 = math.tanh %160 : vector<64x128xf32>
    %cst_73 = arith.constant 5.000000e-01 : f32
    %162 = vector.broadcast %cst_73 : f32 to vector<64x128xf32>
    %163 = arith.mulf %162, %161 : vector<64x128xf32>
    %cst_74 = arith.constant 5.000000e-01 : f32
    %164 = vector.broadcast %cst_74 : f32 to vector<64x128xf32>
    %165 = arith.addf %163, %164 : vector<64x128xf32>
    %166 = vector.extract_strided_slice %157 {offsets = [0, 256], sizes = [64, 128], strides = [1, 1]} : vector<64x512xf32> to vector<64x128xf32>
    %167 = math.tanh %166 : vector<64x128xf32>
    %168 = vector.extract_strided_slice %157 {offsets = [0, 384], sizes = [64, 128], strides = [1, 1]} : vector<64x512xf32> to vector<64x128xf32>
    %cst_75 = arith.constant 5.000000e-01 : f32
    %169 = vector.broadcast %cst_75 : f32 to vector<64x128xf32>
    %170 = arith.mulf %169, %168 : vector<64x128xf32>
    %171 = math.tanh %170 : vector<64x128xf32>
    %cst_76 = arith.constant 5.000000e-01 : f32
    %172 = vector.broadcast %cst_76 : f32 to vector<64x128xf32>
    %173 = arith.mulf %172, %171 : vector<64x128xf32>
    %cst_77 = arith.constant 5.000000e-01 : f32
    %174 = vector.broadcast %cst_77 : f32 to vector<64x128xf32>
    %175 = arith.addf %173, %174 : vector<64x128xf32>
    %176 = vector.extract_strided_slice %157 {offsets = [0, 128], sizes = [64, 128], strides = [1, 1]} : vector<64x512xf32> to vector<64x128xf32>
    %cst_78 = arith.constant 5.000000e-01 : f32
    %177 = vector.broadcast %cst_78 : f32 to vector<64x128xf32>
    %178 = arith.mulf %177, %176 : vector<64x128xf32>
    %179 = math.tanh %178 : vector<64x128xf32>
    %cst_79 = arith.constant 5.000000e-01 : f32
    %180 = vector.broadcast %cst_79 : f32 to vector<64x128xf32>
    %181 = arith.mulf %180, %179 : vector<64x128xf32>
    %cst_80 = arith.constant 5.000000e-01 : f32
    %182 = vector.broadcast %cst_80 : f32 to vector<64x128xf32>
    %183 = arith.addf %181, %182 : vector<64x128xf32>
    %184 = arith.mulf %183, %100 : vector<64x128xf32>
    %185 = arith.mulf %165, %167 : vector<64x128xf32>
    %186 = arith.addf %184, %185 : vector<64x128xf32>
    %187 = math.tanh %186 : vector<64x128xf32>
    %188 = arith.mulf %175, %187 : vector<64x128xf32>
    %189 = tpu.concatenate %188, %140 in 1 : vector<64x128xf32>, vector<64x128xf32> -> vector<64x256xf32>
    %190 = arith.truncf %189 : vector<64x256xf32> to vector<64x256xbf16>
    %c256_81 = arith.constant 256 : index
    %c0_82 = arith.constant 0 : index
    %191 = vector.load %arg2[%c256_81, %c0_82] : memref<512x512xbf16, #tpu.memory_space<vmem>>, vector<256x512xbf16>
    %cst_83 = arith.constant dense<0.000000e+00> : vector<64x512xf32>
    %192 = tpu.matmul %190, %191, %cst_83 {dimension_numbers = #tpu.dot_dimension_numbers<[1], [0], [0], [1], [0, 0, 1, 1], [], []>} : vector<64x256xbf16>, vector<256x512xbf16>, vector<64x512xf32> -> vector<64x512xf32>
    %c1_84 = arith.constant 1 : index
    %c0_85 = arith.constant 0 : index
    %193 = vector.load %arg4[%c1_84, %c0_85] : memref<8x512xf32, #tpu.memory_space<vmem>>, vector<1x512xf32>
    %194 = vector.broadcast %193 : vector<1x512xf32> to vector<64x512xf32>
    %195 = arith.addf %192, %194 : vector<64x512xf32>
    %196 = vector.extract_strided_slice %195 {offsets = [0, 0], sizes = [64, 128], strides = [1, 1]} : vector<64x512xf32> to vector<64x128xf32>
    %cst_86 = arith.constant 5.000000e-01 : f32
    %197 = vector.broadcast %cst_86 : f32 to vector<64x128xf32>
    %198 = arith.mulf %197, %196 : vector<64x128xf32>
    %199 = math.tanh %198 : vector<64x128xf32>
    %cst_87 = arith.constant 5.000000e-01 : f32
    %200 = vector.broadcast %cst_87 : f32 to vector<64x128xf32>
    %201 = arith.mulf %200, %199 : vector<64x128xf32>
    %cst_88 = arith.constant 5.000000e-01 : f32
    %202 = vector.broadcast %cst_88 : f32 to vector<64x128xf32>
    %203 = arith.addf %201, %202 : vector<64x128xf32>
    %204 = vector.extract_strided_slice %195 {offsets = [0, 256], sizes = [64, 128], strides = [1, 1]} : vector<64x512xf32> to vector<64x128xf32>
    %205 = math.tanh %204 : vector<64x128xf32>
    %206 = vector.extract_strided_slice %195 {offsets = [0, 384], sizes = [64, 128], strides = [1, 1]} : vector<64x512xf32> to vector<64x128xf32>
    %cst_89 = arith.constant 5.000000e-01 : f32
    %207 = vector.broadcast %cst_89 : f32 to vector<64x128xf32>
    %208 = arith.mulf %207, %206 : vector<64x128xf32>
    %209 = math.tanh %208 : vector<64x128xf32>
    %cst_90 = arith.constant 5.000000e-01 : f32
    %210 = vector.broadcast %cst_90 : f32 to vector<64x128xf32>
    %211 = arith.mulf %210, %209 : vector<64x128xf32>
    %cst_91 = arith.constant 5.000000e-01 : f32
    %212 = vector.broadcast %cst_91 : f32 to vector<64x128xf32>
    %213 = arith.addf %211, %212 : vector<64x128xf32>
    %214 = vector.extract_strided_slice %195 {offsets = [0, 128], sizes = [64, 128], strides = [1, 1]} : vector<64x512xf32> to vector<64x128xf32>
    %cst_92 = arith.constant 5.000000e-01 : f32
    %215 = vector.broadcast %cst_92 : f32 to vector<64x128xf32>
    %216 = arith.mulf %215, %214 : vector<64x128xf32>
    %217 = math.tanh %216 : vector<64x128xf32>
    %cst_93 = arith.constant 5.000000e-01 : f32
    %218 = vector.broadcast %cst_93 : f32 to vector<64x128xf32>
    %219 = arith.mulf %218, %217 : vector<64x128xf32>
    %cst_94 = arith.constant 5.000000e-01 : f32
    %220 = vector.broadcast %cst_94 : f32 to vector<64x128xf32>
    %221 = arith.addf %219, %220 : vector<64x128xf32>
    %222 = arith.mulf %221, %138 : vector<64x128xf32>
    %223 = arith.mulf %203, %205 : vector<64x128xf32>
    %224 = arith.addf %222, %223 : vector<64x128xf32>
    %225 = math.tanh %224 : vector<64x128xf32>
    %226 = arith.mulf %213, %225 : vector<64x128xf32>
    %227 = arith.truncf %226 : vector<64x128xf32> to vector<64x128xbf16>
    %c0_95 = arith.constant 0 : index
    %c0_96 = arith.constant 0 : index
    %228 = vector.load %arg3[%c0_95, %c0_96] : memref<128x128xbf16, #tpu.memory_space<vmem>>, vector<128x128xbf16>
    %cst_97 = arith.constant dense<0.000000e+00> : vector<64x128xf32>
    %229 = tpu.matmul %227, %228, %cst_97 {dimension_numbers = #tpu.dot_dimension_numbers<[1], [0], [0], [1], [0, 0, 1, 1], [], []>} : vector<64x128xbf16>, vector<128x128xbf16>, vector<64x128xf32> -> vector<64x128xf32>
    %c2_98 = arith.constant 2 : index
    %c0_99 = arith.constant 0 : index
    %230 = vector.load %arg4[%c2_98, %c0_99] : memref<8x512xf32, #tpu.memory_space<vmem>>, vector<1x128xf32>
    %231 = vector.broadcast %230 : vector<1x128xf32> to vector<64x128xf32>
    %232 = arith.addf %229, %231 : vector<64x128xf32>
    %c2_100 = arith.constant 2 : index
    %c0_101 = arith.constant 0 : index
    %c0_102 = arith.constant 0 : index
    %233 = vector.load %arg5[%c2_100, %c0_101, %c0_102] : memref<4x64x128xf32, #tpu.memory_space<vmem>>, vector<1x64x128xf32>
    %234 = vector.shape_cast %233 : vector<1x64x128xf32> to vector<64x128xf32>
    %235 = vector.shape_cast %232 : vector<64x128xf32> to vector<1x64x128xf32>
    tpu.vector_store %arg5[%c2_100, %c0_101, %c0_102], %235 {strides = array<i32>} : memref<4x64x128xf32, #tpu.memory_space<vmem>>, vector<1x64x128xf32>,
    %c0_103 = arith.constant 0 : index
    %c0_104 = arith.constant 0 : index
    %236 = vector.load %arg1[%c0_103, %c0_104] : memref<64x128xf32, #tpu.memory_space<vmem>>, vector<64x128xf32>
    %237 = tpu.concatenate %236, %188 in 1 : vector<64x128xf32>, vector<64x128xf32> -> vector<64x256xf32>
    %238 = arith.truncf %237 : vector<64x256xf32> to vector<64x256xbf16>
    %c0_105 = arith.constant 0 : index
    %c0_106 = arith.constant 0 : index
    %239 = vector.load %arg2[%c0_105, %c0_106] : memref<512x512xbf16, #tpu.memory_space<vmem>>, vector<256x512xbf16>
    %cst_107 = arith.constant dense<0.000000e+00> : vector<64x512xf32>
    %240 = tpu.matmul %238, %239, %cst_107 {dimension_numbers = #tpu.dot_dimension_numbers<[1], [0], [0], [1], [0, 0, 1, 1], [], []>} : vector<64x256xbf16>, vector<256x512xbf16>, vector<64x512xf32> -> vector<64x512xf32>
    %c0_108 = arith.constant 0 : index
    %c0_109 = arith.constant 0 : index
    %241 = vector.load %arg4[%c0_108, %c0_109] : memref<8x512xf32, #tpu.memory_space<vmem>>, vector<1x512xf32>
    %242 = vector.broadcast %241 : vector<1x512xf32> to vector<64x512xf32>
    %243 = arith.addf %240, %242 : vector<64x512xf32>
    %244 = vector.extract_strided_slice %243 {offsets = [0, 0], sizes = [64, 128], strides = [1, 1]} : vector<64x512xf32> to vector<64x128xf32>
    %cst_110 = arith.constant 5.000000e-01 : f32
    %245 = vector.broadcast %cst_110 : f32 to vector<64x128xf32>
    %246 = arith.mulf %245, %244 : vector<64x128xf32>
    %247 = math.tanh %246 : vector<64x128xf32>
    %cst_111 = arith.constant 5.000000e-01 : f32
    %248 = vector.broadcast %cst_111 : f32 to vector<64x128xf32>
    %249 = arith.mulf %248, %247 : vector<64x128xf32>
    %cst_112 = arith.constant 5.000000e-01 : f32
    %250 = vector.broadcast %cst_112 : f32 to vector<64x128xf32>
    %251 = arith.addf %249, %250 : vector<64x128xf32>
    %252 = vector.extract_strided_slice %243 {offsets = [0, 256], sizes = [64, 128], strides = [1, 1]} : vector<64x512xf32> to vector<64x128xf32>
    %253 = math.tanh %252 : vector<64x128xf32>
    %254 = vector.extract_strided_slice %243 {offsets = [0, 384], sizes = [64, 128], strides = [1, 1]} : vector<64x512xf32> to vector<64x128xf32>
    %cst_113 = arith.constant 5.000000e-01 : f32
    %255 = vector.broadcast %cst_113 : f32 to vector<64x128xf32>
    %256 = arith.mulf %255, %254 : vector<64x128xf32>
    %257 = math.tanh %256 : vector<64x128xf32>
    %cst_114 = arith.constant 5.000000e-01 : f32
    %258 = vector.broadcast %cst_114 : f32 to vector<64x128xf32>
    %259 = arith.mulf %258, %257 : vector<64x128xf32>
    %cst_115 = arith.constant 5.000000e-01 : f32
    %260 = vector.broadcast %cst_115 : f32 to vector<64x128xf32>
    %261 = arith.addf %259, %260 : vector<64x128xf32>
    %262 = vector.extract_strided_slice %243 {offsets = [0, 128], sizes = [64, 128], strides = [1, 1]} : vector<64x512xf32> to vector<64x128xf32>
    %cst_116 = arith.constant 5.000000e-01 : f32
    %263 = vector.broadcast %cst_116 : f32 to vector<64x128xf32>
    %264 = arith.mulf %263, %262 : vector<64x128xf32>
    %265 = math.tanh %264 : vector<64x128xf32>
    %cst_117 = arith.constant 5.000000e-01 : f32
    %266 = vector.broadcast %cst_117 : f32 to vector<64x128xf32>
    %267 = arith.mulf %266, %265 : vector<64x128xf32>
    %cst_118 = arith.constant 5.000000e-01 : f32
    %268 = vector.broadcast %cst_118 : f32 to vector<64x128xf32>
    %269 = arith.addf %267, %268 : vector<64x128xf32>
    %270 = arith.mulf %269, %186 : vector<64x128xf32>
    %271 = arith.mulf %251, %253 : vector<64x128xf32>
    %272 = arith.addf %270, %271 : vector<64x128xf32>
    %273 = math.tanh %272 : vector<64x128xf32>
    %274 = arith.mulf %261, %273 : vector<64x128xf32>
    %275 = tpu.concatenate %274, %226 in 1 : vector<64x128xf32>, vector<64x128xf32> -> vector<64x256xf32>
    %276 = arith.truncf %275 : vector<64x256xf32> to vector<64x256xbf16>
    %c256_119 = arith.constant 256 : index
    %c0_120 = arith.constant 0 : index
    %277 = vector.load %arg2[%c256_119, %c0_120] : memref<512x512xbf16, #tpu.memory_space<vmem>>, vector<256x512xbf16>
    %cst_121 = arith.constant dense<0.000000e+00> : vector<64x512xf32>
    %278 = tpu.matmul %276, %277, %cst_121 {dimension_numbers = #tpu.dot_dimension_numbers<[1], [0], [0], [1], [0, 0, 1, 1], [], []>} : vector<64x256xbf16>, vector<256x512xbf16>, vector<64x512xf32> -> vector<64x512xf32>
    %c1_122 = arith.constant 1 : index
    %c0_123 = arith.constant 0 : index
    %279 = vector.load %arg4[%c1_122, %c0_123] : memref<8x512xf32, #tpu.memory_space<vmem>>, vector<1x512xf32>
    %280 = vector.broadcast %279 : vector<1x512xf32> to vector<64x512xf32>
    %281 = arith.addf %278, %280 : vector<64x512xf32>
    %282 = vector.extract_strided_slice %281 {offsets = [0, 0], sizes = [64, 128], strides = [1, 1]} : vector<64x512xf32> to vector<64x128xf32>
    %cst_124 = arith.constant 5.000000e-01 : f32
    %283 = vector.broadcast %cst_124 : f32 to vector<64x128xf32>
    %284 = arith.mulf %283, %282 : vector<64x128xf32>
    %285 = math.tanh %284 : vector<64x128xf32>
    %cst_125 = arith.constant 5.000000e-01 : f32
    %286 = vector.broadcast %cst_125 : f32 to vector<64x128xf32>
    %287 = arith.mulf %286, %285 : vector<64x128xf32>
    %cst_126 = arith.constant 5.000000e-01 : f32
    %288 = vector.broadcast %cst_126 : f32 to vector<64x128xf32>
    %289 = arith.addf %287, %288 : vector<64x128xf32>
    %290 = vector.extract_strided_slice %281 {offsets = [0, 256], sizes = [64, 128], strides = [1, 1]} : vector<64x512xf32> to vector<64x128xf32>
    %291 = math.tanh %290 : vector<64x128xf32>
    %292 = vector.extract_strided_slice %281 {offsets = [0, 384], sizes = [64, 128], strides = [1, 1]} : vector<64x512xf32> to vector<64x128xf32>
    %cst_127 = arith.constant 5.000000e-01 : f32
    %293 = vector.broadcast %cst_127 : f32 to vector<64x128xf32>
    %294 = arith.mulf %293, %292 : vector<64x128xf32>
    %295 = math.tanh %294 : vector<64x128xf32>
    %cst_128 = arith.constant 5.000000e-01 : f32
    %296 = vector.broadcast %cst_128 : f32 to vector<64x128xf32>
    %297 = arith.mulf %296, %295 : vector<64x128xf32>
    %cst_129 = arith.constant 5.000000e-01 : f32
    %298 = vector.broadcast %cst_129 : f32 to vector<64x128xf32>
    %299 = arith.addf %297, %298 : vector<64x128xf32>
    %300 = vector.extract_strided_slice %281 {offsets = [0, 128], sizes = [64, 128], strides = [1, 1]} : vector<64x512xf32> to vector<64x128xf32>
    %cst_130 = arith.constant 5.000000e-01 : f32
    %301 = vector.broadcast %cst_130 : f32 to vector<64x128xf32>
    %302 = arith.mulf %301, %300 : vector<64x128xf32>
    %303 = math.tanh %302 : vector<64x128xf32>
    %cst_131 = arith.constant 5.000000e-01 : f32
    %304 = vector.broadcast %cst_131 : f32 to vector<64x128xf32>
    %305 = arith.mulf %304, %303 : vector<64x128xf32>
    %cst_132 = arith.constant 5.000000e-01 : f32
    %306 = vector.broadcast %cst_132 : f32 to vector<64x128xf32>
    %307 = arith.addf %305, %306 : vector<64x128xf32>
    %308 = arith.mulf %307, %224 : vector<64x128xf32>
    %309 = arith.mulf %289, %291 : vector<64x128xf32>
    %310 = arith.addf %308, %309 : vector<64x128xf32>
    %311 = math.tanh %310 : vector<64x128xf32>
    %312 = arith.mulf %299, %311 : vector<64x128xf32>
    %313 = arith.truncf %312 : vector<64x128xf32> to vector<64x128xbf16>
    %c0_133 = arith.constant 0 : index
    %c0_134 = arith.constant 0 : index
    %314 = vector.load %arg3[%c0_133, %c0_134] : memref<128x128xbf16, #tpu.memory_space<vmem>>, vector<128x128xbf16>
    %cst_135 = arith.constant dense<0.000000e+00> : vector<64x128xf32>
    %315 = tpu.matmul %313, %314, %cst_135 {dimension_numbers = #tpu.dot_dimension_numbers<[1], [0], [0], [1], [0, 0, 1, 1], [], []>} : vector<64x128xbf16>, vector<128x128xbf16>, vector<64x128xf32> -> vector<64x128xf32>
    %c2_136 = arith.constant 2 : index
    %c0_137 = arith.constant 0 : index
    %316 = vector.load %arg4[%c2_136, %c0_137] : memref<8x512xf32, #tpu.memory_space<vmem>>, vector<1x128xf32>
    %317 = vector.broadcast %316 : vector<1x128xf32> to vector<64x128xf32>
    %318 = arith.addf %315, %317 : vector<64x128xf32>
    %c3 = arith.constant 3 : index
    %c0_138 = arith.constant 0 : index
    %c0_139 = arith.constant 0 : index
    %319 = vector.load %arg5[%c3, %c0_138, %c0_139] : memref<4x64x128xf32, #tpu.memory_space<vmem>>, vector<1x64x128xf32>
    %320 = vector.shape_cast %319 : vector<1x64x128xf32> to vector<64x128xf32>
    %321 = vector.shape_cast %318 : vector<64x128xf32> to vector<1x64x128xf32>
    tpu.vector_store %arg5[%c3, %c0_138, %c0_139], %321 {strides = array<i32>} : memref<4x64x128xf32, #tpu.memory_space<vmem>>, vector<1x64x128xf32>,
    return
  }
  func.func @transform_0(%arg0: i32) -> (i32, i32) {
    %c0_i32 = arith.constant 0 : i32
    %c0_i32_0 = arith.constant 0 : i32
    return %arg0, %c0_i32 : i32, i32
  }
  func.func @transform_1(%arg0: i32) -> (i32, i32) {
    %c0_i32 = arith.constant 0 : i32
    %c0_i32_0 = arith.constant 0 : i32
    %c0_i32_1 = arith.constant 0 : i32
    return %c0_i32, %c0_i32_0 : i32, i32
  }
  func.func @transform_2(%arg0: i32) -> (i32, i32) {
    %c0_i32 = arith.constant 0 : i32
    %c0_i32_0 = arith.constant 0 : i32
    %c0_i32_1 = arith.constant 0 : i32
    return %c0_i32, %c0_i32_0 : i32, i32
  }
  func.func @transform_3(%arg0: i32) -> (i32, i32) {
    %c0_i32 = arith.constant 0 : i32
    %c0_i32_0 = arith.constant 0 : i32
    %c0_i32_1 = arith.constant 0 : i32
    return %c0_i32, %c0_i32_0 : i32, i32
  }
  func.func @transform_4(%arg0: i32) -> (i32, i32, i32) {
    %c0_i32 = arith.constant 0 : i32
    %c0_i32_0 = arith.constant 0 : i32
    %c0_i32_1 = arith.constant 0 : i32
    return %c0_i32, %arg0, %c0_i32_0 : i32, i32, i32
  }
}

</mosaic_0001>

<llo_original>
// kernel: decoder_forward_packed.1
$region0: #{decoder_forward_packed.1}
  #allocation0 [shape = 'u32[]', space=smem, size = 0x4, offset = 0x4, fixed_abs, tag = 'smem constant byte address 0x4 - core index']
  #allocation1 [shape = 'u32[144,128]{1,0:T(1,128)}', space=vmem, size = 0x12000, scoped, tag = 'internal scratch']
  %s0 = inlined_call_operand.hbm [shape: f32[64,128], index: 0, kind: input, shape index: {}]
  %s1 = inlined_call_operand.hbm [shape: bf16[512,512], index: 1, kind: input, shape index: {}]
  %s2 = inlined_call_operand.hbm [shape: bf16[128,128], index: 2, kind: input, shape index: {}]
  %s3 = inlined_call_operand.hbm [shape: f32[8,512], index: 3, kind: input, shape index: {}]
  %s4 = inlined_call_operand.vmem [shape: f32[4,64,128], index: 4, kind: output, shape index: {}]
  %s5 = sld [smem:[#allocation0]]
  $region42: #{decoder_forward_packed.1} parent=0
    _
  %s7 = ssub.s32 1, %s5
  %s8 = scalar_select 0, %s7, %s5
  $region1: #{decoder_forward_packed.1} parent=0
    #allocation2 [shape = 'u8[32768]{0}', space=vmem, size = 0x8000, scoped, tag = 'input window, operand 0, single buffered']
    #allocation3 [shape = 's32[1]{0}', space=sflag, size = 0x4, scoped, tag = 'scoped memory for decoder_forward_packed.1']
    #allocation4 [shape = 'u8[524288]{0}', space=vmem, size = 0x80000, scoped, tag = 'input window, operand 1, single buffered']
    #allocation5 [shape = 's32[1]{0}', space=sflag, size = 0x4, scoped, tag = 'scoped memory for decoder_forward_packed.1']
    #allocation6 [shape = 'u8[32768]{0}', space=vmem, size = 0x8000, scoped, tag = 'input window, operand 2, single buffered']
    #allocation7 [shape = 'u8[16384]{0}', space=vmem, size = 0x4000, scoped, tag = 'input window, operand 3, single buffered']
    #allocation8 [shape = 's32[1]{0}', space=sflag, size = 0x4, scoped, tag = 'scoped memory for decoder_forward_packed.1']
    %9 = vsyncpa [#allocation3], 0
    %10 = vsyncpa [#allocation5], 0
    %11 = vsyncpa [#allocation8], 0
    // Predicated region
    $region2: #{decoder_forward_packed.1} parent=1 // pred_check
      _
    $region3: #{decoder_forward_packed.1} parent=1 // pred_check_branch
      %13 = sbr.rel (0) target = $region5
    $region4: #{decoder_forward_packed.1} parent=1 // pred_region
      %s15 = ssub.s32 1024, 1024
      %16 = vsyncadd [#allocation3], %s15
      %s17 = sshll.u32 [#allocation2], 4
      %s18 = int_to_ptr.vmem [resolvable:$true] %s17
      %23 = dma.hbm_to_vmem [thread:$0]  %s0, 1024, %s18, [#allocation3], 128, 128, 8
    $region5: #{decoder_forward_packed.1} parent=1 // pred_fallthru
      _
    // Predicated region
    $region6: #{decoder_forward_packed.1} parent=1 // pred_check
      _
    $region7: #{decoder_forward_packed.1} parent=1 // pred_check_branch
      %25 = sbr.rel (0) target = $region9
    $region8: #{decoder_forward_packed.1} parent=1 // pred_region
      %s27 = ssub.s32 16384, 16384
      %28 = vsyncadd [#allocation5], %s27
      %s29 = sshll.u32 [#allocation4], 4
      %s30 = int_to_ptr.vmem [resolvable:$true] %s29
      %35 = dma.hbm_to_vmem [thread:$0]  %s1, 16384, %s30, [#allocation5], 256, 256, 16
    $region9: #{decoder_forward_packed.1} parent=1 // pred_fallthru
      _
    // Predicated region
    $region10: #{decoder_forward_packed.1} parent=1 // pred_check
      _
    $region11: #{decoder_forward_packed.1} parent=1 // pred_check_branch
      %37 = sbr.rel (0) target = $region13
    $region12: #{decoder_forward_packed.1} parent=1 // pred_region
      %s39 = ssub.s32 1024, 1024
      %40 = vsyncadd [#allocation5], %s39
      %s41 = sshll.u32 [#allocation6], 4
      %s42 = int_to_ptr.vmem [resolvable:$true] %s41
      %47 = dma.hbm_to_vmem [thread:$0]  %s2, 1024, %s42, [#allocation5], 64, 64, 4
    $region13: #{decoder_forward_packed.1} parent=1 // pred_fallthru
      _
    // Predicated region
    $region14: #{decoder_forward_packed.1} parent=1 // pred_check
      _
    $region15: #{decoder_forward_packed.1} parent=1 // pred_check_branch
      %49 = sbr.rel (0) target = $region17
    $region16: #{decoder_forward_packed.1} parent=1 // pred_region
      %s51 = ssub.s32 512, 512
      %52 = vsyncadd [#allocation8], %s51
      %s54 = sshll.u32 [#allocation7], 4
      %s55 = int_to_ptr.vmem [resolvable:$true] %s54
      %57 = dma.hbm_to_vmem [thread:$0]  %s3, 512, %s55, [#allocation8]
    $region17: #{decoder_forward_packed.1} parent=1 // pred_fallthru
      _
    // Predicated region
    $region18: #{decoder_forward_packed.1} parent=1 // pred_check
      _
    $region19: #{decoder_forward_packed.1} parent=1 // pred_check_branch
      %59 = sbr.rel (0) target = $region21
    $region20: #{decoder_forward_packed.1} parent=1 // pred_region
      %60 = dma.done [#allocation3], 1024
    $region21: #{decoder_forward_packed.1} parent=1 // pred_fallthru
      _
    // Predicated region
    $region22: #{decoder_forward_packed.1} parent=1 // pred_check
      _
    $region23: #{decoder_forward_packed.1} parent=1 // pred_check_branch
      %62 = sbr.rel (0) target = $region25
    $region24: #{decoder_forward_packed.1} parent=1 // pred_region
      %63 = dma.done [#allocation5], 16384
    $region25: #{decoder_forward_packed.1} parent=1 // pred_fallthru
      _
    // Predicated region
    $region26: #{decoder_forward_packed.1} parent=1 // pred_check
      _
    $region27: #{decoder_forward_packed.1} parent=1 // pred_check_branch
      %65 = sbr.rel (0) target = $region29
    $region28: #{decoder_forward_packed.1} parent=1 // pred_region
      %66 = dma.done [#allocation5], 1024
    $region29: #{decoder_forward_packed.1} parent=1 // pred_fallthru
      _
    // Predicated region
    $region30: #{decoder_forward_packed.1} parent=1 // pred_check
      _
    $region31: #{decoder_forward_packed.1} parent=1 // pred_check_branch
      %68 = sbr.rel (0) target = $region33
    $region32: #{decoder_forward_packed.1} parent=1 // pred_region
      %69 = dma.done [#allocation8], 512
    $region33: #{decoder_forward_packed.1} parent=1 // pred_fallthru
      _
    %v71 = vld [vmem:[#allocation2] sm:$0xff]
    %v72 = vld [vmem:[#allocation2 + $0x8] sm:$0xff]
    %v73 = vld [vmem:[#allocation2 + $0x10] sm:$0xff]
    %v74 = vld [vmem:[#allocation2 + $0x18] sm:$0xff]
    %v75 = vld [vmem:[#allocation2 + $0x20] sm:$0xff]
    %v76 = vld [vmem:[#allocation2 + $0x28] sm:$0xff]
    %v77 = vld [vmem:[#allocation2 + $0x30] sm:$0xff]
    %v78 = vld [vmem:[#allocation2 + $0x38] sm:$0xff]
    %v79 = vpack.c.bf16 %v72, %v71
    %v80 = vpack.c.bf16 %v74, %v73
    %v81 = vpack.c.bf16 %v76, %v75
    %v82 = vpack.c.bf16 %v78, %v77
    %v83 = vld [vmem:[#allocation4] sm:$0xff]
    %v84 = vld [vmem:[#allocation4 + $0x8] sm:$0xff]
    %v85 = vld [vmem:[#allocation4 + $0x10] sm:$0xff]
    %v86 = vld [vmem:[#allocation4 + $0x18] sm:$0xff]
    %v87 = vld [vmem:[#allocation4 + $0x20] sm:$0xff]
    %v88 = vld [vmem:[#allocation4 + $0x28] sm:$0xff]
    %v89 = vld [vmem:[#allocation4 + $0x30] sm:$0xff]
    %v90 = vld [vmem:[#allocation4 + $0x38] sm:$0xff]
    %v91 = vld [vmem:[#allocation4 + $0x40] sm:$0xff]
    %v92 = vld [vmem:[#allocation4 + $0x48] sm:$0xff]
    %v93 = vld [vmem:[#allocation4 + $0x50] sm:$0xff]
    %v94 = vld [vmem:[#allocation4 + $0x58] sm:$0xff]
    %v95 = vld [vmem:[#allocation4 + $0x60] sm:$0xff]
    %v96 = vld [vmem:[#allocation4 + $0x68] sm:$0xff]
    %v97 = vld [vmem:[#allocation4 + $0x70] sm:$0xff]
    %v98 = vld [vmem:[#allocation4 + $0x78] sm:$0xff]
    %v99 = vld [vmem:[#allocation4 + $0x80] sm:$0xff]
    %v100 = vld [vmem:[#allocation4 + $0x88] sm:$0xff]
    %v101 = vld [vmem:[#allocation4 + $0x90] sm:$0xff]
    %v102 = vld [vmem:[#allocation4 + $0x98] sm:$0xff]
    %v103 = vld [vmem:[#allocation4 + $0xa0] sm:$0xff]
    %v104 = vld [vmem:[#allocation4 + $0xa8] sm:$0xff]
    %v105 = vld [vmem:[#allocation4 + $0xb0] sm:$0xff]
    %v106 = vld [vmem:[#allocation4 + $0xb8] sm:$0xff]
    %v107 = vld [vmem:[#allocation4 + $0xc0] sm:$0xff]
    %v108 = vld [vmem:[#allocation4 + $0xc8] sm:$0xff]
    %v109 = vld [vmem:[#allocation4 + $0xd0] sm:$0xff]
    %v110 = vld [vmem:[#allocation4 + $0xd8] sm:$0xff]
    %v111 = vld [vmem:[#allocation4 + $0xe0] sm:$0xff]
    %v112 = vld [vmem:[#allocation4 + $0xe8] sm:$0xff]
    %v113 = vld [vmem:[#allocation4 + $0xf0] sm:$0xff]
    %v114 = vld [vmem:[#allocation4 + $0xf8] sm:$0xff]
    %v115 = vld [vmem:[#allocation7] ss:$8 sm:$0xf]
    %v117 = vlaneseq
    %v118 = vshrl.u32 %v117, 7
    %v119 = vsub.s32 0, %v118
    %v120 = vrot.slane %v115, %v119
    %v121 = vlaneseq
    %v122 = vshrl.u32 %v121, 7
    %v123 = vsub.s32 2, %v122
    %v124 = vrot.slane %v115, %v123
    %v125 = vlaneseq
    %v126 = vshrl.u32 %v125, 7
    %v127 = vsub.s32 3, %v126
    %v128 = vrot.slane %v115, %v127
    %v164 = vunpack.c.l.b16 %v83
    %v165 = vunpack.c.h.b16 %v83
    %v166 = vunpack.c.l.b16 %v84
    %v167 = vunpack.c.h.b16 %v84
    %v168 = vunpack.c.l.b16 %v85
    %v169 = vunpack.c.h.b16 %v85
    %v170 = vunpack.c.l.b16 %v86
    %v171 = vunpack.c.h.b16 %v86
    %v172 = vunpack.c.l.b16 %v87
    %v173 = vunpack.c.h.b16 %v87
    %v174 = vunpack.c.l.b16 %v88
    %v175 = vunpack.c.h.b16 %v88
    %v176 = vunpack.c.l.b16 %v89
    %v177 = vunpack.c.h.b16 %v89
    %v178 = vunpack.c.l.b16 %v90
    %v179 = vunpack.c.h.b16 %v90
    %v180 = vunpack.c.l.b16 %v91
    %v181 = vunpack.c.h.b16 %v91
    %v182 = vunpack.c.l.b16 %v92
    %v183 = vunpack.c.h.b16 %v92
    %v184 = vunpack.c.l.b16 %v93
    %v185 = vunpack.c.h.b16 %v93
    %v186 = vunpack.c.l.b16 %v94
    %v187 = vunpack.c.h.b16 %v94
    %v188 = vunpack.c.l.b16 %v95
    %v189 = vunpack.c.h.b16 %v95
    %v190 = vunpack.c.l.b16 %v96
    %v191 = vunpack.c.h.b16 %v96
    %v192 = vunpack.c.l.b16 %v97
    %v193 = vunpack.c.h.b16 %v97
    %v194 = vunpack.c.l.b16 %v98
    %v195 = vunpack.c.h.b16 %v98
    %v196 = vunpack.c.l.b16 %v99
    %v197 = vunpack.c.h.b16 %v99
    %v198 = vunpack.c.l.b16 %v100
    %v199 = vunpack.c.h.b16 %v100
    %v200 = vunpack.c.l.b16 %v101
    %v201 = vunpack.c.h.b16 %v101
    %v202 = vunpack.c.l.b16 %v102
    %v203 = vunpack.c.h.b16 %v102
    %v204 = vunpack.c.l.b16 %v103
    %v205 = vunpack.c.h.b16 %v103
    %v206 = vunpack.c.l.b16 %v104
    %v207 = vunpack.c.h.b16 %v104
    %v208 = vunpack.c.l.b16 %v105
    %v209 = vunpack.c.h.b16 %v105
    %v210 = vunpack.c.l.b16 %v106
    %v211 = vunpack.c.h.b16 %v106
    %v212 = vunpack.c.l.b16 %v107
    %v213 = vunpack.c.h.b16 %v107
    %v214 = vunpack.c.l.b16 %v108
    %v215 = vunpack.c.h.b16 %v108
    %v216 = vunpack.c.l.b16 %v109
    %v217 = vunpack.c.h.b16 %v109
    %v218 = vunpack.c.l.b16 %v110
    %v219 = vunpack.c.h.b16 %v110
    %v220 = vunpack.c.l.b16 %v111
    %v221 = vunpack.c.h.b16 %v111
    %v222 = vunpack.c.l.b16 %v112
    %v223 = vunpack.c.h.b16 %v112
    %v224 = vunpack.c.l.b16 %v113
    %v225 = vunpack.c.h.b16 %v113
    %v226 = vunpack.c.l.b16 %v114
    %v227 = vunpack.c.h.b16 %v114
    %v228 = vpack.c.b16 %v168, %v164
    %v229 = vpack.c.b16 %v169, %v165
    %v230 = vpack.c.b16 %v170, %v166
    %v231 = vpack.c.b16 %v171, %v167
    %v232 = vpack.c.b16 %v176, %v172
    %v233 = vpack.c.b16 %v177, %v173
    %v234 = vpack.c.b16 %v178, %v174
    %v235 = vpack.c.b16 %v179, %v175
    %v236 = vpack.c.b16 %v184, %v180
    %v237 = vpack.c.b16 %v185, %v181
    %v238 = vpack.c.b16 %v186, %v182
    %v239 = vpack.c.b16 %v187, %v183
    %v240 = vpack.c.b16 %v192, %v188
    %v241 = vpack.c.b16 %v193, %v189
    %v242 = vpack.c.b16 %v194, %v190
    %v243 = vpack.c.b16 %v195, %v191
    %v244 = vpack.c.b16 %v200, %v196
    %v245 = vpack.c.b16 %v201, %v197
    %v246 = vpack.c.b16 %v202, %v198
    %v247 = vpack.c.b16 %v203, %v199
    %v248 = vpack.c.b16 %v208, %v204
    %v249 = vpack.c.b16 %v209, %v205
    %v250 = vpack.c.b16 %v210, %v206
    %v251 = vpack.c.b16 %v211, %v207
    %v252 = vpack.c.b16 %v216, %v212
    %v253 = vpack.c.b16 %v217, %v213
    %v254 = vpack.c.b16 %v218, %v214
    %v255 = vpack.c.b16 %v219, %v215
    %v256 = vpack.c.b16 %v224, %v220
    %v257 = vpack.c.b16 %v225, %v221
    %v258 = vpack.c.b16 %v226, %v222
    %v259 = vpack.c.b16 %v227, %v223
    %292 = vmatprep.subr.bf16.mxu0 %v229
    %293 = vmatpush1.bf16.msra.mxu0 %v228
    %294 = vmatprep.subr.bf16.mxu0 %v233
    %295 = vmatpush1.bf16.msra.mxu0 %v232
    %296 = vmatprep.subr.bf16.mxu0 %v237
    %297 = vmatpush1.bf16.msra.mxu0 %v236
    %298 = vmatprep.subr.bf16.mxu0 %v241
    %299 = vmatpush1.bf16.msra.mxu0 %v240
    %300 = vmatprep.subr.bf16.mxu0 %v245
    %301 = vmatpush1.bf16.msra.mxu0 %v244
    %302 = vmatprep.subr.bf16.mxu0 %v249
    %303 = vmatpush1.bf16.msra.mxu0 %v248
    %304 = vmatprep.subr.bf16.mxu0 %v253
    %305 = vmatpush1.bf16.msra.mxu0 %v252
    %306 = vmatprep.subr.bf16.mxu0 %v257
    %307 = vmatpush1.bf16.msra.mxu0 %v256
    %308 = vmatprep.subr.bf16.mxu0 0
    %309 = vmatpush1.bf16.msra.mxu0 0
    %310 = vmatprep.subr.bf16.mxu0 0
    %311 = vmatpush1.bf16.msra.mxu0 0
    %312 = vmatprep.subr.bf16.mxu0 0
    %313 = vmatpush1.bf16.msra.mxu0 0
    %314 = vmatprep.subr.bf16.mxu0 0
    %315 = vmatpush1.bf16.msra.mxu0 0
    %316 = vmatprep.subr.bf16.mxu0 0
    %317 = vmatpush1.bf16.msra.mxu0 0
    %318 = vmatprep.subr.bf16.mxu0 0
    %319 = vmatpush1.bf16.msra.mxu0 0
    %320 = vmatprep.subr.bf16.mxu0 0
    %321 = vmatpush1.bf16.msra.mxu0 0
    %322 = vmatprep.subr.bf16.mxu0 0
    %323 = vmatpush1.bf16.msra.mxu0 0
    %324 = vmatprep.mubr.bf16.mxu0 0
    %325 = vmatmul.mubr.bf16.gmra.mrb[0].mxu0 %v79
    %v326 = vpop.f32.mrb[0].mxu0
    %v327 = vadd.f32 %v120, %v326
    %v328 = vpop.f32.mrb[0].mxu0
    %v329 = vpop.f32.mrb[0].mxu0
    %v330 = vadd.f32 %v120, %v329
    %v331 = vpop.f32.mrb[0].mxu0
    %332 = vmatprep.mubr.bf16.mxu0 0
    %333 = vmatmul.mubr.bf16.gmra.mrb[0].mxu0 %v80
    %v334 = vpop.f32.mrb[0].mxu0
    %v335 = vadd.f32 %v120, %v334
    %v336 = vpop.f32.mrb[0].mxu0
    %v337 = vpop.f32.mrb[0].mxu0
    %v338 = vadd.f32 %v120, %v337
    %v339 = vpop.f32.mrb[0].mxu0
    %340 = vmatprep.mubr.bf16.mxu0 0
    %341 = vmatmul.mubr.bf16.gmra.mrb[0].mxu0 %v81
    %v342 = vpop.f32.mrb[0].mxu0
    %v343 = vadd.f32 %v120, %v342
    %v344 = vpop.f32.mrb[0].mxu0
    %v345 = vpop.f32.mrb[0].mxu0
    %v346 = vadd.f32 %v120, %v345
    %v347 = vpop.f32.mrb[0].mxu0
    %348 = vmatprep.mubr.bf16.mxu0 0
    %349 = vmatmul.mubr.bf16.gmra.mrb[0].mxu0 %v82
    %v350 = vpop.f32.mrb[0].mxu0
    %v351 = vadd.f32 %v120, %v350
    %v352 = vpop.f32.mrb[0].mxu0
    %v353 = vpop.f32.mrb[0].mxu0
    %v354 = vadd.f32 %v120, %v353
    %v355 = vpop.f32.mrb[0].mxu0
    %356 = vdwg.mxu0
    %357 = vmatprep.subr.bf16.mxu0 %v231
    %358 = vmatpush1.bf16.msra.mxu0 %v230
    %359 = vmatprep.subr.bf16.mxu0 %v235
    %360 = vmatpush1.bf16.msra.mxu0 %v234
    %361 = vmatprep.subr.bf16.mxu0 %v239
    %362 = vmatpush1.bf16.msra.mxu0 %v238
    %363 = vmatprep.subr.bf16.mxu0 %v243
    %364 = vmatpush1.bf16.msra.mxu0 %v242
    %365 = vmatprep.subr.bf16.mxu0 %v247
    %366 = vmatpush1.bf16.msra.mxu0 %v246
    %367 = vmatprep.subr.bf16.mxu0 %v251
    %368 = vmatpush1.bf16.msra.mxu0 %v250
    %369 = vmatprep.subr.bf16.mxu0 %v255
    %370 = vmatpush1.bf16.msra.mxu0 %v254
    %371 = vmatprep.subr.bf16.mxu0 %v259
    %372 = vmatpush1.bf16.msra.mxu0 %v258
    %373 = vmatprep.subr.bf16.mxu0 0
    %374 = vmatpush1.bf16.msra.mxu0 0
    %375 = vmatprep.subr.bf16.mxu0 0
    %376 = vmatpush1.bf16.msra.mxu0 0
    %377 = vmatprep.subr.bf16.mxu0 0
    %378 = vmatpush1.bf16.msra.mxu0 0
    %379 = vmatprep.subr.bf16.mxu0 0
    %380 = vmatpush1.bf16.msra.mxu0 0
    %381 = vmatprep.subr.bf16.mxu0 0
    %382 = vmatpush1.bf16.msra.mxu0 0
    %383 = vmatprep.subr.bf16.mxu0 0
    %384 = vmatpush1.bf16.msra.mxu0 0
    %385 = vmatprep.subr.bf16.mxu0 0
    %386 = vmatpush1.bf16.msra.mxu0 0
    %387 = vmatprep.subr.bf16.mxu0 0
    %388 = vmatpush1.bf16.msra.mxu0 0
    %389 = vmatprep.mubr.bf16.mxu0 0
    %390 = vmatmul.mubr.bf16.gmra.mrb[0].mxu0 %v79
    %v391 = vpop.f32.mrb[0].mxu0
    %v392 = vadd.f32 %v124, %v391
    %v393 = vpop.f32.mrb[0].mxu0
    %v394 = vadd.f32 %v128, %v393
    %v395 = vpop.f32.mrb[0].mxu0
    %v396 = vadd.f32 %v124, %v395
    %v397 = vpop.f32.mrb[0].mxu0
    %v398 = vadd.f32 %v128, %v397
    %399 = vmatprep.mubr.bf16.mxu0 0
    %400 = vmatmul.mubr.bf16.gmra.mrb[0].mxu0 %v80
    %v401 = vpop.f32.mrb[0].mxu0
    %v402 = vadd.f32 %v124, %v401
    %v403 = vpop.f32.mrb[0].mxu0
    %v404 = vadd.f32 %v128, %v403
    %v405 = vpop.f32.mrb[0].mxu0
    %v406 = vadd.f32 %v124, %v405
    %v407 = vpop.f32.mrb[0].mxu0
    %v408 = vadd.f32 %v128, %v407
    %409 = vmatprep.mubr.bf16.mxu0 0
    %410 = vmatmul.mubr.bf16.gmra.mrb[0].mxu0 %v81
    %v411 = vpop.f32.mrb[0].mxu0
    %v412 = vadd.f32 %v124, %v411
    %v413 = vpop.f32.mrb[0].mxu0
    %v414 = vadd.f32 %v128, %v413
    %v415 = vpop.f32.mrb[0].mxu0
    %v416 = vadd.f32 %v124, %v415
    %v417 = vpop.f32.mrb[0].mxu0
    %v418 = vadd.f32 %v128, %v417
    %419 = vmatprep.mubr.bf16.mxu0 0
    %420 = vmatmul.mubr.bf16.gmra.mrb[0].mxu0 %v82
    %v421 = vpop.f32.mrb[0].mxu0
    %v422 = vadd.f32 %v124, %v421
    %v423 = vpop.f32.mrb[0].mxu0
    %v424 = vadd.f32 %v128, %v423
    %v425 = vpop.f32.mrb[0].mxu0
    %v426 = vadd.f32 %v124, %v425
    %v427 = vpop.f32.mrb[0].mxu0
    %v428 = vadd.f32 %v128, %v427
    %429 = vdwg.mxu0
    %v430 = vmul.f32 %v327, 0.5
    %v431 = vmul.f32 %v330, 0.5
    %v432 = vmul.f32 %v335, 0.5
    %v433 = vmul.f32 %v338, 0.5
    %v434 = vmul.f32 %v343, 0.5
    %v435 = vmul.f32 %v346, 0.5
    %v436 = vmul.f32 %v351, 0.5
    %v437 = vmul.f32 %v354, 0.5
    %v438 = vtanh.pop %v430
    %v439 = vtanh.pop %v431
    %v440 = vtanh.pop %v432
    %v441 = vtanh.pop %v433
    %v442 = vtanh.pop %v434
    %v443 = vtanh.pop %v435
    %v444 = vtanh.pop %v436
    %v445 = vtanh.pop %v437
    %v446 = vmul.f32 %v438, 0.5
    %v447 = vmul.f32 %v439, 0.5
    %v448 = vmul.f32 %v440, 0.5
    %v449 = vmul.f32 %v441, 0.5
    %v450 = vmul.f32 %v442, 0.5
    %v451 = vmul.f32 %v443, 0.5
    %v452 = vmul.f32 %v444, 0.5
    %v453 = vmul.f32 %v445, 0.5
    %v454 = vadd.f32 %v446, 0.5
    %v455 = vadd.f32 %v447, 0.5
    %v456 = vadd.f32 %v448, 0.5
    %v457 = vadd.f32 %v449, 0.5
    %v458 = vadd.f32 %v450, 0.5
    %v459 = vadd.f32 %v451, 0.5
    %v460 = vadd.f32 %v452, 0.5
    %v461 = vadd.f32 %v453, 0.5
    %v462 = vtanh.pop %v392
    %v463 = vtanh.pop %v396
    %v464 = vtanh.pop %v402
    %v465 = vtanh.pop %v406
    %v466 = vtanh.pop %v412
    %v467 = vtanh.pop %v416
    %v468 = vtanh.pop %v422
    %v469 = vtanh.pop %v426
    %v470 = vmul.f32 %v394, 0.5
    %v471 = vmul.f32 %v398, 0.5
    %v472 = vmul.f32 %v404, 0.5
    %v473 = vmul.f32 %v408, 0.5
    %v474 = vmul.f32 %v414, 0.5
    %v475 = vmul.f32 %v418, 0.5
    %v476 = vmul.f32 %v424, 0.5
    %v477 = vmul.f32 %v428, 0.5
    %v478 = vtanh.pop %v470
    %v479 = vtanh.pop %v471
    %v480 = vtanh.pop %v472
    %v481 = vtanh.pop %v473
    %v482 = vtanh.pop %v474
    %v483 = vtanh.pop %v475
    %v484 = vtanh.pop %v476
    %v485 = vtanh.pop %v477
    %v486 = vmul.f32 %v478, 0.5
    %v487 = vmul.f32 %v479, 0.5
    %v488 = vmul.f32 %v480, 0.5
    %v489 = vmul.f32 %v481, 0.5
    %v490 = vmul.f32 %v482, 0.5
    %v491 = vmul.f32 %v483, 0.5
    %v492 = vmul.f32 %v484, 0.5
    %v493 = vmul.f32 %v485, 0.5
    %v494 = vadd.f32 %v486, 0.5
    %v495 = vadd.f32 %v487, 0.5
    %v496 = vadd.f32 %v488, 0.5
    %v497 = vadd.f32 %v489, 0.5
    %v498 = vadd.f32 %v490, 0.5
    %v499 = vadd.f32 %v491, 0.5
    %v500 = vadd.f32 %v492, 0.5
    %v501 = vadd.f32 %v493, 0.5
    %v502 = vmul.f32 %v454, %v462
    %v503 = vmul.f32 %v455, %v463
    %v504 = vmul.f32 %v456, %v464
    %v505 = vmul.f32 %v457, %v465
    %v506 = vmul.f32 %v458, %v466
    %v507 = vmul.f32 %v459, %v467
    %v508 = vmul.f32 %v460, %v468
    %v509 = vmul.f32 %v461, %v469
    %v510 = vtanh.pop %v502
    %v511 = vtanh.pop %v503
    %v512 = vtanh.pop %v504
    %v513 = vtanh.pop %v505
    %v514 = vtanh.pop %v506
    %v515 = vtanh.pop %v507
    %v516 = vtanh.pop %v508
    %v517 = vtanh.pop %v509
    %v518 = vmul.f32 %v494, %v510
    %v519 = vmul.f32 %v495, %v511
    %v520 = vmul.f32 %v496, %v512
    %v521 = vmul.f32 %v497, %v513
    %v522 = vmul.f32 %v498, %v514
    %v523 = vmul.f32 %v499, %v515
    %v524 = vmul.f32 %v500, %v516
    %v525 = vmul.f32 %v501, %v517
    %v526 = vpack.c.bf16 %v519, %v518
    %v527 = vpack.c.bf16 %v521, %v520
    %v528 = vpack.c.bf16 %v523, %v522
    %v529 = vpack.c.bf16 %v525, %v524
    %v530 = vld [vmem:[#allocation4 + $0x200] sm:$0xff]
    %v531 = vld [vmem:[#allocation4 + $0x208] sm:$0xff]
    %v532 = vld [vmem:[#allocation4 + $0x210] sm:$0xff]
    %v533 = vld [vmem:[#allocation4 + $0x218] sm:$0xff]
    %v534 = vld [vmem:[#allocation4 + $0x220] sm:$0xff]
    %v535 = vld [vmem:[#allocation4 + $0x228] sm:$0xff]
    %v536 = vld [vmem:[#allocation4 + $0x230] sm:$0xff]
    %v537 = vld [vmem:[#allocation4 + $0x238] sm:$0xff]
    %v538 = vld [vmem:[#allocation4 + $0x240] sm:$0xff]
    %v539 = vld [vmem:[#allocation4 + $0x248] sm:$0xff]
    %v540 = vld [vmem:[#allocation4 + $0x250] sm:$0xff]
    %v541 = vld [vmem:[#allocation4 + $0x258] sm:$0xff]
    %v542 = vld [vmem:[#allocation4 + $0x260] sm:$0xff]
    %v543 = vld [vmem:[#allocation4 + $0x268] sm:$0xff]
    %v544 = vld [vmem:[#allocation4 + $0x270] sm:$0xff]
    %v545 = vld [vmem:[#allocation4 + $0x278] sm:$0xff]
    %v546 = vld [vmem:[#allocation4 + $0x280] sm:$0xff]
    %v547 = vld [vmem:[#allocation4 + $0x288] sm:$0xff]
    %v548 = vld [vmem:[#allocation4 + $0x290] sm:$0xff]
    %v549 = vld [vmem:[#allocation4 + $0x298] sm:$0xff]
    %v550 = vld [vmem:[#allocation4 + $0x2a0] sm:$0xff]
    %v551 = vld [vmem:[#allocation4 + $0x2a8] sm:$0xff]
    %v552 = vld [vmem:[#allocation4 + $0x2b0] sm:$0xff]
    %v553 = vld [vmem:[#allocation4 + $0x2b8] sm:$0xff]
    %v554 = vld [vmem:[#allocation4 + $0x2c0] sm:$0xff]
    %v555 = vld [vmem:[#allocation4 + $0x2c8] sm:$0xff]
    %v556 = vld [vmem:[#allocation4 + $0x2d0] sm:$0xff]
    %v557 = vld [vmem:[#allocation4 + $0x2d8] sm:$0xff]
    %v558 = vld [vmem:[#allocation4 + $0x2e0] sm:$0xff]
    %v559 = vld [vmem:[#allocation4 + $0x2e8] sm:$0xff]
    %v560 = vld [vmem:[#allocation4 + $0x2f0] sm:$0xff]
    %v561 = vld [vmem:[#allocation4 + $0x2f8] sm:$0xff]
    %s562 = scalar_lea.vmem [#allocation7], 1
    %v563 = vld [vmem:[%s562] ss:$8 sm:$0xf]
    %v565 = vlaneseq
    %v566 = vshrl.u32 %v565, 7
    %v567 = vsub.s32 0, %v566
    %v568 = vrot.slane %v563, %v567
    %v569 = vlaneseq
    %v570 = vshrl.u32 %v569, 7
    %v571 = vsub.s32 2, %v570
    %v572 = vrot.slane %v563, %v571
    %v573 = vlaneseq
    %v574 = vshrl.u32 %v573, 7
    %v575 = vsub.s32 3, %v574
    %v576 = vrot.slane %v563, %v575
    %v612 = vunpack.c.l.b16 %v530
    %v613 = vunpack.c.h.b16 %v530
    %v614 = vunpack.c.l.b16 %v531
    %v615 = vunpack.c.h.b16 %v531
    %v616 = vunpack.c.l.b16 %v532
    %v617 = vunpack.c.h.b16 %v532
    %v618 = vunpack.c.l.b16 %v533
    %v619 = vunpack.c.h.b16 %v533
    %v620 = vunpack.c.l.b16 %v534
    %v621 = vunpack.c.h.b16 %v534
    %v622 = vunpack.c.l.b16 %v535
    %v623 = vunpack.c.h.b16 %v535
    %v624 = vunpack.c.l.b16 %v536
    %v625 = vunpack.c.h.b16 %v536
    %v626 = vunpack.c.l.b16 %v537
    %v627 = vunpack.c.h.b16 %v537
    %v628 = vunpack.c.l.b16 %v538
    %v629 = vunpack.c.h.b16 %v538
    %v630 = vunpack.c.l.b16 %v539
    %v631 = vunpack.c.h.b16 %v539
    %v632 = vunpack.c.l.b16 %v540
    %v633 = vunpack.c.h.b16 %v540
    %v634 = vunpack.c.l.b16 %v541
    %v635 = vunpack.c.h.b16 %v541
    %v636 = vunpack.c.l.b16 %v542
    %v637 = vunpack.c.h.b16 %v542
    %v638 = vunpack.c.l.b16 %v543
    %v639 = vunpack.c.h.b16 %v543
    %v640 = vunpack.c.l.b16 %v544
    %v641 = vunpack.c.h.b16 %v544
    %v642 = vunpack.c.l.b16 %v545
    %v643 = vunpack.c.h.b16 %v545
    %v644 = vunpack.c.l.b16 %v546
    %v645 = vunpack.c.h.b16 %v546
    %v646 = vunpack.c.l.b16 %v547
    %v647 = vunpack.c.h.b16 %v547
    %v648 = vunpack.c.l.b16 %v548
    %v649 = vunpack.c.h.b16 %v548
    %v650 = vunpack.c.l.b16 %v549
    %v651 = vunpack.c.h.b16 %v549
    %v652 = vunpack.c.l.b16 %v550
    %v653 = vunpack.c.h.b16 %v550
    %v654 = vunpack.c.l.b16 %v551
    %v655 = vunpack.c.h.b16 %v551
    %v656 = vunpack.c.l.b16 %v552
    %v657 = vunpack.c.h.b16 %v552
    %v658 = vunpack.c.l.b16 %v553
    %v659 = vunpack.c.h.b16 %v553
    %v660 = vunpack.c.l.b16 %v554
    %v661 = vunpack.c.h.b16 %v554
    %v662 = vunpack.c.l.b16 %v555
    %v663 = vunpack.c.h.b16 %v555
    %v664 = vunpack.c.l.b16 %v556
    %v665 = vunpack.c.h.b16 %v556
    %v666 = vunpack.c.l.b16 %v557
    %v667 = vunpack.c.h.b16 %v557
    %v668 = vunpack.c.l.b16 %v558
    %v669 = vunpack.c.h.b16 %v558
    %v670 = vunpack.c.l.b16 %v559
    %v671 = vunpack.c.h.b16 %v559
    %v672 = vunpack.c.l.b16 %v560
    %v673 = vunpack.c.h.b16 %v560
    %v674 = vunpack.c.l.b16 %v561
    %v675 = vunpack.c.h.b16 %v561
    %v676 = vpack.c.b16 %v616, %v612
    %v677 = vpack.c.b16 %v617, %v613
    %v678 = vpack.c.b16 %v618, %v614
    %v679 = vpack.c.b16 %v619, %v615
    %v680 = vpack.c.b16 %v624, %v620
    %v681 = vpack.c.b16 %v625, %v621
    %v682 = vpack.c.b16 %v626, %v622
    %v683 = vpack.c.b16 %v627, %v623
    %v684 = vpack.c.b16 %v632, %v628
    %v685 = vpack.c.b16 %v633, %v629
    %v686 = vpack.c.b16 %v634, %v630
    %v687 = vpack.c.b16 %v635, %v631
    %v688 = vpack.c.b16 %v640, %v636
    %v689 = vpack.c.b16 %v641, %v637
    %v690 = vpack.c.b16 %v642, %v638
    %v691 = vpack.c.b16 %v643, %v639
    %v692 = vpack.c.b16 %v648, %v644
    %v693 = vpack.c.b16 %v649, %v645
    %v694 = vpack.c.b16 %v650, %v646
    %v695 = vpack.c.b16 %v651, %v647
    %v696 = vpack.c.b16 %v656, %v652
    %v697 = vpack.c.b16 %v657, %v653
    %v698 = vpack.c.b16 %v658, %v654
    %v699 = vpack.c.b16 %v659, %v655
    %v700 = vpack.c.b16 %v664, %v660
    %v701 = vpack.c.b16 %v665, %v661
    %v702 = vpack.c.b16 %v666, %v662
    %v703 = vpack.c.b16 %v667, %v663
    %v704 = vpack.c.b16 %v672, %v668
    %v705 = vpack.c.b16 %v673, %v669
    %v706 = vpack.c.b16 %v674, %v670
    %v707 = vpack.c.b16 %v675, %v671
    %740 = vmatprep.subr.bf16.mxu0 %v677
    %741 = vmatpush1.bf16.msra.mxu0 %v676
    %742 = vmatprep.subr.bf16.mxu0 %v681
    %743 = vmatpush1.bf16.msra.mxu0 %v680
    %744 = vmatprep.subr.bf16.mxu0 %v685
    %745 = vmatpush1.bf16.msra.mxu0 %v684
    %746 = vmatprep.subr.bf16.mxu0 %v689
    %747 = vmatpush1.bf16.msra.mxu0 %v688
    %748 = vmatprep.subr.bf16.mxu0 %v693
    %749 = vmatpush1.bf16.msra.mxu0 %v692
    %750 = vmatprep.subr.bf16.mxu0 %v697
    %751 = vmatpush1.bf16.msra.mxu0 %v696
    %752 = vmatprep.subr.bf16.mxu0 %v701
    %753 = vmatpush1.bf16.msra.mxu0 %v700
    %754 = vmatprep.subr.bf16.mxu0 %v705
    %755 = vmatpush1.bf16.msra.mxu0 %v704
    %756 = vmatprep.subr.bf16.mxu0 0
    %757 = vmatpush1.bf16.msra.mxu0 0
    %758 = vmatprep.subr.bf16.mxu0 0
    %759 = vmatpush1.bf16.msra.mxu0 0
    %760 = vmatprep.subr.bf16.mxu0 0
    %761 = vmatpush1.bf16.msra.mxu0 0
    %762 = vmatprep.subr.bf16.mxu0 0
    %763 = vmatpush1.bf16.msra.mxu0 0
    %764 = vmatprep.subr.bf16.mxu0 0
    %765 = vmatpush1.bf16.msra.mxu0 0
    %766 = vmatprep.subr.bf16.mxu0 0
    %767 = vmatpush1.bf16.msra.mxu0 0
    %768 = vmatprep.subr.bf16.mxu0 0
    %769 = vmatpush1.bf16.msra.mxu0 0
    %770 = vmatprep.subr.bf16.mxu0 0
    %771 = vmatpush1.bf16.msra.mxu0 0
    %772 = vmatprep.mubr.bf16.mxu0 0
    %773 = vmatmul.mubr.bf16.gmra.mrb[0].mxu0 %v526
    %v774 = vpop.f32.mrb[0].mxu0
    %v775 = vadd.f32 %v568, %v774
    %v776 = vpop.f32.mrb[0].mxu0
    %v777 = vpop.f32.mrb[0].mxu0
    %v778 = vadd.f32 %v568, %v777
    %v779 = vpop.f32.mrb[0].mxu0
    %780 = vmatprep.mubr.bf16.mxu0 0
    %781 = vmatmul.mubr.bf16.gmra.mrb[0].mxu0 %v527
    %v782 = vpop.f32.mrb[0].mxu0
    %v783 = vadd.f32 %v568, %v782
    %v784 = vpop.f32.mrb[0].mxu0
    %v785 = vpop.f32.mrb[0].mxu0
    %v786 = vadd.f32 %v568, %v785
    %v787 = vpop.f32.mrb[0].mxu0
    %788 = vmatprep.mubr.bf16.mxu0 0
    %789 = vmatmul.mubr.bf16.gmra.mrb[0].mxu0 %v528
    %v790 = vpop.f32.mrb[0].mxu0
    %v791 = vadd.f32 %v568, %v790
    %v792 = vpop.f32.mrb[0].mxu0
    %v793 = vpop.f32.mrb[0].mxu0
    %v794 = vadd.f32 %v568, %v793
    %v795 = vpop.f32.mrb[0].mxu0
    %796 = vmatprep.mubr.bf16.mxu0 0
    %797 = vmatmul.mubr.bf16.gmra.mrb[0].mxu0 %v529
    %v798 = vpop.f32.mrb[0].mxu0
    %v799 = vadd.f32 %v568, %v798
    %v800 = vpop.f32.mrb[0].mxu0
    %v801 = vpop.f32.mrb[0].mxu0
    %v802 = vadd.f32 %v568, %v801
    %v803 = vpop.f32.mrb[0].mxu0
    %804 = vdwg.mxu0
    %805 = vmatprep.subr.bf16.mxu0 %v679
    %806 = vmatpush1.bf16.msra.mxu0 %v678
    %807 = vmatprep.subr.bf16.mxu0 %v683
    %808 = vmatpush1.bf16.msra.mxu0 %v682
    %809 = vmatprep.subr.bf16.mxu0 %v687
    %810 = vmatpush1.bf16.msra.mxu0 %v686
    %811 = vmatprep.subr.bf16.mxu0 %v691
    %812 = vmatpush1.bf16.msra.mxu0 %v690
    %813 = vmatprep.subr.bf16.mxu0 %v695
    %814 = vmatpush1.bf16.msra.mxu0 %v694
    %815 = vmatprep.subr.bf16.mxu0 %v699
    %816 = vmatpush1.bf16.msra.mxu0 %v698
    %817 = vmatprep.subr.bf16.mxu0 %v703
    %818 = vmatpush1.bf16.msra.mxu0 %v702
    %819 = vmatprep.subr.bf16.mxu0 %v707
    %820 = vmatpush1.bf16.msra.mxu0 %v706
    %821 = vmatprep.subr.bf16.mxu0 0
    %822 = vmatpush1.bf16.msra.mxu0 0
    %823 = vmatprep.subr.bf16.mxu0 0
    %824 = vmatpush1.bf16.msra.mxu0 0
    %825 = vmatprep.subr.bf16.mxu0 0
    %826 = vmatpush1.bf16.msra.mxu0 0
    %827 = vmatprep.subr.bf16.mxu0 0
    %828 = vmatpush1.bf16.msra.mxu0 0
    %829 = vmatprep.subr.bf16.mxu0 0
    %830 = vmatpush1.bf16.msra.mxu0 0
    %831 = vmatprep.subr.bf16.mxu0 0
    %832 = vmatpush1.bf16.msra.mxu0 0
    %833 = vmatprep.subr.bf16.mxu0 0
    %834 = vmatpush1.bf16.msra.mxu0 0
    %835 = vmatprep.subr.bf16.mxu0 0
    %836 = vmatpush1.bf16.msra.mxu0 0
    %837 = vmatprep.mubr.bf16.mxu0 0
    %838 = vmatmul.mubr.bf16.gmra.mrb[0].mxu0 %v526
    %v839 = vpop.f32.mrb[0].mxu0
    %v840 = vadd.f32 %v572, %v839
    %v841 = vpop.f32.mrb[0].mxu0
    %v842 = vadd.f32 %v576, %v841
    %v843 = vpop.f32.mrb[0].mxu0
    %v844 = vadd.f32 %v572, %v843
    %v845 = vpop.f32.mrb[0].mxu0
    %v846 = vadd.f32 %v576, %v845
    %847 = vmatprep.mubr.bf16.mxu0 0
    %848 = vmatmul.mubr.bf16.gmra.mrb[0].mxu0 %v527
    %v849 = vpop.f32.mrb[0].mxu0
    %v850 = vadd.f32 %v572, %v849
    %v851 = vpop.f32.mrb[0].mxu0
    %v852 = vadd.f32 %v576, %v851
    %v853 = vpop.f32.mrb[0].mxu0
    %v854 = vadd.f32 %v572, %v853
    %v855 = vpop.f32.mrb[0].mxu0
    %v856 = vadd.f32 %v576, %v855
    %857 = vmatprep.mubr.bf16.mxu0 0
    %858 = vmatmul.mubr.bf16.gmra.mrb[0].mxu0 %v528
    %v859 = vpop.f32.mrb[0].mxu0
    %v860 = vadd.f32 %v572, %v859
    %v861 = vpop.f32.mrb[0].mxu0
    %v862 = vadd.f32 %v576, %v861
    %v863 = vpop.f32.mrb[0].mxu0
    %v864 = vadd.f32 %v572, %v863
    %v865 = vpop.f32.mrb[0].mxu0
    %v866 = vadd.f32 %v576, %v865
    %867 = vmatprep.mubr.bf16.mxu0 0
    %868 = vmatmul.mubr.bf16.gmra.mrb[0].mxu0 %v529
    %v869 = vpop.f32.mrb[0].mxu0
    %v870 = vadd.f32 %v572, %v869
    %v871 = vpop.f32.mrb[0].mxu0
    %v872 = vadd.f32 %v576, %v871
    %v873 = vpop.f32.mrb[0].mxu0
    %v874 = vadd.f32 %v572, %v873
    %v875 = vpop.f32.mrb[0].mxu0
    %v876 = vadd.f32 %v576, %v875
    %877 = vdwg.mxu0
    %v878 = vmul.f32 %v775, 0.5
    %v879 = vmul.f32 %v778, 0.5
    %v880 = vmul.f32 %v783, 0.5
    %v881 = vmul.f32 %v786, 0.5
    %v882 = vmul.f32 %v791, 0.5
    %v883 = vmul.f32 %v794, 0.5
    %v884 = vmul.f32 %v799, 0.5
    %v885 = vmul.f32 %v802, 0.5
    %v886 = vtanh.pop %v878
    %v887 = vtanh.pop %v879
    %v888 = vtanh.pop %v880
    %v889 = vtanh.pop %v881
    %v890 = vtanh.pop %v882
    %v891 = vtanh.pop %v883
    %v892 = vtanh.pop %v884
    %v893 = vtanh.pop %v885
    %v894 = vmul.f32 %v886, 0.5
    %v895 = vmul.f32 %v887, 0.5
    %v896 = vmul.f32 %v888, 0.5
    %v897 = vmul.f32 %v889, 0.5
    %v898 = vmul.f32 %v890, 0.5
    %v899 = vmul.f32 %v891, 0.5
    %v900 = vmul.f32 %v892, 0.5
    %v901 = vmul.f32 %v893, 0.5
    %v902 = vadd.f32 %v894, 0.5
    %v903 = vadd.f32 %v895, 0.5
    %v904 = vadd.f32 %v896, 0.5
    %v905 = vadd.f32 %v897, 0.5
    %v906 = vadd.f32 %v898, 0.5
    %v907 = vadd.f32 %v899, 0.5
    %v908 = vadd.f32 %v900, 0.5
    %v909 = vadd.f32 %v901, 0.5
    %v910 = vtanh.pop %v840
    %v911 = vtanh.pop %v844
    %v912 = vtanh.pop %v850
    %v913 = vtanh.pop %v854
    %v914 = vtanh.pop %v860
    %v915 = vtanh.pop %v864
    %v916 = vtanh.pop %v870
    %v917 = vtanh.pop %v874
    %v918 = vmul.f32 %v842, 0.5
    %v919 = vmul.f32 %v846, 0.5
    %v920 = vmul.f32 %v852, 0.5
    %v921 = vmul.f32 %v856, 0.5
    %v922 = vmul.f32 %v862, 0.5
    %v923 = vmul.f32 %v866, 0.5
    %v924 = vmul.f32 %v872, 0.5
    %v925 = vmul.f32 %v876, 0.5
    %v926 = vtanh.pop %v918
    %v927 = vtanh.pop %v919
    %v928 = vtanh.pop %v920
    %v929 = vtanh.pop %v921
    %v930 = vtanh.pop %v922
    %v931 = vtanh.pop %v923
    %v932 = vtanh.pop %v924
    %v933 = vtanh.pop %v925
    %v934 = vmul.f32 %v926, 0.5
    %v935 = vmul.f32 %v927, 0.5
    %v936 = vmul.f32 %v928, 0.5
    %v937 = vmul.f32 %v929, 0.5
    %v938 = vmul.f32 %v930, 0.5
    %v939 = vmul.f32 %v931, 0.5
    %v940 = vmul.f32 %v932, 0.5
    %v941 = vmul.f32 %v933, 0.5
    %v942 = vadd.f32 %v934, 0.5
    %v943 = vadd.f32 %v935, 0.5
    %v944 = vadd.f32 %v936, 0.5
    %v945 = vadd.f32 %v937, 0.5
    %v946 = vadd.f32 %v938, 0.5
    %v947 = vadd.f32 %v939, 0.5
    %v948 = vadd.f32 %v940, 0.5
    %v949 = vadd.f32 %v941, 0.5
    %v950 = vmul.f32 %v902, %v910
    %v951 = vmul.f32 %v903, %v911
    %v952 = vmul.f32 %v904, %v912
    %v953 = vmul.f32 %v905, %v913
    %v954 = vmul.f32 %v906, %v914
    %v955 = vmul.f32 %v907, %v915
    %v956 = vmul.f32 %v908, %v916
    %v957 = vmul.f32 %v909, %v917
    %v958 = vtanh.pop %v950
    %v959 = vtanh.pop %v951
    %v960 = vtanh.pop %v952
    %v961 = vtanh.pop %v953
    %v962 = vtanh.pop %v954
    %v963 = vtanh.pop %v955
    %v964 = vtanh.pop %v956
    %v965 = vtanh.pop %v957
    %v966 = vmul.f32 %v942, %v958
    %v967 = vmul.f32 %v943, %v959
    %v968 = vmul.f32 %v944, %v960
    %v969 = vmul.f32 %v945, %v961
    %v970 = vmul.f32 %v946, %v962
    %v971 = vmul.f32 %v947, %v963
    %v972 = vmul.f32 %v948, %v964
    %v973 = vmul.f32 %v949, %v965
    %v974 = vpack.c.bf16 %v967, %v966
    %v975 = vpack.c.bf16 %v969, %v968
    %v976 = vpack.c.bf16 %v971, %v970
    %v977 = vpack.c.bf16 %v973, %v972
    %v978 = vld [vmem:[#allocation6] sm:$0xf]
    %v979 = vld [vmem:[#allocation6 + $0x4] sm:$0xf]
    %v980 = vld [vmem:[#allocation6 + $0x8] sm:$0xf]
    %v981 = vld [vmem:[#allocation6 + $0xc] sm:$0xf]
    %v982 = vld [vmem:[#allocation6 + $0x10] sm:$0xf]
    %v983 = vld [vmem:[#allocation6 + $0x14] sm:$0xf]
    %v984 = vld [vmem:[#allocation6 + $0x18] sm:$0xf]
    %v985 = vld [vmem:[#allocation6 + $0x1c] sm:$0xf]
    %v986 = vld [vmem:[#allocation6 + $0x20] sm:$0xf]
    %v987 = vld [vmem:[#allocation6 + $0x24] sm:$0xf]
    %v988 = vld [vmem:[#allocation6 + $0x28] sm:$0xf]
    %v989 = vld [vmem:[#allocation6 + $0x2c] sm:$0xf]
    %v990 = vld [vmem:[#allocation6 + $0x30] sm:$0xf]
    %v991 = vld [vmem:[#allocation6 + $0x34] sm:$0xf]
    %v992 = vld [vmem:[#allocation6 + $0x38] sm:$0xf]
    %v993 = vld [vmem:[#allocation6 + $0x3c] sm:$0xf]
    %v994 = vld [vmem:[#allocation7 + $0x2] ss:$0 sm:$0xff]
    %v1011 = vunpack.c.l.b16 %v978
    %v1012 = vunpack.c.l.b16 %v979
    %v1013 = vunpack.c.l.b16 %v980
    %v1014 = vunpack.c.l.b16 %v981
    %v1015 = vunpack.c.l.b16 %v982
    %v1016 = vunpack.c.l.b16 %v983
    %v1017 = vunpack.c.l.b16 %v984
    %v1018 = vunpack.c.l.b16 %v985
    %v1019 = vunpack.c.l.b16 %v986
    %v1020 = vunpack.c.l.b16 %v987
    %v1021 = vunpack.c.l.b16 %v988
    %v1022 = vunpack.c.l.b16 %v989
    %v1023 = vunpack.c.l.b16 %v990
    %v1024 = vunpack.c.l.b16 %v991
    %v1025 = vunpack.c.l.b16 %v992
    %v1026 = vunpack.c.l.b16 %v993
    %v1027 = vpack.c.b16 %v1012, %v1011
    %v1028 = vpack.c.b16 %v1014, %v1013
    %v1029 = vpack.c.b16 %v1016, %v1015
    %v1030 = vpack.c.b16 %v1018, %v1017
    %v1031 = vpack.c.b16 %v1020, %v1019
    %v1032 = vpack.c.b16 %v1022, %v1021
    %v1033 = vpack.c.b16 %v1024, %v1023
    %v1034 = vpack.c.b16 %v1026, %v1025
    %1043 = vmatprep.subr.bf16.mxu0 0
    %1044 = vmatpush1.bf16.msra.mxu0 %v1027
    %1045 = vmatprep.subr.bf16.mxu0 0
    %1046 = vmatpush1.bf16.msra.mxu0 %v1028
    %1047 = vmatprep.subr.bf16.mxu0 0
    %1048 = vmatpush1.bf16.msra.mxu0 %v1029
    %1049 = vmatprep.subr.bf16.mxu0 0
    %1050 = vmatpush1.bf16.msra.mxu0 %v1030
    %1051 = vmatprep.subr.bf16.mxu0 0
    %1052 = vmatpush1.bf16.msra.mxu0 %v1031
    %1053 = vmatprep.subr.bf16.mxu0 0
    %1054 = vmatpush1.bf16.msra.mxu0 %v1032
    %1055 = vmatprep.subr.bf16.mxu0 0
    %1056 = vmatpush1.bf16.msra.mxu0 %v1033
    %1057 = vmatprep.subr.bf16.mxu0 0
    %1058 = vmatpush1.bf16.msra.mxu0 %v1034
    %1059 = vmatprep.subr.bf16.mxu0 0
    %1060 = vmatpush1.bf16.msra.mxu0 0
    %1061 = vmatprep.subr.bf16.mxu0 0
    %1062 = vmatpush1.bf16.msra.mxu0 0
    %1063 = vmatprep.subr.bf16.mxu0 0
    %1064 = vmatpush1.bf16.msra.mxu0 0
    %1065 = vmatprep.subr.bf16.mxu0 0
    %1066 = vmatpush1.bf16.msra.mxu0 0
    %1067 = vmatprep.subr.bf16.mxu0 0
    %1068 = vmatpush1.bf16.msra.mxu0 0
    %1069 = vmatprep.subr.bf16.mxu0 0
    %1070 = vmatpush1.bf16.msra.mxu0 0
    %1071 = vmatprep.subr.bf16.mxu0 0
    %1072 = vmatpush1.bf16.msra.mxu0 0
    %1073 = vmatprep.subr.bf16.mxu0 0
    %1074 = vmatpush1.bf16.msra.mxu0 0
    %1075 = vmatprep.mubr.bf16.mxu0 0
    %1076 = vmatmul.mubr.bf16.gmra.mrb[0].mxu0 %v974
    %v1077 = vpop.f32.mrb[0].mxu0
    %v1078 = vadd.f32 %v994, %v1077
    %v1079 = vpop.f32.mrb[0].mxu0
    %v1080 = vpop.f32.mrb[0].mxu0
    %v1081 = vadd.f32 %v994, %v1080
    %v1082 = vpop.f32.mrb[0].mxu0
    %1083 = vmatprep.mubr.bf16.mxu0 0
    %1084 = vmatmul.mubr.bf16.gmra.mrb[0].mxu0 %v975
    %v1085 = vpop.f32.mrb[0].mxu0
    %v1086 = vadd.f32 %v994, %v1085
    %v1087 = vpop.f32.mrb[0].mxu0
    %v1088 = vpop.f32.mrb[0].mxu0
    %v1089 = vadd.f32 %v994, %v1088
    %v1090 = vpop.f32.mrb[0].mxu0
    %1091 = vmatprep.mubr.bf16.mxu0 0
    %1092 = vmatmul.mubr.bf16.gmra.mrb[0].mxu0 %v976
    %v1093 = vpop.f32.mrb[0].mxu0
    %v1094 = vadd.f32 %v994, %v1093
    %v1095 = vpop.f32.mrb[0].mxu0
    %v1096 = vpop.f32.mrb[0].mxu0
    %v1097 = vadd.f32 %v994, %v1096
    %v1098 = vpop.f32.mrb[0].mxu0
    %1099 = vmatprep.mubr.bf16.mxu0 0
    %1100 = vmatmul.mubr.bf16.gmra.mrb[0].mxu0 %v977
    %v1101 = vpop.f32.mrb[0].mxu0
    %v1102 = vadd.f32 %v994, %v1101
    %v1103 = vpop.f32.mrb[0].mxu0
    %v1104 = vpop.f32.mrb[0].mxu0
    %v1105 = vadd.f32 %v994, %v1104
    %v1106 = vpop.f32.mrb[0].mxu0
    %1107 = vdwg.mxu0
    %1108 = vst [vmem:[%s4] sm:$0xff] %v1078
    %1109 = vst [vmem:[%s4 + $0x8] sm:$0xff] %v1081
    %1110 = vst [vmem:[%s4 + $0x10] sm:$0xff] %v1086
    %1111 = vst [vmem:[%s4 + $0x18] sm:$0xff] %v1089
    %1112 = vst [vmem:[%s4 + $0x20] sm:$0xff] %v1094
    %1113 = vst [vmem:[%s4 + $0x28] sm:$0xff] %v1097
    %1114 = vst [vmem:[%s4 + $0x30] sm:$0xff] %v1102
    %1115 = vst [vmem:[%s4 + $0x38] sm:$0xff] %v1105
    %v1116 = vld [vmem:[#allocation2] sm:$0xff]
    %v1117 = vld [vmem:[#allocation2 + $0x8] sm:$0xff]
    %v1118 = vld [vmem:[#allocation2 + $0x10] sm:$0xff]
    %v1119 = vld [vmem:[#allocation2 + $0x18] sm:$0xff]
    %v1120 = vld [vmem:[#allocation2 + $0x20] sm:$0xff]
    %v1121 = vld [vmem:[#allocation2 + $0x28] sm:$0xff]
    %v1122 = vld [vmem:[#allocation2 + $0x30] sm:$0xff]
    %v1123 = vld [vmem:[#allocation2 + $0x38] sm:$0xff]
    %v1124 = vpack.c.bf16 %v1117, %v1116
    %v1125 = vpack.c.bf16 %v1119, %v1118
    %v1126 = vpack.c.bf16 %v1121, %v1120
    %v1127 = vpack.c.bf16 %v1123, %v1122
    %v1128 = vld [vmem:[#allocation4] sm:$0xff]
    %v1129 = vld [vmem:[#allocation4 + $0x8] sm:$0xff]
    %v1130 = vld [vmem:[#allocation4 + $0x10] sm:$0xff]
    %v1131 = vld [vmem:[#allocation4 + $0x18] sm:$0xff]
    %v1132 = vld [vmem:[#allocation4 + $0x20] sm:$0xff]
    %v1133 = vld [vmem:[#allocation4 + $0x28] sm:$0xff]
    %v1134 = vld [vmem:[#allocation4 + $0x30] sm:$0xff]
    %v1135 = vld [vmem:[#allocation4 + $0x38] sm:$0xff]
    %v1136 = vld [vmem:[#allocation4 + $0x40] sm:$0xff]
    %v1137 = vld [vmem:[#allocation4 + $0x48] sm:$0xff]
    %v1138 = vld [vmem:[#allocation4 + $0x50] sm:$0xff]
    %v1139 = vld [vmem:[#allocation4 + $0x58] sm:$0xff]
    %v1140 = vld [vmem:[#allocation4 + $0x60] sm:$0xff]
    %v1141 = vld [vmem:[#allocation4 + $0x68] sm:$0xff]
    %v1142 = vld [vmem:[#allocation4 + $0x70] sm:$0xff]
    %v1143 = vld [vmem:[#allocation4 + $0x78] sm:$0xff]
    %v1144 = vld [vmem:[#allocation4 + $0x80] sm:$0xff]
    %v1145 = vld [vmem:[#allocation4 + $0x88] sm:$0xff]
    %v1146 = vld [vmem:[#allocation4 + $0x90] sm:$0xff]
    %v1147 = vld [vmem:[#allocation4 + $0x98] sm:$0xff]
    %v1148 = vld [vmem:[#allocation4 + $0xa0] sm:$0xff]
    %v1149 = vld [vmem:[#allocation4 + $0xa8] sm:$0xff]
    %v1150 = vld [vmem:[#allocation4 + $0xb0] sm:$0xff]
    %v1151 = vld [vmem:[#allocation4 + $0xb8] sm:$0xff]
    %v1152 = vld [vmem:[#allocation4 + $0xc0] sm:$0xff]
    %v1153 = vld [vmem:[#allocation4 + $0xc8] sm:$0xff]
    %v1154 = vld [vmem:[#allocation4 + $0xd0] sm:$0xff]
    %v1155 = vld [vmem:[#allocation4 + $0xd8] sm:$0xff]
    %v1156 = vld [vmem:[#allocation4 + $0xe0] sm:$0xff]
    %v1157 = vld [vmem:[#allocation4 + $0xe8] sm:$0xff]
    %v1158 = vld [vmem:[#allocation4 + $0xf0] sm:$0xff]
    %v1159 = vld [vmem:[#allocation4 + $0xf8] sm:$0xff]
    %v1160 = vld [vmem:[#allocation4 + $0x100] sm:$0xff]
    %v1161 = vld [vmem:[#allocation4 + $0x108] sm:$0xff]
    %v1162 = vld [vmem:[#allocation4 + $0x110] sm:$0xff]
    %v1163 = vld [vmem:[#allocation4 + $0x118] sm:$0xff]
    %v1164 = vld [vmem:[#allocation4 + $0x120] sm:$0xff]
    %v1165 = vld [vmem:[#allocation4 + $0x128] sm:$0xff]
    %v1166 = vld [vmem:[#allocation4 + $0x130] sm:$0xff]
    %v1167 = vld [vmem:[#allocation4 + $0x138] sm:$0xff]
    %v1168 = vld [vmem:[#allocation4 + $0x140] sm:$0xff]
    %v1169 = vld [vmem:[#allocation4 + $0x148] sm:$0xff]
    %v1170 = vld [vmem:[#allocation4 + $0x150] sm:$0xff]
    %v1171 = vld [vmem:[#allocation4 + $0x158] sm:$0xff]
    %v1172 = vld [vmem:[#allocation4 + $0x160] sm:$0xff]
    %v1173 = vld [vmem:[#allocation4 + $0x168] sm:$0xff]
    %v1174 = vld [vmem:[#allocation4 + $0x170] sm:$0xff]
    %v1175 = vld [vmem:[#allocation4 + $0x178] sm:$0xff]
    %v1176 = vld [vmem:[#allocation4 + $0x180] sm:$0xff]
    %v1177 = vld [vmem:[#allocation4 + $0x188] sm:$0xff]
    %v1178 = vld [vmem:[#allocation4 + $0x190] sm:$0xff]
    %v1179 = vld [vmem:[#allocation4 + $0x198] sm:$0xff]
    %v1180 = vld [vmem:[#allocation4 + $0x1a0] sm:$0xff]
    %v1181 = vld [vmem:[#allocation4 + $0x1a8] sm:$0xff]
    %v1182 = vld [vmem:[#allocation4 + $0x1b0] sm:$0xff]
    %v1183 = vld [vmem:[#allocation4 + $0x1b8] sm:$0xff]
    %v1184 = vld [vmem:[#allocation4 + $0x1c0] sm:$0xff]
    %v1185 = vld [vmem:[#allocation4 + $0x1c8] sm:$0xff]
    %v1186 = vld [vmem:[#allocation4 + $0x1d0] sm:$0xff]
    %v1187 = vld [vmem:[#allocation4 + $0x1d8] sm:$0xff]
    %v1188 = vld [vmem:[#allocation4 + $0x1e0] sm:$0xff]
    %v1189 = vld [vmem:[#allocation4 + $0x1e8] sm:$0xff]
    %v1190 = vld [vmem:[#allocation4 + $0x1f0] sm:$0xff]
    %v1191 = vld [vmem:[#allocation4 + $0x1f8] sm:$0xff]
    %v1192 = vld [vmem:[#allocation7] ss:$8 sm:$0xf]
    %v1194 = vlaneseq
    %v1195 = vshrl.u32 %v1194, 7
    %v1196 = vsub.s32 0, %v1195
    %v1197 = vrot.slane %v1192, %v1196
    %v1198 = vlaneseq
    %v1199 = vshrl.u32 %v1198, 7
    %v1200 = vsub.s32 1, %v1199
    %v1201 = vrot.slane %v1192, %v1200
    %v1202 = vlaneseq
    %v1203 = vshrl.u32 %v1202, 7
    %v1204 = vsub.s32 2, %v1203
    %v1205 = vrot.slane %v1192, %v1204
    %v1206 = vlaneseq
    %v1207 = vshrl.u32 %v1206, 7
    %v1208 = vsub.s32 3, %v1207
    %v1209 = vrot.slane %v1192, %v1208
    %v1278 = vunpack.c.l.b16 %v1128
    %v1279 = vunpack.c.h.b16 %v1128
    %v1280 = vunpack.c.l.b16 %v1129
    %v1281 = vunpack.c.h.b16 %v1129
    %v1282 = vunpack.c.l.b16 %v1130
    %v1283 = vunpack.c.h.b16 %v1130
    %v1284 = vunpack.c.l.b16 %v1131
    %v1285 = vunpack.c.h.b16 %v1131
    %v1286 = vunpack.c.l.b16 %v1132
    %v1287 = vunpack.c.h.b16 %v1132
    %v1288 = vunpack.c.l.b16 %v1133
    %v1289 = vunpack.c.h.b16 %v1133
    %v1290 = vunpack.c.l.b16 %v1134
    %v1291 = vunpack.c.h.b16 %v1134
    %v1292 = vunpack.c.l.b16 %v1135
    %v1293 = vunpack.c.h.b16 %v1135
    %v1294 = vunpack.c.l.b16 %v1136
    %v1295 = vunpack.c.h.b16 %v1136
    %v1296 = vunpack.c.l.b16 %v1137
    %v1297 = vunpack.c.h.b16 %v1137
    %v1298 = vunpack.c.l.b16 %v1138
    %v1299 = vunpack.c.h.b16 %v1138
    %v1300 = vunpack.c.l.b16 %v1139
    %v1301 = vunpack.c.h.b16 %v1139
    %v1302 = vunpack.c.l.b16 %v1140
    %v1303 = vunpack.c.h.b16 %v1140
    %v1304 = vunpack.c.l.b16 %v1141
    %v1305 = vunpack.c.h.b16 %v1141
    %v1306 = vunpack.c.l.b16 %v1142
    %v1307 = vunpack.c.h.b16 %v1142
    %v1308 = vunpack.c.l.b16 %v1143
    %v1309 = vunpack.c.h.b16 %v1143
    %v1310 = vunpack.c.l.b16 %v1144
    %v1311 = vunpack.c.h.b16 %v1144
    %v1312 = vunpack.c.l.b16 %v1145
    %v1313 = vunpack.c.h.b16 %v1145
    %v1314 = vunpack.c.l.b16 %v1146
    %v1315 = vunpack.c.h.b16 %v1146
    %v1316 = vunpack.c.l.b16 %v1147
    %v1317 = vunpack.c.h.b16 %v1147
    %v1318 = vunpack.c.l.b16 %v1148
    %v1319 = vunpack.c.h.b16 %v1148
    %v1320 = vunpack.c.l.b16 %v1149
    %v1321 = vunpack.c.h.b16 %v1149
    %v1322 = vunpack.c.l.b16 %v1150
    %v1323 = vunpack.c.h.b16 %v1150
    %v1324 = vunpack.c.l.b16 %v1151
    %v1325 = vunpack.c.h.b16 %v1151
    %v1326 = vunpack.c.l.b16 %v1152
    %v1327 = vunpack.c.h.b16 %v1152
    %v1328 = vunpack.c.l.b16 %v1153
    %v1329 = vunpack.c.h.b16 %v1153
    %v1330 = vunpack.c.l.b16 %v1154
    %v1331 = vunpack.c.h.b16 %v1154
    %v1332 = vunpack.c.l.b16 %v1155
    %v1333 = vunpack.c.h.b16 %v1155
    %v1334 = vunpack.c.l.b16 %v1156
    %v1335 = vunpack.c.h.b16 %v1156
    %v1336 = vunpack.c.l.b16 %v1157
    %v1337 = vunpack.c.h.b16 %v1157
    %v1338 = vunpack.c.l.b16 %v1158
    %v1339 = vunpack.c.h.b16 %v1158
    %v1340 = vunpack.c.l.b16 %v1159
    %v1341 = vunpack.c.h.b16 %v1159
    %v1342 = vunpack.c.l.b16 %v1160
    %v1343 = vunpack.c.h.b16 %v1160
    %v1344 = vunpack.c.l.b16 %v1161
    %v1345 = vunpack.c.h.b16 %v1161
    %v1346 = vunpack.c.l.b16 %v1162
    %v1347 = vunpack.c.h.b16 %v1162
    %v1348 = vunpack.c.l.b16 %v1163
    %v1349 = vunpack.c.h.b16 %v1163
    %v1350 = vunpack.c.l.b16 %v1164
    %v1351 = vunpack.c.h.b16 %v1164
    %v1352 = vunpack.c.l.b16 %v1165
    %v1353 = vunpack.c.h.b16 %v1165
    %v1354 = vunpack.c.l.b16 %v1166
    %v1355 = vunpack.c.h.b16 %v1166
    %v1356 = vunpack.c.l.b16 %v1167
    %v1357 = vunpack.c.h.b16 %v1167
    %v1358 = vunpack.c.l.b16 %v1168
    %v1359 = vunpack.c.h.b16 %v1168
    %v1360 = vunpack.c.l.b16 %v1169
    %v1361 = vunpack.c.h.b16 %v1169
    %v1362 = vunpack.c.l.b16 %v1170
    %v1363 = vunpack.c.h.b16 %v1170
    %v1364 = vunpack.c.l.b16 %v1171
    %v1365 = vunpack.c.h.b16 %v1171
    %v1366 = vunpack.c.l.b16 %v1172
    %v1367 = vunpack.c.h.b16 %v1172
    %v1368 = vunpack.c.l.b16 %v1173
    %v1369 = vunpack.c.h.b16 %v1173
    %v1370 = vunpack.c.l.b16 %v1174
    %v1371 = vunpack.c.h.b16 %v1174
    %v1372 = vunpack.c.l.b16 %v1175
    %v1373 = vunpack.c.h.b16 %v1175
    %v1374 = vunpack.c.l.b16 %v1176
    %v1375 = vunpack.c.h.b16 %v1176
    %v1376 = vunpack.c.l.b16 %v1177
    %v1377 = vunpack.c.h.b16 %v1177
    %v1378 = vunpack.c.l.b16 %v1178
    %v1379 = vunpack.c.h.b16 %v1178
    %v1380 = vunpack.c.l.b16 %v1179
    %v1381 = vunpack.c.h.b16 %v1179
    %v1382 = vunpack.c.l.b16 %v1180
    %v1383 = vunpack.c.h.b16 %v1180
    %v1384 = vunpack.c.l.b16 %v1181
    %v1385 = vunpack.c.h.b16 %v1181
    %v1386 = vunpack.c.l.b16 %v1182
    %v1387 = vunpack.c.h.b16 %v1182
    %v1388 = vunpack.c.l.b16 %v1183
    %v1389 = vunpack.c.h.b16 %v1183
    %v1390 = vunpack.c.l.b16 %v1184
    %v1391 = vunpack.c.h.b16 %v1184
    %v1392 = vunpack.c.l.b16 %v1185
    %v1393 = vunpack.c.h.b16 %v1185
    %v1394 = vunpack.c.l.b16 %v1186
    %v1395 = vunpack.c.h.b16 %v1186
    %v1396 = vunpack.c.l.b16 %v1187
    %v1397 = vunpack.c.h.b16 %v1187
    %v1398 = vunpack.c.l.b16 %v1188
    %v1399 = vunpack.c.h.b16 %v1188
    %v1400 = vunpack.c.l.b16 %v1189
    %v1401 = vunpack.c.h.b16 %v1189
    %v1402 = vunpack.c.l.b16 %v1190
    %v1403 = vunpack.c.h.b16 %v1190
    %v1404 = vunpack.c.l.b16 %v1191
    %v1405 = vunpack.c.h.b16 %v1191
    %v1406 = vpack.c.b16 %v1282, %v1278
    %v1407 = vpack.c.b16 %v1283, %v1279
    %v1408 = vpack.c.b16 %v1284, %v1280
    %v1409 = vpack.c.b16 %v1285, %v1281
    %v1410 = vpack.c.b16 %v1290, %v1286
    %v1411 = vpack.c.b16 %v1291, %v1287
    %v1412 = vpack.c.b16 %v1292, %v1288
    %v1413 = vpack.c.b16 %v1293, %v1289
    %v1414 = vpack.c.b16 %v1298, %v1294
    %v1415 = vpack.c.b16 %v1299, %v1295
    %v1416 = vpack.c.b16 %v1300, %v1296
    %v1417 = vpack.c.b16 %v1301, %v1297
    %v1418 = vpack.c.b16 %v1306, %v1302
    %v1419 = vpack.c.b16 %v1307, %v1303
    %v1420 = vpack.c.b16 %v1308, %v1304
    %v1421 = vpack.c.b16 %v1309, %v1305
    %v1422 = vpack.c.b16 %v1314, %v1310
    %v1423 = vpack.c.b16 %v1315, %v1311
    %v1424 = vpack.c.b16 %v1316, %v1312
    %v1425 = vpack.c.b16 %v1317, %v1313
    %v1426 = vpack.c.b16 %v1322, %v1318
    %v1427 = vpack.c.b16 %v1323, %v1319
    %v1428 = vpack.c.b16 %v1324, %v1320
    %v1429 = vpack.c.b16 %v1325, %v1321
    %v1430 = vpack.c.b16 %v1330, %v1326
    %v1431 = vpack.c.b16 %v1331, %v1327
    %v1432 = vpack.c.b16 %v1332, %v1328
    %v1433 = vpack.c.b16 %v1333, %v1329
    %v1434 = vpack.c.b16 %v1338, %v1334
    %v1435 = vpack.c.b16 %v1339, %v1335
    %v1436 = vpack.c.b16 %v1340, %v1336
    %v1437 = vpack.c.b16 %v1341, %v1337
    %v1438 = vpack.c.b16 %v1346, %v1342
    %v1439 = vpack.c.b16 %v1347, %v1343
    %v1440 = vpack.c.b16 %v1348, %v1344
    %v1441 = vpack.c.b16 %v1349, %v1345
    %v1442 = vpack.c.b16 %v1354, %v1350
    %v1443 = vpack.c.b16 %v1355, %v1351
    %v1444 = vpack.c.b16 %v1356, %v1352
    %v1445 = vpack.c.b16 %v1357, %v1353
    %v1446 = vpack.c.b16 %v1362, %v1358
    %v1447 = vpack.c.b16 %v1363, %v1359
    %v1448 = vpack.c.b16 %v1364, %v1360
    %v1449 = vpack.c.b16 %v1365, %v1361
    %v1450 = vpack.c.b16 %v1370, %v1366
    %v1451 = vpack.c.b16 %v1371, %v1367
    %v1452 = vpack.c.b16 %v1372, %v1368
    %v1453 = vpack.c.b16 %v1373, %v1369
    %v1454 = vpack.c.b16 %v1378, %v1374
    %v1455 = vpack.c.b16 %v1379, %v1375
    %v1456 = vpack.c.b16 %v1380, %v1376
    %v1457 = vpack.c.b16 %v1381, %v1377
    %v1458 = vpack.c.b16 %v1386, %v1382
    %v1459 = vpack.c.b16 %v1387, %v1383
    %v1460 = vpack.c.b16 %v1388, %v1384
    %v1461 = vpack.c.b16 %v1389, %v1385
    %v1462 = vpack.c.b16 %v1394, %v1390
    %v1463 = vpack.c.b16 %v1395, %v1391
    %v1464 = vpack.c.b16 %v1396, %v1392
    %v1465 = vpack.c.b16 %v1397, %v1393
    %v1466 = vpack.c.b16 %v1402, %v1398
    %v1467 = vpack.c.b16 %v1403, %v1399
    %v1468 = vpack.c.b16 %v1404, %v1400
    %v1469 = vpack.c.b16 %v1405, %v1401
    %1534 = vmatprep.subr.bf16.mxu0 %v1407
    %1535 = vmatpush1.bf16.msra.mxu0 %v1406
    %1536 = vmatprep.subr.bf16.mxu0 %v1411
    %1537 = vmatpush1.bf16.msra.mxu0 %v1410
    %1538 = vmatprep.subr.bf16.mxu0 %v1415
    %1539 = vmatpush1.bf16.msra.mxu0 %v1414
    %1540 = vmatprep.subr.bf16.mxu0 %v1419
    %1541 = vmatpush1.bf16.msra.mxu0 %v1418
    %1542 = vmatprep.subr.bf16.mxu0 %v1423
    %1543 = vmatpush1.bf16.msra.mxu0 %v1422
    %1544 = vmatprep.subr.bf16.mxu0 %v1427
    %1545 = vmatpush1.bf16.msra.mxu0 %v1426
    %1546 = vmatprep.subr.bf16.mxu0 %v1431
    %1547 = vmatpush1.bf16.msra.mxu0 %v1430
    %1548 = vmatprep.subr.bf16.mxu0 %v1435
    %1549 = vmatpush1.bf16.msra.mxu0 %v1434
    %1550 = vmatprep.subr.bf16.mxu0 %v1439
    %1551 = vmatpush1.bf16.msra.mxu0 %v1438
    %1552 = vmatprep.subr.bf16.mxu0 %v1443
    %1553 = vmatpush1.bf16.msra.mxu0 %v1442
    %1554 = vmatprep.subr.bf16.mxu0 %v1447
    %1555 = vmatpush1.bf16.msra.mxu0 %v1446
    %1556 = vmatprep.subr.bf16.mxu0 %v1451
    %1557 = vmatpush1.bf16.msra.mxu0 %v1450
    %1558 = vmatprep.subr.bf16.mxu0 %v1455
    %1559 = vmatpush1.bf16.msra.mxu0 %v1454
    %1560 = vmatprep.subr.bf16.mxu0 %v1459
    %1561 = vmatpush1.bf16.msra.mxu0 %v1458
    %1562 = vmatprep.subr.bf16.mxu0 %v1463
    %1563 = vmatpush1.bf16.msra.mxu0 %v1462
    %1564 = vmatprep.subr.bf16.mxu0 %v1467
    %1565 = vmatpush1.bf16.msra.mxu0 %v1466
    %1566 = vmatprep.mubr.bf16.mxu0 %v526
    %1567 = vmatmul.mubr.bf16.gmra.mrb[0].mxu0 %v1124
    %v1568 = vpop.f32.mrb[0].mxu0
    %v1569 = vadd.f32 %v1197, %v1568
    %v1570 = vpop.f32.mrb[0].mxu0
    %v1571 = vadd.f32 %v1201, %v1570
    %v1572 = vpop.f32.mrb[0].mxu0
    %v1573 = vadd.f32 %v1197, %v1572
    %v1574 = vpop.f32.mrb[0].mxu0
    %v1575 = vadd.f32 %v1201, %v1574
    %1576 = vmatprep.mubr.bf16.mxu0 %v527
    %1577 = vmatmul.mubr.bf16.gmra.mrb[0].mxu0 %v1125
    %v1578 = vpop.f32.mrb[0].mxu0
    %v1579 = vadd.f32 %v1197, %v1578
    %v1580 = vpop.f32.mrb[0].mxu0
    %v1581 = vadd.f32 %v1201, %v1580
    %v1582 = vpop.f32.mrb[0].mxu0
    %v1583 = vadd.f32 %v1197, %v1582
    %v1584 = vpop.f32.mrb[0].mxu0
    %v1585 = vadd.f32 %v1201, %v1584
    %1586 = vmatprep.mubr.bf16.mxu0 %v528
    %1587 = vmatmul.mubr.bf16.gmra.mrb[0].mxu0 %v1126
    %v1588 = vpop.f32.mrb[0].mxu0
    %v1589 = vadd.f32 %v1197, %v1588
    %v1590 = vpop.f32.mrb[0].mxu0
    %v1591 = vadd.f32 %v1201, %v1590
    %v1592 = vpop.f32.mrb[0].mxu0
    %v1593 = vadd.f32 %v1197, %v1592
    %v1594 = vpop.f32.mrb[0].mxu0
    %v1595 = vadd.f32 %v1201, %v1594
    %1596 = vmatprep.mubr.bf16.mxu0 %v529
    %1597 = vmatmul.mubr.bf16.gmra.mrb[0].mxu0 %v1127
    %v1598 = vpop.f32.mrb[0].mxu0
    %v1599 = vadd.f32 %v1197, %v1598
    %v1600 = vpop.f32.mrb[0].mxu0
    %v1601 = vadd.f32 %v1201, %v1600
    %v1602 = vpop.f32.mrb[0].mxu0
    %v1603 = vadd.f32 %v1197, %v1602
    %v1604 = vpop.f32.mrb[0].mxu0
    %v1605 = vadd.f32 %v1201, %v1604
    %1606 = vdwg.mxu0
    %1607 = vmatprep.subr.bf16.mxu0 %v1409
    %1608 = vmatpush1.bf16.msra.mxu0 %v1408
    %1609 = vmatprep.subr.bf16.mxu0 %v1413
    %1610 = vmatpush1.bf16.msra.mxu0 %v1412
    %1611 = vmatprep.subr.bf16.mxu0 %v1417
    %1612 = vmatpush1.bf16.msra.mxu0 %v1416
    %1613 = vmatprep.subr.bf16.mxu0 %v1421
    %1614 = vmatpush1.bf16.msra.mxu0 %v1420
    %1615 = vmatprep.subr.bf16.mxu0 %v1425
    %1616 = vmatpush1.bf16.msra.mxu0 %v1424
    %1617 = vmatprep.subr.bf16.mxu0 %v1429
    %1618 = vmatpush1.bf16.msra.mxu0 %v1428
    %1619 = vmatprep.subr.bf16.mxu0 %v1433
    %1620 = vmatpush1.bf16.msra.mxu0 %v1432
    %1621 = vmatprep.subr.bf16.mxu0 %v1437
    %1622 = vmatpush1.bf16.msra.mxu0 %v1436
    %1623 = vmatprep.subr.bf16.mxu0 %v1441
    %1624 = vmatpush1.bf16.msra.mxu0 %v1440
    %1625 = vmatprep.subr.bf16.mxu0 %v1445
    %1626 = vmatpush1.bf16.msra.mxu0 %v1444
    %1627 = vmatprep.subr.bf16.mxu0 %v1449
    %1628 = vmatpush1.bf16.msra.mxu0 %v1448
    %1629 = vmatprep.subr.bf16.mxu0 %v1453
    %1630 = vmatpush1.bf16.msra.mxu0 %v1452
    %1631 = vmatprep.subr.bf16.mxu0 %v1457
    %1632 = vmatpush1.bf16.msra.mxu0 %v1456
    %1633 = vmatprep.subr.bf16.mxu0 %v1461
    %1634 = vmatpush1.bf16.msra.mxu0 %v1460
    %1635 = vmatprep.subr.bf16.mxu0 %v1465
    %1636 = vmatpush1.bf16.msra.mxu0 %v1464
    %1637 = vmatprep.subr.bf16.mxu0 %v1469
    %1638 = vmatpush1.bf16.msra.mxu0 %v1468
    %1639 = vmatprep.mubr.bf16.mxu0 %v526
    %1640 = vmatmul.mubr.bf16.gmra.mrb[0].mxu0 %v1124
    %v1641 = vpop.f32.mrb[0].mxu0
    %v1642 = vadd.f32 %v1205, %v1641
    %v1643 = vpop.f32.mrb[0].mxu0
    %v1644 = vadd.f32 %v1209, %v1643
    %v1645 = vpop.f32.mrb[0].mxu0
    %v1646 = vadd.f32 %v1205, %v1645
    %v1647 = vpop.f32.mrb[0].mxu0
    %v1648 = vadd.f32 %v1209, %v1647
    %1649 = vmatprep.mubr.bf16.mxu0 %v527
    %1650 = vmatmul.mubr.bf16.gmra.mrb[0].mxu0 %v1125
    %v1651 = vpop.f32.mrb[0].mxu0
    %v1652 = vadd.f32 %v1205, %v1651
    %v1653 = vpop.f32.mrb[0].mxu0
    %v1654 = vadd.f32 %v1209, %v1653
    %v1655 = vpop.f32.mrb[0].mxu0
    %v1656 = vadd.f32 %v1205, %v1655
    %v1657 = vpop.f32.mrb[0].mxu0
    %v1658 = vadd.f32 %v1209, %v1657
    %1659 = vmatprep.mubr.bf16.mxu0 %v528
    %1660 = vmatmul.mubr.bf16.gmra.mrb[0].mxu0 %v1126
    %v1661 = vpop.f32.mrb[0].mxu0
    %v1662 = vadd.f32 %v1205, %v1661
    %v1663 = vpop.f32.mrb[0].mxu0
    %v1664 = vadd.f32 %v1209, %v1663
    %v1665 = vpop.f32.mrb[0].mxu0
    %v1666 = vadd.f32 %v1205, %v1665
    %v1667 = vpop.f32.mrb[0].mxu0
    %v1668 = vadd.f32 %v1209, %v1667
    %1669 = vmatprep.mubr.bf16.mxu0 %v529
    %1670 = vmatmul.mubr.bf16.gmra.mrb[0].mxu0 %v1127
    %v1671 = vpop.f32.mrb[0].mxu0
    %v1672 = vadd.f32 %v1205, %v1671
    %v1673 = vpop.f32.mrb[0].mxu0
    %v1674 = vadd.f32 %v1209, %v1673
    %v1675 = vpop.f32.mrb[0].mxu0
    %v1676 = vadd.f32 %v1205, %v1675
    %v1677 = vpop.f32.mrb[0].mxu0
    %v1678 = vadd.f32 %v1209, %v1677
    %1679 = vdwg.mxu0
    %v1680 = vmul.f32 %v1569, 0.5
    %v1681 = vmul.f32 %v1573, 0.5
    %v1682 = vmul.f32 %v1579, 0.5
    %v1683 = vmul.f32 %v1583, 0.5
    %v1684 = vmul.f32 %v1589, 0.5
    %v1685 = vmul.f32 %v1593, 0.5
    %v1686 = vmul.f32 %v1599, 0.5
    %v1687 = vmul.f32 %v1603, 0.5
    %v1688 = vtanh.pop %v1680
    %v1689 = vtanh.pop %v1681
    %v1690 = vtanh.pop %v1682
    %v1691 = vtanh.pop %v1683
    %v1692 = vtanh.pop %v1684
    %v1693 = vtanh.pop %v1685
    %v1694 = vtanh.pop %v1686
    %v1695 = vtanh.pop %v1687
    %v1696 = vmul.f32 %v1688, 0.5
    %v1697 = vmul.f32 %v1689, 0.5
    %v1698 = vmul.f32 %v1690, 0.5
    %v1699 = vmul.f32 %v1691, 0.5
    %v1700 = vmul.f32 %v1692, 0.5
    %v1701 = vmul.f32 %v1693, 0.5
    %v1702 = vmul.f32 %v1694, 0.5
    %v1703 = vmul.f32 %v1695, 0.5
    %v1704 = vadd.f32 %v1696, 0.5
    %v1705 = vadd.f32 %v1697, 0.5
    %v1706 = vadd.f32 %v1698, 0.5
    %v1707 = vadd.f32 %v1699, 0.5
    %v1708 = vadd.f32 %v1700, 0.5
    %v1709 = vadd.f32 %v1701, 0.5
    %v1710 = vadd.f32 %v1702, 0.5
    %v1711 = vadd.f32 %v1703, 0.5
    %v1712 = vtanh.pop %v1642
    %v1713 = vtanh.pop %v1646
    %v1714 = vtanh.pop %v1652
    %v1715 = vtanh.pop %v1656
    %v1716 = vtanh.pop %v1662
    %v1717 = vtanh.pop %v1666
    %v1718 = vtanh.pop %v1672
    %v1719 = vtanh.pop %v1676
    %v1720 = vmul.f32 %v1644, 0.5
    %v1721 = vmul.f32 %v1648, 0.5
    %v1722 = vmul.f32 %v1654, 0.5
    %v1723 = vmul.f32 %v1658, 0.5
    %v1724 = vmul.f32 %v1664, 0.5
    %v1725 = vmul.f32 %v1668, 0.5
    %v1726 = vmul.f32 %v1674, 0.5
    %v1727 = vmul.f32 %v1678, 0.5
    %v1728 = vtanh.pop %v1720
    %v1729 = vtanh.pop %v1721
    %v1730 = vtanh.pop %v1722
    %v1731 = vtanh.pop %v1723
    %v1732 = vtanh.pop %v1724
    %v1733 = vtanh.pop %v1725
    %v1734 = vtanh.pop %v1726
    %v1735 = vtanh.pop %v1727
    %v1736 = vmul.f32 %v1728, 0.5
    %v1737 = vmul.f32 %v1729, 0.5
    %v1738 = vmul.f32 %v1730, 0.5
    %v1739 = vmul.f32 %v1731, 0.5
    %v1740 = vmul.f32 %v1732, 0.5
    %v1741 = vmul.f32 %v1733, 0.5
    %v1742 = vmul.f32 %v1734, 0.5
    %v1743 = vmul.f32 %v1735, 0.5
    %v1744 = vadd.f32 %v1736, 0.5
    %v1745 = vadd.f32 %v1737, 0.5
    %v1746 = vadd.f32 %v1738, 0.5
    %v1747 = vadd.f32 %v1739, 0.5
    %v1748 = vadd.f32 %v1740, 0.5
    %v1749 = vadd.f32 %v1741, 0.5
    %v1750 = vadd.f32 %v1742, 0.5
    %v1751 = vadd.f32 %v1743, 0.5
    %v1752 = vmul.f32 %v1571, 0.5
    %v1753 = vmul.f32 %v1575, 0.5
    %v1754 = vmul.f32 %v1581, 0.5
    %v1755 = vmul.f32 %v1585, 0.5
    %v1756 = vmul.f32 %v1591, 0.5
    %v1757 = vmul.f32 %v1595, 0.5
    %v1758 = vmul.f32 %v1601, 0.5
    %v1759 = vmul.f32 %v1605, 0.5
    %v1760 = vtanh.pop %v1752
    %v1761 = vtanh.pop %v1753
    %v1762 = vtanh.pop %v1754
    %v1763 = vtanh.pop %v1755
    %v1764 = vtanh.pop %v1756
    %v1765 = vtanh.pop %v1757
    %v1766 = vtanh.pop %v1758
    %v1767 = vtanh.pop %v1759
    %v1768 = vmul.f32 %v1760, 0.5
    %v1769 = vmul.f32 %v1761, 0.5
    %v1770 = vmul.f32 %v1762, 0.5
    %v1771 = vmul.f32 %v1763, 0.5
    %v1772 = vmul.f32 %v1764, 0.5
    %v1773 = vmul.f32 %v1765, 0.5
    %v1774 = vmul.f32 %v1766, 0.5
    %v1775 = vmul.f32 %v1767, 0.5
    %v1776 = vadd.f32 %v1768, 0.5
    %v1777 = vadd.f32 %v1769, 0.5
    %v1778 = vadd.f32 %v1770, 0.5
    %v1779 = vadd.f32 %v1771, 0.5
    %v1780 = vadd.f32 %v1772, 0.5
    %v1781 = vadd.f32 %v1773, 0.5
    %v1782 = vadd.f32 %v1774, 0.5
    %v1783 = vadd.f32 %v1775, 0.5
    %v1784 = vmul.f32 %v1776, %v502
    %v1785 = vmul.f32 %v1777, %v503
    %v1786 = vmul.f32 %v1778, %v504
    %v1787 = vmul.f32 %v1779, %v505
    %v1788 = vmul.f32 %v1780, %v506
    %v1789 = vmul.f32 %v1781, %v507
    %v1790 = vmul.f32 %v1782, %v508
    %v1791 = vmul.f32 %v1783, %v509
    %v1792 = vmul.f32 %v1704, %v1712
    %v1793 = vmul.f32 %v1705, %v1713
    %v1794 = vmul.f32 %v1706, %v1714
    %v1795 = vmul.f32 %v1707, %v1715
    %v1796 = vmul.f32 %v1708, %v1716
    %v1797 = vmul.f32 %v1709, %v1717
    %v1798 = vmul.f32 %v1710, %v1718
    %v1799 = vmul.f32 %v1711, %v1719
    %v1800 = vadd.f32 %v1784, %v1792
    %v1801 = vadd.f32 %v1785, %v1793
    %v1802 = vadd.f32 %v1786, %v1794
    %v1803 = vadd.f32 %v1787, %v1795
    %v1804 = vadd.f32 %v1788, %v1796
    %v1805 = vadd.f32 %v1789, %v1797
    %v1806 = vadd.f32 %v1790, %v1798
    %v1807 = vadd.f32 %v1791, %v1799
    %v1808 = vtanh.pop %v1800
    %v1809 = vtanh.pop %v1801
    %v1810 = vtanh.pop %v1802
    %v1811 = vtanh.pop %v1803
    %v1812 = vtanh.pop %v1804
    %v1813 = vtanh.pop %v1805
    %v1814 = vtanh.pop %v1806
    %v1815 = vtanh.pop %v1807
    %v1816 = vmul.f32 %v1744, %v1808
    %v1817 = vmul.f32 %v1745, %v1809
    %v1818 = vmul.f32 %v1746, %v1810
    %v1819 = vmul.f32 %v1747, %v1811
    %v1820 = vmul.f32 %v1748, %v1812
    %v1821 = vmul.f32 %v1749, %v1813
    %v1822 = vmul.f32 %v1750, %v1814
    %v1823 = vmul.f32 %v1751, %v1815
    %v1824 = vpack.c.bf16 %v1817, %v1816
    %v1825 = vpack.c.bf16 %v1819, %v1818
    %v1826 = vpack.c.bf16 %v1821, %v1820
    %v1827 = vpack.c.bf16 %v1823, %v1822
    %v1828 = vld [vmem:[#allocation4 + $0x200] sm:$0xff]
    %v1829 = vld [vmem:[#allocation4 + $0x208] sm:$0xff]
    %v1830 = vld [vmem:[#allocation4 + $0x210] sm:$0xff]
    %v1831 = vld [vmem:[#allocation4 + $0x218] sm:$0xff]
    %v1832 = vld [vmem:[#allocation4 + $0x220] sm:$0xff]
    %v1833 = vld [vmem:[#allocation4 + $0x228] sm:$0xff]
    %v1834 = vld [vmem:[#allocation4 + $0x230] sm:$0xff]
    %v1835 = vld [vmem:[#allocation4 + $0x238] sm:$0xff]
    %v1836 = vld [vmem:[#allocation4 + $0x240] sm:$0xff]
    %v1837 = vld [vmem:[#allocation4 + $0x248] sm:$0xff]
    %v1838 = vld [vmem:[#allocation4 + $0x250] sm:$0xff]
    %v1839 = vld [vmem:[#allocation4 + $0x258] sm:$0xff]
    %v1840 = vld [vmem:[#allocation4 + $0x260] sm:$0xff]
    %v1841 = vld [vmem:[#allocation4 + $0x268] sm:$0xff]
    %v1842 = vld [vmem:[#allocation4 + $0x270] sm:$0xff]
    %v1843 = vld [vmem:[#allocation4 + $0x278] sm:$0xff]
    %v1844 = vld [vmem:[#allocation4 + $0x280] sm:$0xff]
    %v1845 = vld [vmem:[#allocation4 + $0x288] sm:$0xff]
    %v1846 = vld [vmem:[#allocation4 + $0x290] sm:$0xff]
    %v1847 = vld [vmem:[#allocation4 + $0x298] sm:$0xff]
    %v1848 = vld [vmem:[#allocation4 + $0x2a0] sm:$0xff]
    %v1849 = vld [vmem:[#allocation4 + $0x2a8] sm:$0xff]
    %v1850 = vld [vmem:[#allocation4 + $0x2b0] sm:$0xff]
    %v1851 = vld [vmem:[#allocation4 + $0x2b8] sm:$0xff]
    %v1852 = vld [vmem:[#allocation4 + $0x2c0] sm:$0xff]
    %v1853 = vld [vmem:[#allocation4 + $0x2c8] sm:$0xff]
    %v1854 = vld [vmem:[#allocation4 + $0x2d0] sm:$0xff]
    %v1855 = vld [vmem:[#allocation4 + $0x2d8] sm:$0xff]
    %v1856 = vld [vmem:[#allocation4 + $0x2e0] sm:$0xff]
    %v1857 = vld [vmem:[#allocation4 + $0x2e8] sm:$0xff]
    %v1858 = vld [vmem:[#allocation4 + $0x2f0] sm:$0xff]
    %v1859 = vld [vmem:[#allocation4 + $0x2f8] sm:$0xff]
    %v1860 = vld [vmem:[#allocation4 + $0x300] sm:$0xff]
    %v1861 = vld [vmem:[#allocation4 + $0x308] sm:$0xff]
    %v1862 = vld [vmem:[#allocation4 + $0x310] sm:$0xff]
    %v1863 = vld [vmem:[#allocation4 + $0x318] sm:$0xff]
    %v1864 = vld [vmem:[#allocation4 + $0x320] sm:$0xff]
    %v1865 = vld [vmem:[#allocation4 + $0x328] sm:$0xff]
    %v1866 = vld [vmem:[#allocation4 + $0x330] sm:$0xff]
    %v1867 = vld [vmem:[#allocation4 + $0x338] sm:$0xff]
    %v1868 = vld [vmem:[#allocation4 + $0x340] sm:$0xff]
    %v1869 = vld [vmem:[#allocation4 + $0x348] sm:$0xff]
    %v1870 = vld [vmem:[#allocation4 + $0x350] sm:$0xff]
    %v1871 = vld [vmem:[#allocation4 + $0x358] sm:$0xff]
    %v1872 = vld [vmem:[#allocation4 + $0x360] sm:$0xff]
    %v1873 = vld [vmem:[#allocation4 + $0x368] sm:$0xff]
    %v1874 = vld [vmem:[#allocation4 + $0x370] sm:$0xff]
    %v1875 = vld [vmem:[#allocation4 + $0x378] sm:$0xff]
    %v1876 = vld [vmem:[#allocation4 + $0x380] sm:$0xff]
    %v1877 = vld [vmem:[#allocation4 + $0x388] sm:$0xff]
    %v1878 = vld [vmem:[#allocation4 + $0x390] sm:$0xff]
    %v1879 = vld [vmem:[#allocation4 + $0x398] sm:$0xff]
    %v1880 = vld [vmem:[#allocation4 + $0x3a0] sm:$0xff]
    %v1881 = vld [vmem:[#allocation4 + $0x3a8] sm:$0xff]
    %v1882 = vld [vmem:[#allocation4 + $0x3b0] sm:$0xff]
    %v1883 = vld [vmem:[#allocation4 + $0x3b8] sm:$0xff]
    %v1884 = vld [vmem:[#allocation4 + $0x3c0] sm:$0xff]
    %v1885 = vld [vmem:[#allocation4 + $0x3c8] sm:$0xff]
    %v1886 = vld [vmem:[#allocation4 + $0x3d0] sm:$0xff]
    %v1887 = vld [vmem:[#allocation4 + $0x3d8] sm:$0xff]
    %v1888 = vld [vmem:[#allocation4 + $0x3e0] sm:$0xff]
    %v1889 = vld [vmem:[#allocation4 + $0x3e8] sm:$0xff]
    %v1890 = vld [vmem:[#allocation4 + $0x3f0] sm:$0xff]
    %v1891 = vld [vmem:[#allocation4 + $0x3f8] sm:$0xff]
    %v1892 = vld [vmem:[%s562] ss:$8 sm:$0xf]
    %v1894 = vlaneseq
    %v1895 = vshrl.u32 %v1894, 7
    %v1896 = vsub.s32 0, %v1895
    %v1897 = vrot.slane %v1892, %v1896
    %v1898 = vlaneseq
    %v1899 = vshrl.u32 %v1898, 7
    %v1900 = vsub.s32 1, %v1899
    %v1901 = vrot.slane %v1892, %v1900
    %v1902 = vlaneseq
    %v1903 = vshrl.u32 %v1902, 7
    %v1904 = vsub.s32 2, %v1903
    %v1905 = vrot.slane %v1892, %v1904
    %v1906 = vlaneseq
    %v1907 = vshrl.u32 %v1906, 7
    %v1908 = vsub.s32 3, %v1907
    %v1909 = vrot.slane %v1892, %v1908
    %v1978 = vunpack.c.l.b16 %v1828
    %v1979 = vunpack.c.h.b16 %v1828
    %v1980 = vunpack.c.l.b16 %v1829
    %v1981 = vunpack.c.h.b16 %v1829
    %v1982 = vunpack.c.l.b16 %v1830
    %v1983 = vunpack.c.h.b16 %v1830
    %v1984 = vunpack.c.l.b16 %v1831
    %v1985 = vunpack.c.h.b16 %v1831
    %v1986 = vunpack.c.l.b16 %v1832
    %v1987 = vunpack.c.h.b16 %v1832
    %v1988 = vunpack.c.l.b16 %v1833
    %v1989 = vunpack.c.h.b16 %v1833
    %v1990 = vunpack.c.l.b16 %v1834
    %v1991 = vunpack.c.h.b16 %v1834
    %v1992 = vunpack.c.l.b16 %v1835
    %v1993 = vunpack.c.h.b16 %v1835
    %v1994 = vunpack.c.l.b16 %v1836
    %v1995 = vunpack.c.h.b16 %v1836
    %v1996 = vunpack.c.l.b16 %v1837
    %v1997 = vunpack.c.h.b16 %v1837
    %v1998 = vunpack.c.l.b16 %v1838
    %v1999 = vunpack.c.h.b16 %v1838
    %v2000 = vunpack.c.l.b16 %v1839
    %v2001 = vunpack.c.h.b16 %v1839
    %v2002 = vunpack.c.l.b16 %v1840
    %v2003 = vunpack.c.h.b16 %v1840
    %v2004 = vunpack.c.l.b16 %v1841
    %v2005 = vunpack.c.h.b16 %v1841
    %v2006 = vunpack.c.l.b16 %v1842
    %v2007 = vunpack.c.h.b16 %v1842
    %v2008 = vunpack.c.l.b16 %v1843
    %v2009 = vunpack.c.h.b16 %v1843
    %v2010 = vunpack.c.l.b16 %v1844
    %v2011 = vunpack.c.h.b16 %v1844
    %v2012 = vunpack.c.l.b16 %v1845
    %v2013 = vunpack.c.h.b16 %v1845
    %v2014 = vunpack.c.l.b16 %v1846
    %v2015 = vunpack.c.h.b16 %v1846
    %v2016 = vunpack.c.l.b16 %v1847
    %v2017 = vunpack.c.h.b16 %v1847
    %v2018 = vunpack.c.l.b16 %v1848
    %v2019 = vunpack.c.h.b16 %v1848
    %v2020 = vunpack.c.l.b16 %v1849
    %v2021 = vunpack.c.h.b16 %v1849
    %v2022 = vunpack.c.l.b16 %v1850
    %v2023 = vunpack.c.h.b16 %v1850
    %v2024 = vunpack.c.l.b16 %v1851
    %v2025 = vunpack.c.h.b16 %v1851
    %v2026 = vunpack.c.l.b16 %v1852
    %v2027 = vunpack.c.h.b16 %v1852
    %v2028 = vunpack.c.l.b16 %v1853
    %v2029 = vunpack.c.h.b16 %v1853
    %v2030 = vunpack.c.l.b16 %v1854
    %v2031 = vunpack.c.h.b16 %v1854
    %v2032 = vunpack.c.l.b16 %v1855
    %v2033 = vunpack.c.h.b16 %v1855
    %v2034 = vunpack.c.l.b16 %v1856
    %v2035 = vunpack.c.h.b16 %v1856
    %v2036 = vunpack.c.l.b16 %v1857
    %v2037 = vunpack.c.h.b16 %v1857
    %v2038 = vunpack.c.l.b16 %v1858
    %v2039 = vunpack.c.h.b16 %v1858
    %v2040 = vunpack.c.l.b16 %v1859
    %v2041 = vunpack.c.h.b16 %v1859
    %v2042 = vunpack.c.l.b16 %v1860
    %v2043 = vunpack.c.h.b16 %v1860
    %v2044 = vunpack.c.l.b16 %v1861
    %v2045 = vunpack.c.h.b16 %v1861
    %v2046 = vunpack.c.l.b16 %v1862
    %v2047 = vunpack.c.h.b16 %v1862
    %v2048 = vunpack.c.l.b16 %v1863
    %v2049 = vunpack.c.h.b16 %v1863
    %v2050 = vunpack.c.l.b16 %v1864
    %v2051 = vunpack.c.h.b16 %v1864
    %v2052 = vunpack.c.l.b16 %v1865
    %v2053 = vunpack.c.h.b16 %v1865
    %v2054 = vunpack.c.l.b16 %v1866
    %v2055 = vunpack.c.h.b16 %v1866
    %v2056 = vunpack.c.l.b16 %v1867
    %v2057 = vunpack.c.h.b16 %v1867
    %v2058 = vunpack.c.l.b16 %v1868
    %v2059 = vunpack.c.h.b16 %v1868
    %v2060 = vunpack.c.l.b16 %v1869
    %v2061 = vunpack.c.h.b16 %v1869
    %v2062 = vunpack.c.l.b16 %v1870
    %v2063 = vunpack.c.h.b16 %v1870
    %v2064 = vunpack.c.l.b16 %v1871
    %v2065 = vunpack.c.h.b16 %v1871
    %v2066 = vunpack.c.l.b16 %v1872
    %v2067 = vunpack.c.h.b16 %v1872
    %v2068 = vunpack.c.l.b16 %v1873
    %v2069 = vunpack.c.h.b16 %v1873
    %v2070 = vunpack.c.l.b16 %v1874
    %v2071 = vunpack.c.h.b16 %v1874
    %v2072 = vunpack.c.l.b16 %v1875
    %v2073 = vunpack.c.h.b16 %v1875
    %v2074 = vunpack.c.l.b16 %v1876
    %v2075 = vunpack.c.h.b16 %v1876
    %v2076 = vunpack.c.l.b16 %v1877
    %v2077 = vunpack.c.h.b16 %v1877
    %v2078 = vunpack.c.l.b16 %v1878
    %v2079 = vunpack.c.h.b16 %v1878
    %v2080 = vunpack.c.l.b16 %v1879
    %v2081 = vunpack.c.h.b16 %v1879
    %v2082 = vunpack.c.l.b16 %v1880
    %v2083 = vunpack.c.h.b16 %v1880
    %v2084 = vunpack.c.l.b16 %v1881
    %v2085 = vunpack.c.h.b16 %v1881
    %v2086 = vunpack.c.l.b16 %v1882
    %v2087 = vunpack.c.h.b16 %v1882
    %v2088 = vunpack.c.l.b16 %v1883
    %v2089 = vunpack.c.h.b16 %v1883
    %v2090 = vunpack.c.l.b16 %v1884
    %v2091 = vunpack.c.h.b16 %v1884
    %v2092 = vunpack.c.l.b16 %v1885
    %v2093 = vunpack.c.h.b16 %v1885
    %v2094 = vunpack.c.l.b16 %v1886
    %v2095 = vunpack.c.h.b16 %v1886
    %v2096 = vunpack.c.l.b16 %v1887
    %v2097 = vunpack.c.h.b16 %v1887
    %v2098 = vunpack.c.l.b16 %v1888
    %v2099 = vunpack.c.h.b16 %v1888
    %v2100 = vunpack.c.l.b16 %v1889
    %v2101 = vunpack.c.h.b16 %v1889
    %v2102 = vunpack.c.l.b16 %v1890
    %v2103 = vunpack.c.h.b16 %v1890
    %v2104 = vunpack.c.l.b16 %v1891
    %v2105 = vunpack.c.h.b16 %v1891
    %v2106 = vpack.c.b16 %v1982, %v1978
    %v2107 = vpack.c.b16 %v1983, %v1979
    %v2108 = vpack.c.b16 %v1984, %v1980
    %v2109 = vpack.c.b16 %v1985, %v1981
    %v2110 = vpack.c.b16 %v1990, %v1986
    %v2111 = vpack.c.b16 %v1991, %v1987
    %v2112 = vpack.c.b16 %v1992, %v1988
    %v2113 = vpack.c.b16 %v1993, %v1989
    %v2114 = vpack.c.b16 %v1998, %v1994
    %v2115 = vpack.c.b16 %v1999, %v1995
    %v2116 = vpack.c.b16 %v2000, %v1996
    %v2117 = vpack.c.b16 %v2001, %v1997
    %v2118 = vpack.c.b16 %v2006, %v2002
    %v2119 = vpack.c.b16 %v2007, %v2003
    %v2120 = vpack.c.b16 %v2008, %v2004
    %v2121 = vpack.c.b16 %v2009, %v2005
    %v2122 = vpack.c.b16 %v2014, %v2010
    %v2123 = vpack.c.b16 %v2015, %v2011
    %v2124 = vpack.c.b16 %v2016, %v2012
    %v2125 = vpack.c.b16 %v2017, %v2013
    %v2126 = vpack.c.b16 %v2022, %v2018
    %v2127 = vpack.c.b16 %v2023, %v2019
    %v2128 = vpack.c.b16 %v2024, %v2020
    %v2129 = vpack.c.b16 %v2025, %v2021
    %v2130 = vpack.c.b16 %v2030, %v2026
    %v2131 = vpack.c.b16 %v2031, %v2027
    %v2132 = vpack.c.b16 %v2032, %v2028
    %v2133 = vpack.c.b16 %v2033, %v2029
    %v2134 = vpack.c.b16 %v2038, %v2034
    %v2135 = vpack.c.b16 %v2039, %v2035
    %v2136 = vpack.c.b16 %v2040, %v2036
    %v2137 = vpack.c.b16 %v2041, %v2037
    %v2138 = vpack.c.b16 %v2046, %v2042
    %v2139 = vpack.c.b16 %v2047, %v2043
    %v2140 = vpack.c.b16 %v2048, %v2044
    %v2141 = vpack.c.b16 %v2049, %v2045
    %v2142 = vpack.c.b16 %v2054, %v2050
    %v2143 = vpack.c.b16 %v2055, %v2051
    %v2144 = vpack.c.b16 %v2056, %v2052
    %v2145 = vpack.c.b16 %v2057, %v2053
    %v2146 = vpack.c.b16 %v2062, %v2058
    %v2147 = vpack.c.b16 %v2063, %v2059
    %v2148 = vpack.c.b16 %v2064, %v2060
    %v2149 = vpack.c.b16 %v2065, %v2061
    %v2150 = vpack.c.b16 %v2070, %v2066
    %v2151 = vpack.c.b16 %v2071, %v2067
    %v2152 = vpack.c.b16 %v2072, %v2068
    %v2153 = vpack.c.b16 %v2073, %v2069
    %v2154 = vpack.c.b16 %v2078, %v2074
    %v2155 = vpack.c.b16 %v2079, %v2075
    %v2156 = vpack.c.b16 %v2080, %v2076
    %v2157 = vpack.c.b16 %v2081, %v2077
    %v2158 = vpack.c.b16 %v2086, %v2082
    %v2159 = vpack.c.b16 %v2087, %v2083
    %v2160 = vpack.c.b16 %v2088, %v2084
    %v2161 = vpack.c.b16 %v2089, %v2085
    %v2162 = vpack.c.b16 %v2094, %v2090
    %v2163 = vpack.c.b16 %v2095, %v2091
    %v2164 = vpack.c.b16 %v2096, %v2092
    %v2165 = vpack.c.b16 %v2097, %v2093
    %v2166 = vpack.c.b16 %v2102, %v2098
    %v2167 = vpack.c.b16 %v2103, %v2099
    %v2168 = vpack.c.b16 %v2104, %v2100
    %v2169 = vpack.c.b16 %v2105, %v2101
    %2234 = vmatprep.subr.bf16.mxu0 %v2107
    %2235 = vmatpush1.bf16.msra.mxu0 %v2106
    %2236 = vmatprep.subr.bf16.mxu0 %v2111
    %2237 = vmatpush1.bf16.msra.mxu0 %v2110
    %2238 = vmatprep.subr.bf16.mxu0 %v2115
    %2239 = vmatpush1.bf16.msra.mxu0 %v2114
    %2240 = vmatprep.subr.bf16.mxu0 %v2119
    %2241 = vmatpush1.bf16.msra.mxu0 %v2118
    %2242 = vmatprep.subr.bf16.mxu0 %v2123
    %2243 = vmatpush1.bf16.msra.mxu0 %v2122
    %2244 = vmatprep.subr.bf16.mxu0 %v2127
    %2245 = vmatpush1.bf16.msra.mxu0 %v2126
    %2246 = vmatprep.subr.bf16.mxu0 %v2131
    %2247 = vmatpush1.bf16.msra.mxu0 %v2130
    %2248 = vmatprep.subr.bf16.mxu0 %v2135
    %2249 = vmatpush1.bf16.msra.mxu0 %v2134
    %2250 = vmatprep.subr.bf16.mxu0 %v2139
    %2251 = vmatpush1.bf16.msra.mxu0 %v2138
    %2252 = vmatprep.subr.bf16.mxu0 %v2143
    %2253 = vmatpush1.bf16.msra.mxu0 %v2142
    %2254 = vmatprep.subr.bf16.mxu0 %v2147
    %2255 = vmatpush1.bf16.msra.mxu0 %v2146
    %2256 = vmatprep.subr.bf16.mxu0 %v2151
    %2257 = vmatpush1.bf16.msra.mxu0 %v2150
    %2258 = vmatprep.subr.bf16.mxu0 %v2155
    %2259 = vmatpush1.bf16.msra.mxu0 %v2154
    %2260 = vmatprep.subr.bf16.mxu0 %v2159
    %2261 = vmatpush1.bf16.msra.mxu0 %v2158
    %2262 = vmatprep.subr.bf16.mxu0 %v2163
    %2263 = vmatpush1.bf16.msra.mxu0 %v2162
    %2264 = vmatprep.subr.bf16.mxu0 %v2167
    %2265 = vmatpush1.bf16.msra.mxu0 %v2166
    %2266 = vmatprep.mubr.bf16.mxu0 %v974
    %2267 = vmatmul.mubr.bf16.gmra.mrb[0].mxu0 %v1824
    %v2268 = vpop.f32.mrb[0].mxu0
    %v2269 = vadd.f32 %v1897, %v2268
    %v2270 = vpop.f32.mrb[0].mxu0
    %v2271 = vadd.f32 %v1901, %v2270
    %v2272 = vpop.f32.mrb[0].mxu0
    %v2273 = vadd.f32 %v1897, %v2272
    %v2274 = vpop.f32.mrb[0].mxu0
    %v2275 = vadd.f32 %v1901, %v2274
    %2276 = vmatprep.mubr.bf16.mxu0 %v975
    %2277 = vmatmul.mubr.bf16.gmra.mrb[0].mxu0 %v1825
    %v2278 = vpop.f32.mrb[0].mxu0
    %v2279 = vadd.f32 %v1897, %v2278
    %v2280 = vpop.f32.mrb[0].mxu0
    %v2281 = vadd.f32 %v1901, %v2280
    %v2282 = vpop.f32.mrb[0].mxu0
    %v2283 = vadd.f32 %v1897, %v2282
    %v2284 = vpop.f32.mrb[0].mxu0
    %v2285 = vadd.f32 %v1901, %v2284
    %2286 = vmatprep.mubr.bf16.mxu0 %v976
    %2287 = vmatmul.mubr.bf16.gmra.mrb[0].mxu0 %v1826
    %v2288 = vpop.f32.mrb[0].mxu0
    %v2289 = vadd.f32 %v1897, %v2288
    %v2290 = vpop.f32.mrb[0].mxu0
    %v2291 = vadd.f32 %v1901, %v2290
    %v2292 = vpop.f32.mrb[0].mxu0
    %v2293 = vadd.f32 %v1897, %v2292
    %v2294 = vpop.f32.mrb[0].mxu0
    %v2295 = vadd.f32 %v1901, %v2294
    %2296 = vmatprep.mubr.bf16.mxu0 %v977
    %2297 = vmatmul.mubr.bf16.gmra.mrb[0].mxu0 %v1827
    %v2298 = vpop.f32.mrb[0].mxu0
    %v2299 = vadd.f32 %v1897, %v2298
    %v2300 = vpop.f32.mrb[0].mxu0
    %v2301 = vadd.f32 %v1901, %v2300
    %v2302 = vpop.f32.mrb[0].mxu0
    %v2303 = vadd.f32 %v1897, %v2302
    %v2304 = vpop.f32.mrb[0].mxu0
    %v2305 = vadd.f32 %v1901, %v2304
    %2306 = vdwg.mxu0
    %2307 = vmatprep.subr.bf16.mxu0 %v2109
    %2308 = vmatpush1.bf16.msra.mxu0 %v2108
    %2309 = vmatprep.subr.bf16.mxu0 %v2113
    %2310 = vmatpush1.bf16.msra.mxu0 %v2112
    %2311 = vmatprep.subr.bf16.mxu0 %v2117
    %2312 = vmatpush1.bf16.msra.mxu0 %v2116
    %2313 = vmatprep.subr.bf16.mxu0 %v2121
    %2314 = vmatpush1.bf16.msra.mxu0 %v2120
    %2315 = vmatprep.subr.bf16.mxu0 %v2125
    %2316 = vmatpush1.bf16.msra.mxu0 %v2124
    %2317 = vmatprep.subr.bf16.mxu0 %v2129
    %2318 = vmatpush1.bf16.msra.mxu0 %v2128
    %2319 = vmatprep.subr.bf16.mxu0 %v2133
    %2320 = vmatpush1.bf16.msra.mxu0 %v2132
    %2321 = vmatprep.subr.bf16.mxu0 %v2137
    %2322 = vmatpush1.bf16.msra.mxu0 %v2136
    %2323 = vmatprep.subr.bf16.mxu0 %v2141
    %2324 = vmatpush1.bf16.msra.mxu0 %v2140
    %2325 = vmatprep.subr.bf16.mxu0 %v2145
    %2326 = vmatpush1.bf16.msra.mxu0 %v2144
    %2327 = vmatprep.subr.bf16.mxu0 %v2149
    %2328 = vmatpush1.bf16.msra.mxu0 %v2148
    %2329 = vmatprep.subr.bf16.mxu0 %v2153
    %2330 = vmatpush1.bf16.msra.mxu0 %v2152
    %2331 = vmatprep.subr.bf16.mxu0 %v2157
    %2332 = vmatpush1.bf16.msra.mxu0 %v2156
    %2333 = vmatprep.subr.bf16.mxu0 %v2161
    %2334 = vmatpush1.bf16.msra.mxu0 %v2160
    %2335 = vmatprep.subr.bf16.mxu0 %v2165
    %2336 = vmatpush1.bf16.msra.mxu0 %v2164
    %2337 = vmatprep.subr.bf16.mxu0 %v2169
    %2338 = vmatpush1.bf16.msra.mxu0 %v2168
    %2339 = vmatprep.mubr.bf16.mxu0 %v974
    %2340 = vmatmul.mubr.bf16.gmra.mrb[0].mxu0 %v1824
    %v2341 = vpop.f32.mrb[0].mxu0
    %v2342 = vadd.f32 %v1905, %v2341
    %v2343 = vpop.f32.mrb[0].mxu0
    %v2344 = vadd.f32 %v1909, %v2343
    %v2345 = vpop.f32.mrb[0].mxu0
    %v2346 = vadd.f32 %v1905, %v2345
    %v2347 = vpop.f32.mrb[0].mxu0
    %v2348 = vadd.f32 %v1909, %v2347
    %2349 = vmatprep.mubr.bf16.mxu0 %v975
    %2350 = vmatmul.mubr.bf16.gmra.mrb[0].mxu0 %v1825
    %v2351 = vpop.f32.mrb[0].mxu0
    %v2352 = vadd.f32 %v1905, %v2351
    %v2353 = vpop.f32.mrb[0].mxu0
    %v2354 = vadd.f32 %v1909, %v2353
    %v2355 = vpop.f32.mrb[0].mxu0
    %v2356 = vadd.f32 %v1905, %v2355
    %v2357 = vpop.f32.mrb[0].mxu0
    %v2358 = vadd.f32 %v1909, %v2357
    %2359 = vmatprep.mubr.bf16.mxu0 %v976
    %2360 = vmatmul.mubr.bf16.gmra.mrb[0].mxu0 %v1826
    %v2361 = vpop.f32.mrb[0].mxu0
    %v2362 = vadd.f32 %v1905, %v2361
    %v2363 = vpop.f32.mrb[0].mxu0
    %v2364 = vadd.f32 %v1909, %v2363
    %v2365 = vpop.f32.mrb[0].mxu0
    %v2366 = vadd.f32 %v1905, %v2365
    %v2367 = vpop.f32.mrb[0].mxu0
    %v2368 = vadd.f32 %v1909, %v2367
    %2369 = vmatprep.mubr.bf16.mxu0 %v977
    %2370 = vmatmul.mubr.bf16.gmra.mrb[0].mxu0 %v1827
    %v2371 = vpop.f32.mrb[0].mxu0
    %v2372 = vadd.f32 %v1905, %v2371
    %v2373 = vpop.f32.mrb[0].mxu0
    %v2374 = vadd.f32 %v1909, %v2373
    %v2375 = vpop.f32.mrb[0].mxu0
    %v2376 = vadd.f32 %v1905, %v2375
    %v2377 = vpop.f32.mrb[0].mxu0
    %v2378 = vadd.f32 %v1909, %v2377
    %2379 = vdwg.mxu0
    %v2380 = vmul.f32 %v2269, 0.5
    %v2381 = vmul.f32 %v2273, 0.5
    %v2382 = vmul.f32 %v2279, 0.5
    %v2383 = vmul.f32 %v2283, 0.5
    %v2384 = vmul.f32 %v2289, 0.5
    %v2385 = vmul.f32 %v2293, 0.5
    %v2386 = vmul.f32 %v2299, 0.5
    %v2387 = vmul.f32 %v2303, 0.5
    %v2388 = vtanh.pop %v2380
    %v2389 = vtanh.pop %v2381
    %v2390 = vtanh.pop %v2382
    %v2391 = vtanh.pop %v2383
    %v2392 = vtanh.pop %v2384
    %v2393 = vtanh.pop %v2385
    %v2394 = vtanh.pop %v2386
    %v2395 = vtanh.pop %v2387
    %v2396 = vmul.f32 %v2388, 0.5
    %v2397 = vmul.f32 %v2389, 0.5
    %v2398 = vmul.f32 %v2390, 0.5
    %v2399 = vmul.f32 %v2391, 0.5
    %v2400 = vmul.f32 %v2392, 0.5
    %v2401 = vmul.f32 %v2393, 0.5
    %v2402 = vmul.f32 %v2394, 0.5
    %v2403 = vmul.f32 %v2395, 0.5
    %v2404 = vadd.f32 %v2396, 0.5
    %v2405 = vadd.f32 %v2397, 0.5
    %v2406 = vadd.f32 %v2398, 0.5
    %v2407 = vadd.f32 %v2399, 0.5
    %v2408 = vadd.f32 %v2400, 0.5
    %v2409 = vadd.f32 %v2401, 0.5
    %v2410 = vadd.f32 %v2402, 0.5
    %v2411 = vadd.f32 %v2403, 0.5
    %v2412 = vtanh.pop %v2342
    %v2413 = vtanh.pop %v2346
    %v2414 = vtanh.pop %v2352
    %v2415 = vtanh.pop %v2356
    %v2416 = vtanh.pop %v2362
    %v2417 = vtanh.pop %v2366
    %v2418 = vtanh.pop %v2372
    %v2419 = vtanh.pop %v2376
    %v2420 = vmul.f32 %v2344, 0.5
    %v2421 = vmul.f32 %v2348, 0.5
    %v2422 = vmul.f32 %v2354, 0.5
    %v2423 = vmul.f32 %v2358, 0.5
    %v2424 = vmul.f32 %v2364, 0.5
    %v2425 = vmul.f32 %v2368, 0.5
    %v2426 = vmul.f32 %v2374, 0.5
    %v2427 = vmul.f32 %v2378, 0.5
    %v2428 = vtanh.pop %v2420
    %v2429 = vtanh.pop %v2421
    %v2430 = vtanh.pop %v2422
    %v2431 = vtanh.pop %v2423
    %v2432 = vtanh.pop %v2424
    %v2433 = vtanh.pop %v2425
    %v2434 = vtanh.pop %v2426
    %v2435 = vtanh.pop %v2427
    %v2436 = vmul.f32 %v2428, 0.5
    %v2437 = vmul.f32 %v2429, 0.5
    %v2438 = vmul.f32 %v2430, 0.5
    %v2439 = vmul.f32 %v2431, 0.5
    %v2440 = vmul.f32 %v2432, 0.5
    %v2441 = vmul.f32 %v2433, 0.5
    %v2442 = vmul.f32 %v2434, 0.5
    %v2443 = vmul.f32 %v2435, 0.5
    %v2444 = vadd.f32 %v2436, 0.5
    %v2445 = vadd.f32 %v2437, 0.5
    %v2446 = vadd.f32 %v2438, 0.5
    %v2447 = vadd.f32 %v2439, 0.5
    %v2448 = vadd.f32 %v2440, 0.5
    %v2449 = vadd.f32 %v2441, 0.5
    %v2450 = vadd.f32 %v2442, 0.5
    %v2451 = vadd.f32 %v2443, 0.5
    %v2452 = vmul.f32 %v2271, 0.5
    %v2453 = vmul.f32 %v2275, 0.5
    %v2454 = vmul.f32 %v2281, 0.5
    %v2455 = vmul.f32 %v2285, 0.5
    %v2456 = vmul.f32 %v2291, 0.5
    %v2457 = vmul.f32 %v2295, 0.5
    %v2458 = vmul.f32 %v2301, 0.5
    %v2459 = vmul.f32 %v2305, 0.5
    %v2460 = vtanh.pop %v2452
    %v2461 = vtanh.pop %v2453
    %v2462 = vtanh.pop %v2454
    %v2463 = vtanh.pop %v2455
    %v2464 = vtanh.pop %v2456
    %v2465 = vtanh.pop %v2457
    %v2466 = vtanh.pop %v2458
    %v2467 = vtanh.pop %v2459
    %v2468 = vmul.f32 %v2460, 0.5
    %v2469 = vmul.f32 %v2461, 0.5
    %v2470 = vmul.f32 %v2462, 0.5
    %v2471 = vmul.f32 %v2463, 0.5
    %v2472 = vmul.f32 %v2464, 0.5
    %v2473 = vmul.f32 %v2465, 0.5
    %v2474 = vmul.f32 %v2466, 0.5
    %v2475 = vmul.f32 %v2467, 0.5
    %v2476 = vadd.f32 %v2468, 0.5
    %v2477 = vadd.f32 %v2469, 0.5
    %v2478 = vadd.f32 %v2470, 0.5
    %v2479 = vadd.f32 %v2471, 0.5
    %v2480 = vadd.f32 %v2472, 0.5
    %v2481 = vadd.f32 %v2473, 0.5
    %v2482 = vadd.f32 %v2474, 0.5
    %v2483 = vadd.f32 %v2475, 0.5
    %v2484 = vmul.f32 %v2476, %v950
    %v2485 = vmul.f32 %v2477, %v951
    %v2486 = vmul.f32 %v2478, %v952
    %v2487 = vmul.f32 %v2479, %v953
    %v2488 = vmul.f32 %v2480, %v954
    %v2489 = vmul.f32 %v2481, %v955
    %v2490 = vmul.f32 %v2482, %v956
    %v2491 = vmul.f32 %v2483, %v957
    %v2492 = vmul.f32 %v2404, %v2412
    %v2493 = vmul.f32 %v2405, %v2413
    %v2494 = vmul.f32 %v2406, %v2414
    %v2495 = vmul.f32 %v2407, %v2415
    %v2496 = vmul.f32 %v2408, %v2416
    %v2497 = vmul.f32 %v2409, %v2417
    %v2498 = vmul.f32 %v2410, %v2418
    %v2499 = vmul.f32 %v2411, %v2419
    %v2500 = vadd.f32 %v2484, %v2492
    %v2501 = vadd.f32 %v2485, %v2493
    %v2502 = vadd.f32 %v2486, %v2494
    %v2503 = vadd.f32 %v2487, %v2495
    %v2504 = vadd.f32 %v2488, %v2496
    %v2505 = vadd.f32 %v2489, %v2497
    %v2506 = vadd.f32 %v2490, %v2498
    %v2507 = vadd.f32 %v2491, %v2499
    %v2508 = vtanh.pop %v2500
    %v2509 = vtanh.pop %v2501
    %v2510 = vtanh.pop %v2502
    %v2511 = vtanh.pop %v2503
    %v2512 = vtanh.pop %v2504
    %v2513 = vtanh.pop %v2505
    %v2514 = vtanh.pop %v2506
    %v2515 = vtanh.pop %v2507
    %v2516 = vmul.f32 %v2444, %v2508
    %v2517 = vmul.f32 %v2445, %v2509
    %v2518 = vmul.f32 %v2446, %v2510
    %v2519 = vmul.f32 %v2447, %v2511
    %v2520 = vmul.f32 %v2448, %v2512
    %v2521 = vmul.f32 %v2449, %v2513
    %v2522 = vmul.f32 %v2450, %v2514
    %v2523 = vmul.f32 %v2451, %v2515
    %v2524 = vpack.c.bf16 %v2517, %v2516
    %v2525 = vpack.c.bf16 %v2519, %v2518
    %v2526 = vpack.c.bf16 %v2521, %v2520
    %v2527 = vpack.c.bf16 %v2523, %v2522
    %v2528 = vld [vmem:[#allocation6] sm:$0xf]
    %v2529 = vld [vmem:[#allocation6 + $0x4] sm:$0xf]
    %v2530 = vld [vmem:[#allocation6 + $0x8] sm:$0xf]
    %v2531 = vld [vmem:[#allocation6 + $0xc] sm:$0xf]
    %v2532 = vld [vmem:[#allocation6 + $0x10] sm:$0xf]
    %v2533 = vld [vmem:[#allocation6 + $0x14] sm:$0xf]
    %v2534 = vld [vmem:[#allocation6 + $0x18] sm:$0xf]
    %v2535 = vld [vmem:[#allocation6 + $0x1c] sm:$0xf]
    %v2536 = vld [vmem:[#allocation6 + $0x20] sm:$0xf]
    %v2537 = vld [vmem:[#allocation6 + $0x24] sm:$0xf]
    %v2538 = vld [vmem:[#allocation6 + $0x28] sm:$0xf]
    %v2539 = vld [vmem:[#allocation6 + $0x2c] sm:$0xf]
    %v2540 = vld [vmem:[#allocation6 + $0x30] sm:$0xf]
    %v2541 = vld [vmem:[#allocation6 + $0x34] sm:$0xf]
    %v2542 = vld [vmem:[#allocation6 + $0x38] sm:$0xf]
    %v2543 = vld [vmem:[#allocation6 + $0x3c] sm:$0xf]
    %v2544 = vld [vmem:[#allocation7 + $0x2] ss:$0 sm:$0xff]
    %v2561 = vunpack.c.l.b16 %v2528
    %v2562 = vunpack.c.l.b16 %v2529
    %v2563 = vunpack.c.l.b16 %v2530
    %v2564 = vunpack.c.l.b16 %v2531
    %v2565 = vunpack.c.l.b16 %v2532
    %v2566 = vunpack.c.l.b16 %v2533
    %v2567 = vunpack.c.l.b16 %v2534
    %v2568 = vunpack.c.l.b16 %v2535
    %v2569 = vunpack.c.l.b16 %v2536
    %v2570 = vunpack.c.l.b16 %v2537
    %v2571 = vunpack.c.l.b16 %v2538
    %v2572 = vunpack.c.l.b16 %v2539
    %v2573 = vunpack.c.l.b16 %v2540
    %v2574 = vunpack.c.l.b16 %v2541
    %v2575 = vunpack.c.l.b16 %v2542
    %v2576 = vunpack.c.l.b16 %v2543
    %v2577 = vpack.c.b16 %v2562, %v2561
    %v2578 = vpack.c.b16 %v2564, %v2563
    %v2579 = vpack.c.b16 %v2566, %v2565
    %v2580 = vpack.c.b16 %v2568, %v2567
    %v2581 = vpack.c.b16 %v2570, %v2569
    %v2582 = vpack.c.b16 %v2572, %v2571
    %v2583 = vpack.c.b16 %v2574, %v2573
    %v2584 = vpack.c.b16 %v2576, %v2575
    %2593 = vmatprep.subr.bf16.mxu0 0
    %2594 = vmatpush1.bf16.msra.mxu0 %v2577
    %2595 = vmatprep.subr.bf16.mxu0 0
    %2596 = vmatpush1.bf16.msra.mxu0 %v2578
    %2597 = vmatprep.subr.bf16.mxu0 0
    %2598 = vmatpush1.bf16.msra.mxu0 %v2579
    %2599 = vmatprep.subr.bf16.mxu0 0
    %2600 = vmatpush1.bf16.msra.mxu0 %v2580
    %2601 = vmatprep.subr.bf16.mxu0 0
    %2602 = vmatpush1.bf16.msra.mxu0 %v2581
    %2603 = vmatprep.subr.bf16.mxu0 0
    %2604 = vmatpush1.bf16.msra.mxu0 %v2582
    %2605 = vmatprep.subr.bf16.mxu0 0
    %2606 = vmatpush1.bf16.msra.mxu0 %v2583
    %2607 = vmatprep.subr.bf16.mxu0 0
    %2608 = vmatpush1.bf16.msra.mxu0 %v2584
    %2609 = vmatprep.subr.bf16.mxu0 0
    %2610 = vmatpush1.bf16.msra.mxu0 0
    %2611 = vmatprep.subr.bf16.mxu0 0
    %2612 = vmatpush1.bf16.msra.mxu0 0
    %2613 = vmatprep.subr.bf16.mxu0 0
    %2614 = vmatpush1.bf16.msra.mxu0 0
    %2615 = vmatprep.subr.bf16.mxu0 0
    %2616 = vmatpush1.bf16.msra.mxu0 0
    %2617 = vmatprep.subr.bf16.mxu0 0
    %2618 = vmatpush1.bf16.msra.mxu0 0
    %2619 = vmatprep.subr.bf16.mxu0 0
    %2620 = vmatpush1.bf16.msra.mxu0 0
    %2621 = vmatprep.subr.bf16.mxu0 0
    %2622 = vmatpush1.bf16.msra.mxu0 0
    %2623 = vmatprep.subr.bf16.mxu0 0
    %2624 = vmatpush1.bf16.msra.mxu0 0
    %2625 = vmatprep.mubr.bf16.mxu0 0
    %2626 = vmatmul.mubr.bf16.gmra.mrb[0].mxu0 %v2524
    %v2627 = vpop.f32.mrb[0].mxu0
    %v2628 = vadd.f32 %v2544, %v2627
    %v2629 = vpop.f32.mrb[0].mxu0
    %v2630 = vpop.f32.mrb[0].mxu0
    %v2631 = vadd.f32 %v2544, %v2630
    %v2632 = vpop.f32.mrb[0].mxu0
    %2633 = vmatprep.mubr.bf16.mxu0 0
    %2634 = vmatmul.mubr.bf16.gmra.mrb[0].mxu0 %v2525
    %v2635 = vpop.f32.mrb[0].mxu0
    %v2636 = vadd.f32 %v2544, %v2635
    %v2637 = vpop.f32.mrb[0].mxu0
    %v2638 = vpop.f32.mrb[0].mxu0
    %v2639 = vadd.f32 %v2544, %v2638
    %v2640 = vpop.f32.mrb[0].mxu0
    %2641 = vmatprep.mubr.bf16.mxu0 0
    %2642 = vmatmul.mubr.bf16.gmra.mrb[0].mxu0 %v2526
    %v2643 = vpop.f32.mrb[0].mxu0
    %v2644 = vadd.f32 %v2544, %v2643
    %v2645 = vpop.f32.mrb[0].mxu0
    %v2646 = vpop.f32.mrb[0].mxu0
    %v2647 = vadd.f32 %v2544, %v2646
    %v2648 = vpop.f32.mrb[0].mxu0
    %2649 = vmatprep.mubr.bf16.mxu0 0
    %2650 = vmatmul.mubr.bf16.gmra.mrb[0].mxu0 %v2527
    %v2651 = vpop.f32.mrb[0].mxu0
    %v2652 = vadd.f32 %v2544, %v2651
    %v2653 = vpop.f32.mrb[0].mxu0
    %v2654 = vpop.f32.mrb[0].mxu0
    %v2655 = vadd.f32 %v2544, %v2654
    %v2656 = vpop.f32.mrb[0].mxu0
    %2657 = vdwg.mxu0
    %s2658 = scalar_lea.vmem %s4, 64
    %2659 = vst [vmem:[%s2658] sm:$0xff] %v2628
    %2660 = vst [vmem:[%s2658 + $0x8] sm:$0xff] %v2631
    %2661 = vst [vmem:[%s2658 + $0x10] sm:$0xff] %v2636
    %2662 = vst [vmem:[%s2658 + $0x18] sm:$0xff] %v2639
    %2663 = vst [vmem:[%s2658 + $0x20] sm:$0xff] %v2644
    %2664 = vst [vmem:[%s2658 + $0x28] sm:$0xff] %v2647
    %2665 = vst [vmem:[%s2658 + $0x30] sm:$0xff] %v2652
    %2666 = vst [vmem:[%s2658 + $0x38] sm:$0xff] %v2655
    %v2667 = vld [vmem:[#allocation2] sm:$0xff]
    %v2668 = vld [vmem:[#allocation2 + $0x8] sm:$0xff]
    %v2669 = vld [vmem:[#allocation2 + $0x10] sm:$0xff]
    %v2670 = vld [vmem:[#allocation2 + $0x18] sm:$0xff]
    %v2671 = vld [vmem:[#allocation2 + $0x20] sm:$0xff]
    %v2672 = vld [vmem:[#allocation2 + $0x28] sm:$0xff]
    %v2673 = vld [vmem:[#allocation2 + $0x30] sm:$0xff]
    %v2674 = vld [vmem:[#allocation2 + $0x38] sm:$0xff]
    %v2675 = vpack.c.bf16 %v2668, %v2667
    %v2676 = vpack.c.bf16 %v2670, %v2669
    %v2677 = vpack.c.bf16 %v2672, %v2671
    %v2678 = vpack.c.bf16 %v2674, %v2673
    %v2679 = vld [vmem:[#allocation4] sm:$0xff]
    %v2680 = vld [vmem:[#allocation4 + $0x8] sm:$0xff]
    %v2681 = vld [vmem:[#allocation4 + $0x10] sm:$0xff]
    %v2682 = vld [vmem:[#allocation4 + $0x18] sm:$0xff]
    %v2683 = vld [vmem:[#allocation4 + $0x20] sm:$0xff]
    %v2684 = vld [vmem:[#allocation4 + $0x28] sm:$0xff]
    %v2685 = vld [vmem:[#allocation4 + $0x30] sm:$0xff]
    %v2686 = vld [vmem:[#allocation4 + $0x38] sm:$0xff]
    %v2687 = vld [vmem:[#allocation4 + $0x40] sm:$0xff]
    %v2688 = vld [vmem:[#allocation4 + $0x48] sm:$0xff]
    %v2689 = vld [vmem:[#allocation4 + $0x50] sm:$0xff]
    %v2690 = vld [vmem:[#allocation4 + $0x58] sm:$0xff]
    %v2691 = vld [vmem:[#allocation4 + $0x60] sm:$0xff]
    %v2692 = vld [vmem:[#allocation4 + $0x68] sm:$0xff]
    %v2693 = vld [vmem:[#allocation4 + $0x70] sm:$0xff]
    %v2694 = vld [vmem:[#allocation4 + $0x78] sm:$0xff]
    %v2695 = vld [vmem:[#allocation4 + $0x80] sm:$0xff]
    %v2696 = vld [vmem:[#allocation4 + $0x88] sm:$0xff]
    %v2697 = vld [vmem:[#allocation4 + $0x90] sm:$0xff]
    %v2698 = vld [vmem:[#allocation4 + $0x98] sm:$0xff]
    %v2699 = vld [vmem:[#allocation4 + $0xa0] sm:$0xff]
    %v2700 = vld [vmem:[#allocation4 + $0xa8] sm:$0xff]
    %v2701 = vld [vmem:[#allocation4 + $0xb0] sm:$0xff]
    %v2702 = vld [vmem:[#allocation4 + $0xb8] sm:$0xff]
    %v2703 = vld [vmem:[#allocation4 + $0xc0] sm:$0xff]
    %v2704 = vld [vmem:[#allocation4 + $0xc8] sm:$0xff]
    %v2705 = vld [vmem:[#allocation4 + $0xd0] sm:$0xff]
    %v2706 = vld [vmem:[#allocation4 + $0xd8] sm:$0xff]
    %v2707 = vld [vmem:[#allocation4 + $0xe0] sm:$0xff]
    %v2708 = vld [vmem:[#allocation4 + $0xe8] sm:$0xff]
    %v2709 = vld [vmem:[#allocation4 + $0xf0] sm:$0xff]
    %v2710 = vld [vmem:[#allocation4 + $0xf8] sm:$0xff]
    %v2711 = vld [vmem:[#allocation4 + $0x100] sm:$0xff]
    %v2712 = vld [vmem:[#allocation4 + $0x108] sm:$0xff]
    %v2713 = vld [vmem:[#allocation4 + $0x110] sm:$0xff]
    %v2714 = vld [vmem:[#allocation4 + $0x118] sm:$0xff]
    %v2715 = vld [vmem:[#allocation4 + $0x120] sm:$0xff]
    %v2716 = vld [vmem:[#allocation4 + $0x128] sm:$0xff]
    %v2717 = vld [vmem:[#allocation4 + $0x130] sm:$0xff]
    %v2718 = vld [vmem:[#allocation4 + $0x138] sm:$0xff]
    %v2719 = vld [vmem:[#allocation4 + $0x140] sm:$0xff]
    %v2720 = vld [vmem:[#allocation4 + $0x148] sm:$0xff]
    %v2721 = vld [vmem:[#allocation4 + $0x150] sm:$0xff]
    %v2722 = vld [vmem:[#allocation4 + $0x158] sm:$0xff]
    %v2723 = vld [vmem:[#allocation4 + $0x160] sm:$0xff]
    %v2724 = vld [vmem:[#allocation4 + $0x168] sm:$0xff]
    %v2725 = vld [vmem:[#allocation4 + $0x170] sm:$0xff]
    %v2726 = vld [vmem:[#allocation4 + $0x178] sm:$0xff]
    %v2727 = vld [vmem:[#allocation4 + $0x180] sm:$0xff]
    %v2728 = vld [vmem:[#allocation4 + $0x188] sm:$0xff]
    %v2729 = vld [vmem:[#allocation4 + $0x190] sm:$0xff]
    %v2730 = vld [vmem:[#allocation4 + $0x198] sm:$0xff]
    %v2731 = vld [vmem:[#allocation4 + $0x1a0] sm:$0xff]
    %v2732 = vld [vmem:[#allocation4 + $0x1a8] sm:$0xff]
    %v2733 = vld [vmem:[#allocation4 + $0x1b0] sm:$0xff]
    %v2734 = vld [vmem:[#allocation4 + $0x1b8] sm:$0xff]
    %v2735 = vld [vmem:[#allocation4 + $0x1c0] sm:$0xff]
    %v2736 = vld [vmem:[#allocation4 + $0x1c8] sm:$0xff]
    %v2737 = vld [vmem:[#allocation4 + $0x1d0] sm:$0xff]
    %v2738 = vld [vmem:[#allocation4 + $0x1d8] sm:$0xff]
    %v2739 = vld [vmem:[#allocation4 + $0x1e0] sm:$0xff]
    %v2740 = vld [vmem:[#allocation4 + $0x1e8] sm:$0xff]
    %v2741 = vld [vmem:[#allocation4 + $0x1f0] sm:$0xff]
    %v2742 = vld [vmem:[#allocation4 + $0x1f8] sm:$0xff]
    %v2743 = vld [vmem:[#allocation7] ss:$8 sm:$0xf]
    %v2745 = vlaneseq
    %v2746 = vshrl.u32 %v2745, 7
    %v2747 = vsub.s32 0, %v2746
    %v2748 = vrot.slane %v2743, %v2747
    %v2749 = vlaneseq
    %v2750 = vshrl.u32 %v2749, 7
    %v2751 = vsub.s32 1, %v2750
    %v2752 = vrot.slane %v2743, %v2751
    %v2753 = vlaneseq
    %v2754 = vshrl.u32 %v2753, 7
    %v2755 = vsub.s32 2, %v2754
    %v2756 = vrot.slane %v2743, %v2755
    %v2757 = vlaneseq
    %v2758 = vshrl.u32 %v2757, 7
    %v2759 = vsub.s32 3, %v2758
    %v2760 = vrot.slane %v2743, %v2759
    %v2829 = vunpack.c.l.b16 %v2679
    %v2830 = vunpack.c.h.b16 %v2679
    %v2831 = vunpack.c.l.b16 %v2680
    %v2832 = vunpack.c.h.b16 %v2680
    %v2833 = vunpack.c.l.b16 %v2681
    %v2834 = vunpack.c.h.b16 %v2681
    %v2835 = vunpack.c.l.b16 %v2682
    %v2836 = vunpack.c.h.b16 %v2682
    %v2837 = vunpack.c.l.b16 %v2683
    %v2838 = vunpack.c.h.b16 %v2683
    %v2839 = vunpack.c.l.b16 %v2684
    %v2840 = vunpack.c.h.b16 %v2684
    %v2841 = vunpack.c.l.b16 %v2685
    %v2842 = vunpack.c.h.b16 %v2685
    %v2843 = vunpack.c.l.b16 %v2686
    %v2844 = vunpack.c.h.b16 %v2686
    %v2845 = vunpack.c.l.b16 %v2687
    %v2846 = vunpack.c.h.b16 %v2687
    %v2847 = vunpack.c.l.b16 %v2688
    %v2848 = vunpack.c.h.b16 %v2688
    %v2849 = vunpack.c.l.b16 %v2689
    %v2850 = vunpack.c.h.b16 %v2689
    %v2851 = vunpack.c.l.b16 %v2690
    %v2852 = vunpack.c.h.b16 %v2690
    %v2853 = vunpack.c.l.b16 %v2691
    %v2854 = vunpack.c.h.b16 %v2691
    %v2855 = vunpack.c.l.b16 %v2692
    %v2856 = vunpack.c.h.b16 %v2692
    %v2857 = vunpack.c.l.b16 %v2693
    %v2858 = vunpack.c.h.b16 %v2693
    %v2859 = vunpack.c.l.b16 %v2694
    %v2860 = vunpack.c.h.b16 %v2694
    %v2861 = vunpack.c.l.b16 %v2695
    %v2862 = vunpack.c.h.b16 %v2695
    %v2863 = vunpack.c.l.b16 %v2696
    %v2864 = vunpack.c.h.b16 %v2696
    %v2865 = vunpack.c.l.b16 %v2697
    %v2866 = vunpack.c.h.b16 %v2697
    %v2867 = vunpack.c.l.b16 %v2698
    %v2868 = vunpack.c.h.b16 %v2698
    %v2869 = vunpack.c.l.b16 %v2699
    %v2870 = vunpack.c.h.b16 %v2699
    %v2871 = vunpack.c.l.b16 %v2700
    %v2872 = vunpack.c.h.b16 %v2700
    %v2873 = vunpack.c.l.b16 %v2701
    %v2874 = vunpack.c.h.b16 %v2701
    %v2875 = vunpack.c.l.b16 %v2702
    %v2876 = vunpack.c.h.b16 %v2702
    %v2877 = vunpack.c.l.b16 %v2703
    %v2878 = vunpack.c.h.b16 %v2703
    %v2879 = vunpack.c.l.b16 %v2704
    %v2880 = vunpack.c.h.b16 %v2704
    %v2881 = vunpack.c.l.b16 %v2705
    %v2882 = vunpack.c.h.b16 %v2705
    %v2883 = vunpack.c.l.b16 %v2706
    %v2884 = vunpack.c.h.b16 %v2706
    %v2885 = vunpack.c.l.b16 %v2707
    %v2886 = vunpack.c.h.b16 %v2707
    %v2887 = vunpack.c.l.b16 %v2708
    %v2888 = vunpack.c.h.b16 %v2708
    %v2889 = vunpack.c.l.b16 %v2709
    %v2890 = vunpack.c.h.b16 %v2709
    %v2891 = vunpack.c.l.b16 %v2710
    %v2892 = vunpack.c.h.b16 %v2710
    %v2893 = vunpack.c.l.b16 %v2711
    %v2894 = vunpack.c.h.b16 %v2711
    %v2895 = vunpack.c.l.b16 %v2712
    %v2896 = vunpack.c.h.b16 %v2712
    %v2897 = vunpack.c.l.b16 %v2713
    %v2898 = vunpack.c.h.b16 %v2713
    %v2899 = vunpack.c.l.b16 %v2714
    %v2900 = vunpack.c.h.b16 %v2714
    %v2901 = vunpack.c.l.b16 %v2715
    %v2902 = vunpack.c.h.b16 %v2715
    %v2903 = vunpack.c.l.b16 %v2716
    %v2904 = vunpack.c.h.b16 %v2716
    %v2905 = vunpack.c.l.b16 %v2717
    %v2906 = vunpack.c.h.b16 %v2717
    %v2907 = vunpack.c.l.b16 %v2718
    %v2908 = vunpack.c.h.b16 %v2718
    %v2909 = vunpack.c.l.b16 %v2719
    %v2910 = vunpack.c.h.b16 %v2719
    %v2911 = vunpack.c.l.b16 %v2720
    %v2912 = vunpack.c.h.b16 %v2720
    %v2913 = vunpack.c.l.b16 %v2721
    %v2914 = vunpack.c.h.b16 %v2721
    %v2915 = vunpack.c.l.b16 %v2722
    %v2916 = vunpack.c.h.b16 %v2722
    %v2917 = vunpack.c.l.b16 %v2723
    %v2918 = vunpack.c.h.b16 %v2723
    %v2919 = vunpack.c.l.b16 %v2724
    %v2920 = vunpack.c.h.b16 %v2724
    %v2921 = vunpack.c.l.b16 %v2725
    %v2922 = vunpack.c.h.b16 %v2725
    %v2923 = vunpack.c.l.b16 %v2726
    %v2924 = vunpack.c.h.b16 %v2726
    %v2925 = vunpack.c.l.b16 %v2727
    %v2926 = vunpack.c.h.b16 %v2727
    %v2927 = vunpack.c.l.b16 %v2728
    %v2928 = vunpack.c.h.b16 %v2728
    %v2929 = vunpack.c.l.b16 %v2729
    %v2930 = vunpack.c.h.b16 %v2729
    %v2931 = vunpack.c.l.b16 %v2730
    %v2932 = vunpack.c.h.b16 %v2730
    %v2933 = vunpack.c.l.b16 %v2731
    %v2934 = vunpack.c.h.b16 %v2731
    %v2935 = vunpack.c.l.b16 %v2732
    %v2936 = vunpack.c.h.b16 %v2732
    %v2937 = vunpack.c.l.b16 %v2733
    %v2938 = vunpack.c.h.b16 %v2733
    %v2939 = vunpack.c.l.b16 %v2734
    %v2940 = vunpack.c.h.b16 %v2734
    %v2941 = vunpack.c.l.b16 %v2735
    %v2942 = vunpack.c.h.b16 %v2735
    %v2943 = vunpack.c.l.b16 %v2736
    %v2944 = vunpack.c.h.b16 %v2736
    %v2945 = vunpack.c.l.b16 %v2737
    %v2946 = vunpack.c.h.b16 %v2737
    %v2947 = vunpack.c.l.b16 %v2738
    %v2948 = vunpack.c.h.b16 %v2738
    %v2949 = vunpack.c.l.b16 %v2739
    %v2950 = vunpack.c.h.b16 %v2739
    %v2951 = vunpack.c.l.b16 %v2740
    %v2952 = vunpack.c.h.b16 %v2740
    %v2953 = vunpack.c.l.b16 %v2741
    %v2954 = vunpack.c.h.b16 %v2741
    %v2955 = vunpack.c.l.b16 %v2742
    %v2956 = vunpack.c.h.b16 %v2742
    %v2957 = vpack.c.b16 %v2833, %v2829
    %v2958 = vpack.c.b16 %v2834, %v2830
    %v2959 = vpack.c.b16 %v2835, %v2831
    %v2960 = vpack.c.b16 %v2836, %v2832
    %v2961 = vpack.c.b16 %v2841, %v2837
    %v2962 = vpack.c.b16 %v2842, %v2838
    %v2963 = vpack.c.b16 %v2843, %v2839
    %v2964 = vpack.c.b16 %v2844, %v2840
    %v2965 = vpack.c.b16 %v2849, %v2845
    %v2966 = vpack.c.b16 %v2850, %v2846
    %v2967 = vpack.c.b16 %v2851, %v2847
    %v2968 = vpack.c.b16 %v2852, %v2848
    %v2969 = vpack.c.b16 %v2857, %v2853
    %v2970 = vpack.c.b16 %v2858, %v2854
    %v2971 = vpack.c.b16 %v2859, %v2855
    %v2972 = vpack.c.b16 %v2860, %v2856
    %v2973 = vpack.c.b16 %v2865, %v2861
    %v2974 = vpack.c.b16 %v2866, %v2862
    %v2975 = vpack.c.b16 %v2867, %v2863
    %v2976 = vpack.c.b16 %v2868, %v2864
    %v2977 = vpack.c.b16 %v2873, %v2869
    %v2978 = vpack.c.b16 %v2874, %v2870
    %v2979 = vpack.c.b16 %v2875, %v2871
    %v2980 = vpack.c.b16 %v2876, %v2872
    %v2981 = vpack.c.b16 %v2881, %v2877
    %v2982 = vpack.c.b16 %v2882, %v2878
    %v2983 = vpack.c.b16 %v2883, %v2879
    %v2984 = vpack.c.b16 %v2884, %v2880
    %v2985 = vpack.c.b16 %v2889, %v2885
    %v2986 = vpack.c.b16 %v2890, %v2886
    %v2987 = vpack.c.b16 %v2891, %v2887
    %v2988 = vpack.c.b16 %v2892, %v2888
    %v2989 = vpack.c.b16 %v2897, %v2893
    %v2990 = vpack.c.b16 %v2898, %v2894
    %v2991 = vpack.c.b16 %v2899, %v2895
    %v2992 = vpack.c.b16 %v2900, %v2896
    %v2993 = vpack.c.b16 %v2905, %v2901
    %v2994 = vpack.c.b16 %v2906, %v2902
    %v2995 = vpack.c.b16 %v2907, %v2903
    %v2996 = vpack.c.b16 %v2908, %v2904
    %v2997 = vpack.c.b16 %v2913, %v2909
    %v2998 = vpack.c.b16 %v2914, %v2910
    %v2999 = vpack.c.b16 %v2915, %v2911
    %v3000 = vpack.c.b16 %v2916, %v2912
    %v3001 = vpack.c.b16 %v2921, %v2917
    %v3002 = vpack.c.b16 %v2922, %v2918
    %v3003 = vpack.c.b16 %v2923, %v2919
    %v3004 = vpack.c.b16 %v2924, %v2920
    %v3005 = vpack.c.b16 %v2929, %v2925
    %v3006 = vpack.c.b16 %v2930, %v2926
    %v3007 = vpack.c.b16 %v2931, %v2927
    %v3008 = vpack.c.b16 %v2932, %v2928
    %v3009 = vpack.c.b16 %v2937, %v2933
    %v3010 = vpack.c.b16 %v2938, %v2934
    %v3011 = vpack.c.b16 %v2939, %v2935
    %v3012 = vpack.c.b16 %v2940, %v2936
    %v3013 = vpack.c.b16 %v2945, %v2941
    %v3014 = vpack.c.b16 %v2946, %v2942
    %v3015 = vpack.c.b16 %v2947, %v2943
    %v3016 = vpack.c.b16 %v2948, %v2944
    %v3017 = vpack.c.b16 %v2953, %v2949
    %v3018 = vpack.c.b16 %v2954, %v2950
    %v3019 = vpack.c.b16 %v2955, %v2951
    %v3020 = vpack.c.b16 %v2956, %v2952
    %3085 = vmatprep.subr.bf16.mxu0 %v2958
    %3086 = vmatpush1.bf16.msra.mxu0 %v2957
    %3087 = vmatprep.subr.bf16.mxu0 %v2962
    %3088 = vmatpush1.bf16.msra.mxu0 %v2961
    %3089 = vmatprep.subr.bf16.mxu0 %v2966
    %3090 = vmatpush1.bf16.msra.mxu0 %v2965
    %3091 = vmatprep.subr.bf16.mxu0 %v2970
    %3092 = vmatpush1.bf16.msra.mxu0 %v2969
    %3093 = vmatprep.subr.bf16.mxu0 %v2974
    %3094 = vmatpush1.bf16.msra.mxu0 %v2973
    %3095 = vmatprep.subr.bf16.mxu0 %v2978
    %3096 = vmatpush1.bf16.msra.mxu0 %v2977
    %3097 = vmatprep.subr.bf16.mxu0 %v2982
    %3098 = vmatpush1.bf16.msra.mxu0 %v2981
    %3099 = vmatprep.subr.bf16.mxu0 %v2986
    %3100 = vmatpush1.bf16.msra.mxu0 %v2985
    %3101 = vmatprep.subr.bf16.mxu0 %v2990
    %3102 = vmatpush1.bf16.msra.mxu0 %v2989
    %3103 = vmatprep.subr.bf16.mxu0 %v2994
    %3104 = vmatpush1.bf16.msra.mxu0 %v2993
    %3105 = vmatprep.subr.bf16.mxu0 %v2998
    %3106 = vmatpush1.bf16.msra.mxu0 %v2997
    %3107 = vmatprep.subr.bf16.mxu0 %v3002
    %3108 = vmatpush1.bf16.msra.mxu0 %v3001
    %3109 = vmatprep.subr.bf16.mxu0 %v3006
    %3110 = vmatpush1.bf16.msra.mxu0 %v3005
    %3111 = vmatprep.subr.bf16.mxu0 %v3010
    %3112 = vmatpush1.bf16.msra.mxu0 %v3009
    %3113 = vmatprep.subr.bf16.mxu0 %v3014
    %3114 = vmatpush1.bf16.msra.mxu0 %v3013
    %3115 = vmatprep.subr.bf16.mxu0 %v3018
    %3116 = vmatpush1.bf16.msra.mxu0 %v3017
    %3117 = vmatprep.mubr.bf16.mxu0 %v1824
    %3118 = vmatmul.mubr.bf16.gmra.mrb[0].mxu0 %v2675
    %v3119 = vpop.f32.mrb[0].mxu0
    %v3120 = vadd.f32 %v2748, %v3119
    %v3121 = vpop.f32.mrb[0].mxu0
    %v3122 = vadd.f32 %v2752, %v3121
    %v3123 = vpop.f32.mrb[0].mxu0
    %v3124 = vadd.f32 %v2748, %v3123
    %v3125 = vpop.f32.mrb[0].mxu0
    %v3126 = vadd.f32 %v2752, %v3125
    %3127 = vmatprep.mubr.bf16.mxu0 %v1825
    %3128 = vmatmul.mubr.bf16.gmra.mrb[0].mxu0 %v2676
    %v3129 = vpop.f32.mrb[0].mxu0
    %v3130 = vadd.f32 %v2748, %v3129
    %v3131 = vpop.f32.mrb[0].mxu0
    %v3132 = vadd.f32 %v2752, %v3131
    %v3133 = vpop.f32.mrb[0].mxu0
    %v3134 = vadd.f32 %v2748, %v3133
    %v3135 = vpop.f32.mrb[0].mxu0
    %v3136 = vadd.f32 %v2752, %v3135
    %3137 = vmatprep.mubr.bf16.mxu0 %v1826
    %3138 = vmatmul.mubr.bf16.gmra.mrb[0].mxu0 %v2677
    %v3139 = vpop.f32.mrb[0].mxu0
    %v3140 = vadd.f32 %v2748, %v3139
    %v3141 = vpop.f32.mrb[0].mxu0
    %v3142 = vadd.f32 %v2752, %v3141
    %v3143 = vpop.f32.mrb[0].mxu0
    %v3144 = vadd.f32 %v2748, %v3143
    %v3145 = vpop.f32.mrb[0].mxu0
    %v3146 = vadd.f32 %v2752, %v3145
    %3147 = vmatprep.mubr.bf16.mxu0 %v1827
    %3148 = vmatmul.mubr.bf16.gmra.mrb[0].mxu0 %v2678
    %v3149 = vpop.f32.mrb[0].mxu0
    %v3150 = vadd.f32 %v2748, %v3149
    %v3151 = vpop.f32.mrb[0].mxu0
    %v3152 = vadd.f32 %v2752, %v3151
    %v3153 = vpop.f32.mrb[0].mxu0
    %v3154 = vadd.f32 %v2748, %v3153
    %v3155 = vpop.f32.mrb[0].mxu0
    %v3156 = vadd.f32 %v2752, %v3155
    %3157 = vdwg.mxu0
    %3158 = vmatprep.subr.bf16.mxu0 %v2960
    %3159 = vmatpush1.bf16.msra.mxu0 %v2959
    %3160 = vmatprep.subr.bf16.mxu0 %v2964
    %3161 = vmatpush1.bf16.msra.mxu0 %v2963
    %3162 = vmatprep.subr.bf16.mxu0 %v2968
    %3163 = vmatpush1.bf16.msra.mxu0 %v2967
    %3164 = vmatprep.subr.bf16.mxu0 %v2972
    %3165 = vmatpush1.bf16.msra.mxu0 %v2971
    %3166 = vmatprep.subr.bf16.mxu0 %v2976
    %3167 = vmatpush1.bf16.msra.mxu0 %v2975
    %3168 = vmatprep.subr.bf16.mxu0 %v2980
    %3169 = vmatpush1.bf16.msra.mxu0 %v2979
    %3170 = vmatprep.subr.bf16.mxu0 %v2984
    %3171 = vmatpush1.bf16.msra.mxu0 %v2983
    %3172 = vmatprep.subr.bf16.mxu0 %v2988
    %3173 = vmatpush1.bf16.msra.mxu0 %v2987
    %3174 = vmatprep.subr.bf16.mxu0 %v2992
    %3175 = vmatpush1.bf16.msra.mxu0 %v2991
    %3176 = vmatprep.subr.bf16.mxu0 %v2996
    %3177 = vmatpush1.bf16.msra.mxu0 %v2995
    %3178 = vmatprep.subr.bf16.mxu0 %v3000
    %3179 = vmatpush1.bf16.msra.mxu0 %v2999
    %3180 = vmatprep.subr.bf16.mxu0 %v3004
    %3181 = vmatpush1.bf16.msra.mxu0 %v3003
    %3182 = vmatprep.subr.bf16.mxu0 %v3008
    %3183 = vmatpush1.bf16.msra.mxu0 %v3007
    %3184 = vmatprep.subr.bf16.mxu0 %v3012
    %3185 = vmatpush1.bf16.msra.mxu0 %v3011
    %3186 = vmatprep.subr.bf16.mxu0 %v3016
    %3187 = vmatpush1.bf16.msra.mxu0 %v3015
    %3188 = vmatprep.subr.bf16.mxu0 %v3020
    %3189 = vmatpush1.bf16.msra.mxu0 %v3019
    %3190 = vmatprep.mubr.bf16.mxu0 %v1824
    %3191 = vmatmul.mubr.bf16.gmra.mrb[0].mxu0 %v2675
    %v3192 = vpop.f32.mrb[0].mxu0
    %v3193 = vadd.f32 %v2756, %v3192
    %v3194 = vpop.f32.mrb[0].mxu0
    %v3195 = vadd.f32 %v2760, %v3194
    %v3196 = vpop.f32.mrb[0].mxu0
    %v3197 = vadd.f32 %v2756, %v3196
    %v3198 = vpop.f32.mrb[0].mxu0
    %v3199 = vadd.f32 %v2760, %v3198
    %3200 = vmatprep.mubr.bf16.mxu0 %v1825
    %3201 = vmatmul.mubr.bf16.gmra.mrb[0].mxu0 %v2676
    %v3202 = vpop.f32.mrb[0].mxu0
    %v3203 = vadd.f32 %v2756, %v3202
    %v3204 = vpop.f32.mrb[0].mxu0
    %v3205 = vadd.f32 %v2760, %v3204
    %v3206 = vpop.f32.mrb[0].mxu0
    %v3207 = vadd.f32 %v2756, %v3206
    %v3208 = vpop.f32.mrb[0].mxu0
    %v3209 = vadd.f32 %v2760, %v3208
    %3210 = vmatprep.mubr.bf16.mxu0 %v1826
    %3211 = vmatmul.mubr.bf16.gmra.mrb[0].mxu0 %v2677
    %v3212 = vpop.f32.mrb[0].mxu0
    %v3213 = vadd.f32 %v2756, %v3212
    %v3214 = vpop.f32.mrb[0].mxu0
    %v3215 = vadd.f32 %v2760, %v3214
    %v3216 = vpop.f32.mrb[0].mxu0
    %v3217 = vadd.f32 %v2756, %v3216
    %v3218 = vpop.f32.mrb[0].mxu0
    %v3219 = vadd.f32 %v2760, %v3218
    %3220 = vmatprep.mubr.bf16.mxu0 %v1827
    %3221 = vmatmul.mubr.bf16.gmra.mrb[0].mxu0 %v2678
    %v3222 = vpop.f32.mrb[0].mxu0
    %v3223 = vadd.f32 %v2756, %v3222
    %v3224 = vpop.f32.mrb[0].mxu0
    %v3225 = vadd.f32 %v2760, %v3224
    %v3226 = vpop.f32.mrb[0].mxu0
    %v3227 = vadd.f32 %v2756, %v3226
    %v3228 = vpop.f32.mrb[0].mxu0
    %v3229 = vadd.f32 %v2760, %v3228
    %3230 = vdwg.mxu0
    %v3231 = vmul.f32 %v3120, 0.5
    %v3232 = vmul.f32 %v3124, 0.5
    %v3233 = vmul.f32 %v3130, 0.5
    %v3234 = vmul.f32 %v3134, 0.5
    %v3235 = vmul.f32 %v3140, 0.5
    %v3236 = vmul.f32 %v3144, 0.5
    %v3237 = vmul.f32 %v3150, 0.5
    %v3238 = vmul.f32 %v3154, 0.5
    %v3239 = vtanh.pop %v3231
    %v3240 = vtanh.pop %v3232
    %v3241 = vtanh.pop %v3233
    %v3242 = vtanh.pop %v3234
    %v3243 = vtanh.pop %v3235
    %v3244 = vtanh.pop %v3236
    %v3245 = vtanh.pop %v3237
    %v3246 = vtanh.pop %v3238
    %v3247 = vmul.f32 %v3239, 0.5
    %v3248 = vmul.f32 %v3240, 0.5
    %v3249 = vmul.f32 %v3241, 0.5
    %v3250 = vmul.f32 %v3242, 0.5
    %v3251 = vmul.f32 %v3243, 0.5
    %v3252 = vmul.f32 %v3244, 0.5
    %v3253 = vmul.f32 %v3245, 0.5
    %v3254 = vmul.f32 %v3246, 0.5
    %v3255 = vadd.f32 %v3247, 0.5
    %v3256 = vadd.f32 %v3248, 0.5
    %v3257 = vadd.f32 %v3249, 0.5
    %v3258 = vadd.f32 %v3250, 0.5
    %v3259 = vadd.f32 %v3251, 0.5
    %v3260 = vadd.f32 %v3252, 0.5
    %v3261 = vadd.f32 %v3253, 0.5
    %v3262 = vadd.f32 %v3254, 0.5
    %v3263 = vtanh.pop %v3193
    %v3264 = vtanh.pop %v3197
    %v3265 = vtanh.pop %v3203
    %v3266 = vtanh.pop %v3207
    %v3267 = vtanh.pop %v3213
    %v3268 = vtanh.pop %v3217
    %v3269 = vtanh.pop %v3223
    %v3270 = vtanh.pop %v3227
    %v3271 = vmul.f32 %v3195, 0.5
    %v3272 = vmul.f32 %v3199, 0.5
    %v3273 = vmul.f32 %v3205, 0.5
    %v3274 = vmul.f32 %v3209, 0.5
    %v3275 = vmul.f32 %v3215, 0.5
    %v3276 = vmul.f32 %v3219, 0.5
    %v3277 = vmul.f32 %v3225, 0.5
    %v3278 = vmul.f32 %v3229, 0.5
    %v3279 = vtanh.pop %v3271
    %v3280 = vtanh.pop %v3272
    %v3281 = vtanh.pop %v3273
    %v3282 = vtanh.pop %v3274
    %v3283 = vtanh.pop %v3275
    %v3284 = vtanh.pop %v3276
    %v3285 = vtanh.pop %v3277
    %v3286 = vtanh.pop %v3278
    %v3287 = vmul.f32 %v3279, 0.5
    %v3288 = vmul.f32 %v3280, 0.5
    %v3289 = vmul.f32 %v3281, 0.5
    %v3290 = vmul.f32 %v3282, 0.5
    %v3291 = vmul.f32 %v3283, 0.5
    %v3292 = vmul.f32 %v3284, 0.5
    %v3293 = vmul.f32 %v3285, 0.5
    %v3294 = vmul.f32 %v3286, 0.5
    %v3295 = vadd.f32 %v3287, 0.5
    %v3296 = vadd.f32 %v3288, 0.5
    %v3297 = vadd.f32 %v3289, 0.5
    %v3298 = vadd.f32 %v3290, 0.5
    %v3299 = vadd.f32 %v3291, 0.5
    %v3300 = vadd.f32 %v3292, 0.5
    %v3301 = vadd.f32 %v3293, 0.5
    %v3302 = vadd.f32 %v3294, 0.5
    %v3303 = vmul.f32 %v3122, 0.5
    %v3304 = vmul.f32 %v3126, 0.5
    %v3305 = vmul.f32 %v3132, 0.5
    %v3306 = vmul.f32 %v3136, 0.5
    %v3307 = vmul.f32 %v3142, 0.5
    %v3308 = vmul.f32 %v3146, 0.5
    %v3309 = vmul.f32 %v3152, 0.5
    %v3310 = vmul.f32 %v3156, 0.5
    %v3311 = vtanh.pop %v3303
    %v3312 = vtanh.pop %v3304
    %v3313 = vtanh.pop %v3305
    %v3314 = vtanh.pop %v3306
    %v3315 = vtanh.pop %v3307
    %v3316 = vtanh.pop %v3308
    %v3317 = vtanh.pop %v3309
    %v3318 = vtanh.pop %v3310
    %v3319 = vmul.f32 %v3311, 0.5
    %v3320 = vmul.f32 %v3312, 0.5
    %v3321 = vmul.f32 %v3313, 0.5
    %v3322 = vmul.f32 %v3314, 0.5
    %v3323 = vmul.f32 %v3315, 0.5
    %v3324 = vmul.f32 %v3316, 0.5
    %v3325 = vmul.f32 %v3317, 0.5
    %v3326 = vmul.f32 %v3318, 0.5
    %v3327 = vadd.f32 %v3319, 0.5
    %v3328 = vadd.f32 %v3320, 0.5
    %v3329 = vadd.f32 %v3321, 0.5
    %v3330 = vadd.f32 %v3322, 0.5
    %v3331 = vadd.f32 %v3323, 0.5
    %v3332 = vadd.f32 %v3324, 0.5
    %v3333 = vadd.f32 %v3325, 0.5
    %v3334 = vadd.f32 %v3326, 0.5
    %v3335 = vmul.f32 %v3327, %v1800
    %v3336 = vmul.f32 %v3328, %v1801
    %v3337 = vmul.f32 %v3329, %v1802
    %v3338 = vmul.f32 %v3330, %v1803
    %v3339 = vmul.f32 %v3331, %v1804
    %v3340 = vmul.f32 %v3332, %v1805
    %v3341 = vmul.f32 %v3333, %v1806
    %v3342 = vmul.f32 %v3334, %v1807
    %v3343 = vmul.f32 %v3255, %v3263
    %v3344 = vmul.f32 %v3256, %v3264
    %v3345 = vmul.f32 %v3257, %v3265
    %v3346 = vmul.f32 %v3258, %v3266
    %v3347 = vmul.f32 %v3259, %v3267
    %v3348 = vmul.f32 %v3260, %v3268
    %v3349 = vmul.f32 %v3261, %v3269
    %v3350 = vmul.f32 %v3262, %v3270
    %v3351 = vadd.f32 %v3335, %v3343
    %v3352 = vadd.f32 %v3336, %v3344
    %v3353 = vadd.f32 %v3337, %v3345
    %v3354 = vadd.f32 %v3338, %v3346
    %v3355 = vadd.f32 %v3339, %v3347
    %v3356 = vadd.f32 %v3340, %v3348
    %v3357 = vadd.f32 %v3341, %v3349
    %v3358 = vadd.f32 %v3342, %v3350
    %v3359 = vtanh.pop %v3351
    %v3360 = vtanh.pop %v3352
    %v3361 = vtanh.pop %v3353
    %v3362 = vtanh.pop %v3354
    %v3363 = vtanh.pop %v3355
    %v3364 = vtanh.pop %v3356
    %v3365 = vtanh.pop %v3357
    %v3366 = vtanh.pop %v3358
    %v3367 = vmul.f32 %v3295, %v3359
    %v3368 = vmul.f32 %v3296, %v3360
    %v3369 = vmul.f32 %v3297, %v3361
    %v3370 = vmul.f32 %v3298, %v3362
    %v3371 = vmul.f32 %v3299, %v3363
    %v3372 = vmul.f32 %v3300, %v3364
    %v3373 = vmul.f32 %v3301, %v3365
    %v3374 = vmul.f32 %v3302, %v3366
    %v3375 = vpack.c.bf16 %v3368, %v3367
    %v3376 = vpack.c.bf16 %v3370, %v3369
    %v3377 = vpack.c.bf16 %v3372, %v3371
    %v3378 = vpack.c.bf16 %v3374, %v3373
    %v3379 = vld [vmem:[#allocation4 + $0x200] sm:$0xff]
    %v3380 = vld [vmem:[#allocation4 + $0x208] sm:$0xff]
    %v3381 = vld [vmem:[#allocation4 + $0x210] sm:$0xff]
    %v3382 = vld [vmem:[#allocation4 + $0x218] sm:$0xff]
    %v3383 = vld [vmem:[#allocation4 + $0x220] sm:$0xff]
    %v3384 = vld [vmem:[#allocation4 + $0x228] sm:$0xff]
    %v3385 = vld [vmem:[#allocation4 + $0x230] sm:$0xff]
    %v3386 = vld [vmem:[#allocation4 + $0x238] sm:$0xff]
    %v3387 = vld [vmem:[#allocation4 + $0x240] sm:$0xff]
    %v3388 = vld [vmem:[#allocation4 + $0x248] sm:$0xff]
    %v3389 = vld [vmem:[#allocation4 + $0x250] sm:$0xff]
    %v3390 = vld [vmem:[#allocation4 + $0x258] sm:$0xff]
    %v3391 = vld [vmem:[#allocation4 + $0x260] sm:$0xff]
    %v3392 = vld [vmem:[#allocation4 + $0x268] sm:$0xff]
    %v3393 = vld [vmem:[#allocation4 + $0x270] sm:$0xff]
    %v3394 = vld [vmem:[#allocation4 + $0x278] sm:$0xff]
    %v3395 = vld [vmem:[#allocation4 + $0x280] sm:$0xff]
    %v3396 = vld [vmem:[#allocation4 + $0x288] sm:$0xff]
    %v3397 = vld [vmem:[#allocation4 + $0x290] sm:$0xff]
    %v3398 = vld [vmem:[#allocation4 + $0x298] sm:$0xff]
    %v3399 = vld [vmem:[#allocation4 + $0x2a0] sm:$0xff]
    %v3400 = vld [vmem:[#allocation4 + $0x2a8] sm:$0xff]
    %v3401 = vld [vmem:[#allocation4 + $0x2b0] sm:$0xff]
    %v3402 = vld [vmem:[#allocation4 + $0x2b8] sm:$0xff]
    %v3403 = vld [vmem:[#allocation4 + $0x2c0] sm:$0xff]
    %v3404 = vld [vmem:[#allocation4 + $0x2c8] sm:$0xff]
    %v3405 = vld [vmem:[#allocation4 + $0x2d0] sm:$0xff]
    %v3406 = vld [vmem:[#allocation4 + $0x2d8] sm:$0xff]
    %v3407 = vld [vmem:[#allocation4 + $0x2e0] sm:$0xff]
    %v3408 = vld [vmem:[#allocation4 + $0x2e8] sm:$0xff]
    %v3409 = vld [vmem:[#allocation4 + $0x2f0] sm:$0xff]
    %v3410 = vld [vmem:[#allocation4 + $0x2f8] sm:$0xff]
    %v3411 = vld [vmem:[#allocation4 + $0x300] sm:$0xff]
    %v3412 = vld [vmem:[#allocation4 + $0x308] sm:$0xff]
    %v3413 = vld [vmem:[#allocation4 + $0x310] sm:$0xff]
    %v3414 = vld [vmem:[#allocation4 + $0x318] sm:$0xff]
    %v3415 = vld [vmem:[#allocation4 + $0x320] sm:$0xff]
    %v3416 = vld [vmem:[#allocation4 + $0x328] sm:$0xff]
    %v3417 = vld [vmem:[#allocation4 + $0x330] sm:$0xff]
    %v3418 = vld [vmem:[#allocation4 + $0x338] sm:$0xff]
    %v3419 = vld [vmem:[#allocation4 + $0x340] sm:$0xff]
    %v3420 = vld [vmem:[#allocation4 + $0x348] sm:$0xff]
    %v3421 = vld [vmem:[#allocation4 + $0x350] sm:$0xff]
    %v3422 = vld [vmem:[#allocation4 + $0x358] sm:$0xff]
    %v3423 = vld [vmem:[#allocation4 + $0x360] sm:$0xff]
    %v3424 = vld [vmem:[#allocation4 + $0x368] sm:$0xff]
    %v3425 = vld [vmem:[#allocation4 + $0x370] sm:$0xff]
    %v3426 = vld [vmem:[#allocation4 + $0x378] sm:$0xff]
    %v3427 = vld [vmem:[#allocation4 + $0x380] sm:$0xff]
    %v3428 = vld [vmem:[#allocation4 + $0x388] sm:$0xff]
    %v3429 = vld [vmem:[#allocation4 + $0x390] sm:$0xff]
    %v3430 = vld [vmem:[#allocation4 + $0x398] sm:$0xff]
    %v3431 = vld [vmem:[#allocation4 + $0x3a0] sm:$0xff]
    %v3432 = vld [vmem:[#allocation4 + $0x3a8] sm:$0xff]
    %v3433 = vld [vmem:[#allocation4 + $0x3b0] sm:$0xff]
    %v3434 = vld [vmem:[#allocation4 + $0x3b8] sm:$0xff]
    %v3435 = vld [vmem:[#allocation4 + $0x3c0] sm:$0xff]
    %v3436 = vld [vmem:[#allocation4 + $0x3c8] sm:$0xff]
    %v3437 = vld [vmem:[#allocation4 + $0x3d0] sm:$0xff]
    %v3438 = vld [vmem:[#allocation4 + $0x3d8] sm:$0xff]
    %v3439 = vld [vmem:[#allocation4 + $0x3e0] sm:$0xff]
    %v3440 = vld [vmem:[#allocation4 + $0x3e8] sm:$0xff]
    %v3441 = vld [vmem:[#allocation4 + $0x3f0] sm:$0xff]
    %v3442 = vld [vmem:[#allocation4 + $0x3f8] sm:$0xff]
    %v3443 = vld [vmem:[%s562] ss:$8 sm:$0xf]
    %v3445 = vlaneseq
    %v3446 = vshrl.u32 %v3445, 7
    %v3447 = vsub.s32 0, %v3446
    %v3448 = vrot.slane %v3443, %v3447
    %v3449 = vlaneseq
    %v3450 = vshrl.u32 %v3449, 7
    %v3451 = vsub.s32 1, %v3450
    %v3452 = vrot.slane %v3443, %v3451
    %v3453 = vlaneseq
    %v3454 = vshrl.u32 %v3453, 7
    %v3455 = vsub.s32 2, %v3454
    %v3456 = vrot.slane %v3443, %v3455
    %v3457 = vlaneseq
    %v3458 = vshrl.u32 %v3457, 7
    %v3459 = vsub.s32 3, %v3458
    %v3460 = vrot.slane %v3443, %v3459
    %v3529 = vunpack.c.l.b16 %v3379
    %v3530 = vunpack.c.h.b16 %v3379
    %v3531 = vunpack.c.l.b16 %v3380
    %v3532 = vunpack.c.h.b16 %v3380
    %v3533 = vunpack.c.l.b16 %v3381
    %v3534 = vunpack.c.h.b16 %v3381
    %v3535 = vunpack.c.l.b16 %v3382
    %v3536 = vunpack.c.h.b16 %v3382
    %v3537 = vunpack.c.l.b16 %v3383
    %v3538 = vunpack.c.h.b16 %v3383
    %v3539 = vunpack.c.l.b16 %v3384
    %v3540 = vunpack.c.h.b16 %v3384
    %v3541 = vunpack.c.l.b16 %v3385
    %v3542 = vunpack.c.h.b16 %v3385
    %v3543 = vunpack.c.l.b16 %v3386
    %v3544 = vunpack.c.h.b16 %v3386
    %v3545 = vunpack.c.l.b16 %v3387
    %v3546 = vunpack.c.h.b16 %v3387
    %v3547 = vunpack.c.l.b16 %v3388
    %v3548 = vunpack.c.h.b16 %v3388
    %v3549 = vunpack.c.l.b16 %v3389
    %v3550 = vunpack.c.h.b16 %v3389
    %v3551 = vunpack.c.l.b16 %v3390
    %v3552 = vunpack.c.h.b16 %v3390
    %v3553 = vunpack.c.l.b16 %v3391
    %v3554 = vunpack.c.h.b16 %v3391
    %v3555 = vunpack.c.l.b16 %v3392
    %v3556 = vunpack.c.h.b16 %v3392
    %v3557 = vunpack.c.l.b16 %v3393
    %v3558 = vunpack.c.h.b16 %v3393
    %v3559 = vunpack.c.l.b16 %v3394
    %v3560 = vunpack.c.h.b16 %v3394
    %v3561 = vunpack.c.l.b16 %v3395
    %v3562 = vunpack.c.h.b16 %v3395
    %v3563 = vunpack.c.l.b16 %v3396
    %v3564 = vunpack.c.h.b16 %v3396
    %v3565 = vunpack.c.l.b16 %v3397
    %v3566 = vunpack.c.h.b16 %v3397
    %v3567 = vunpack.c.l.b16 %v3398
    %v3568 = vunpack.c.h.b16 %v3398
    %v3569 = vunpack.c.l.b16 %v3399
    %v3570 = vunpack.c.h.b16 %v3399
    %v3571 = vunpack.c.l.b16 %v3400
    %v3572 = vunpack.c.h.b16 %v3400
    %v3573 = vunpack.c.l.b16 %v3401
    %v3574 = vunpack.c.h.b16 %v3401
    %v3575 = vunpack.c.l.b16 %v3402
    %v3576 = vunpack.c.h.b16 %v3402
    %v3577 = vunpack.c.l.b16 %v3403
    %v3578 = vunpack.c.h.b16 %v3403
    %v3579 = vunpack.c.l.b16 %v3404
    %v3580 = vunpack.c.h.b16 %v3404
    %v3581 = vunpack.c.l.b16 %v3405
    %v3582 = vunpack.c.h.b16 %v3405
    %v3583 = vunpack.c.l.b16 %v3406
    %v3584 = vunpack.c.h.b16 %v3406
    %v3585 = vunpack.c.l.b16 %v3407
    %v3586 = vunpack.c.h.b16 %v3407
    %v3587 = vunpack.c.l.b16 %v3408
    %v3588 = vunpack.c.h.b16 %v3408
    %v3589 = vunpack.c.l.b16 %v3409
    %v3590 = vunpack.c.h.b16 %v3409
    %v3591 = vunpack.c.l.b16 %v3410
    %v3592 = vunpack.c.h.b16 %v3410
    %v3593 = vunpack.c.l.b16 %v3411
    %v3594 = vunpack.c.h.b16 %v3411
    %v3595 = vunpack.c.l.b16 %v3412
    %v3596 = vunpack.c.h.b16 %v3412
    %v3597 = vunpack.c.l.b16 %v3413
    %v3598 = vunpack.c.h.b16 %v3413
    %v3599 = vunpack.c.l.b16 %v3414
    %v3600 = vunpack.c.h.b16 %v3414
    %v3601 = vunpack.c.l.b16 %v3415
    %v3602 = vunpack.c.h.b16 %v3415
    %v3603 = vunpack.c.l.b16 %v3416
    %v3604 = vunpack.c.h.b16 %v3416
    %v3605 = vunpack.c.l.b16 %v3417
    %v3606 = vunpack.c.h.b16 %v3417
    %v3607 = vunpack.c.l.b16 %v3418
    %v3608 = vunpack.c.h.b16 %v3418
    %v3609 = vunpack.c.l.b16 %v3419
    %v3610 = vunpack.c.h.b16 %v3419
    %v3611 = vunpack.c.l.b16 %v3420
    %v3612 = vunpack.c.h.b16 %v3420
    %v3613 = vunpack.c.l.b16 %v3421
    %v3614 = vunpack.c.h.b16 %v3421
    %v3615 = vunpack.c.l.b16 %v3422
    %v3616 = vunpack.c.h.b16 %v3422
    %v3617 = vunpack.c.l.b16 %v3423
    %v3618 = vunpack.c.h.b16 %v3423
    %v3619 = vunpack.c.l.b16 %v3424
    %v3620 = vunpack.c.h.b16 %v3424
    %v3621 = vunpack.c.l.b16 %v3425
    %v3622 = vunpack.c.h.b16 %v3425
    %v3623 = vunpack.c.l.b16 %v3426
    %v3624 = vunpack.c.h.b16 %v3426
    %v3625 = vunpack.c.l.b16 %v3427
    %v3626 = vunpack.c.h.b16 %v3427
    %v3627 = vunpack.c.l.b16 %v3428
    %v3628 = vunpack.c.h.b16 %v3428
    %v3629 = vunpack.c.l.b16 %v3429
    %v3630 = vunpack.c.h.b16 %v3429
    %v3631 = vunpack.c.l.b16 %v3430
    %v3632 = vunpack.c.h.b16 %v3430
    %v3633 = vunpack.c.l.b16 %v3431
    %v3634 = vunpack.c.h.b16 %v3431
    %v3635 = vunpack.c.l.b16 %v3432
    %v3636 = vunpack.c.h.b16 %v3432
    %v3637 = vunpack.c.l.b16 %v3433
    %v3638 = vunpack.c.h.b16 %v3433
    %v3639 = vunpack.c.l.b16 %v3434
    %v3640 = vunpack.c.h.b16 %v3434
    %v3641 = vunpack.c.l.b16 %v3435
    %v3642 = vunpack.c.h.b16 %v3435
    %v3643 = vunpack.c.l.b16 %v3436
    %v3644 = vunpack.c.h.b16 %v3436
    %v3645 = vunpack.c.l.b16 %v3437
    %v3646 = vunpack.c.h.b16 %v3437
    %v3647 = vunpack.c.l.b16 %v3438
    %v3648 = vunpack.c.h.b16 %v3438
    %v3649 = vunpack.c.l.b16 %v3439
    %v3650 = vunpack.c.h.b16 %v3439
    %v3651 = vunpack.c.l.b16 %v3440
    %v3652 = vunpack.c.h.b16 %v3440
    %v3653 = vunpack.c.l.b16 %v3441
    %v3654 = vunpack.c.h.b16 %v3441
    %v3655 = vunpack.c.l.b16 %v3442
    %v3656 = vunpack.c.h.b16 %v3442
    %v3657 = vpack.c.b16 %v3533, %v3529
    %v3658 = vpack.c.b16 %v3534, %v3530
    %v3659 = vpack.c.b16 %v3535, %v3531
    %v3660 = vpack.c.b16 %v3536, %v3532
    %v3661 = vpack.c.b16 %v3541, %v3537
    %v3662 = vpack.c.b16 %v3542, %v3538
    %v3663 = vpack.c.b16 %v3543, %v3539
    %v3664 = vpack.c.b16 %v3544, %v3540
    %v3665 = vpack.c.b16 %v3549, %v3545
    %v3666 = vpack.c.b16 %v3550, %v3546
    %v3667 = vpack.c.b16 %v3551, %v3547
    %v3668 = vpack.c.b16 %v3552, %v3548
    %v3669 = vpack.c.b16 %v3557, %v3553
    %v3670 = vpack.c.b16 %v3558, %v3554
    %v3671 = vpack.c.b16 %v3559, %v3555
    %v3672 = vpack.c.b16 %v3560, %v3556
    %v3673 = vpack.c.b16 %v3565, %v3561
    %v3674 = vpack.c.b16 %v3566, %v3562
    %v3675 = vpack.c.b16 %v3567, %v3563
    %v3676 = vpack.c.b16 %v3568, %v3564
    %v3677 = vpack.c.b16 %v3573, %v3569
    %v3678 = vpack.c.b16 %v3574, %v3570
    %v3679 = vpack.c.b16 %v3575, %v3571
    %v3680 = vpack.c.b16 %v3576, %v3572
    %v3681 = vpack.c.b16 %v3581, %v3577
    %v3682 = vpack.c.b16 %v3582, %v3578
    %v3683 = vpack.c.b16 %v3583, %v3579
    %v3684 = vpack.c.b16 %v3584, %v3580
    %v3685 = vpack.c.b16 %v3589, %v3585
    %v3686 = vpack.c.b16 %v3590, %v3586
    %v3687 = vpack.c.b16 %v3591, %v3587
    %v3688 = vpack.c.b16 %v3592, %v3588
    %v3689 = vpack.c.b16 %v3597, %v3593
    %v3690 = vpack.c.b16 %v3598, %v3594
    %v3691 = vpack.c.b16 %v3599, %v3595
    %v3692 = vpack.c.b16 %v3600, %v3596
    %v3693 = vpack.c.b16 %v3605, %v3601
    %v3694 = vpack.c.b16 %v3606, %v3602
    %v3695 = vpack.c.b16 %v3607, %v3603
    %v3696 = vpack.c.b16 %v3608, %v3604
    %v3697 = vpack.c.b16 %v3613, %v3609
    %v3698 = vpack.c.b16 %v3614, %v3610
    %v3699 = vpack.c.b16 %v3615, %v3611
    %v3700 = vpack.c.b16 %v3616, %v3612
    %v3701 = vpack.c.b16 %v3621, %v3617
    %v3702 = vpack.c.b16 %v3622, %v3618
    %v3703 = vpack.c.b16 %v3623, %v3619
    %v3704 = vpack.c.b16 %v3624, %v3620
    %v3705 = vpack.c.b16 %v3629, %v3625
    %v3706 = vpack.c.b16 %v3630, %v3626
    %v3707 = vpack.c.b16 %v3631, %v3627
    %v3708 = vpack.c.b16 %v3632, %v3628
    %v3709 = vpack.c.b16 %v3637, %v3633
    %v3710 = vpack.c.b16 %v3638, %v3634
    %v3711 = vpack.c.b16 %v3639, %v3635
    %v3712 = vpack.c.b16 %v3640, %v3636
    %v3713 = vpack.c.b16 %v3645, %v3641
    %v3714 = vpack.c.b16 %v3646, %v3642
    %v3715 = vpack.c.b16 %v3647, %v3643
    %v3716 = vpack.c.b16 %v3648, %v3644
    %v3717 = vpack.c.b16 %v3653, %v3649
    %v3718 = vpack.c.b16 %v3654, %v3650
    %v3719 = vpack.c.b16 %v3655, %v3651
    %v3720 = vpack.c.b16 %v3656, %v3652
    %3785 = vmatprep.subr.bf16.mxu0 %v3658
    %3786 = vmatpush1.bf16.msra.mxu0 %v3657
    %3787 = vmatprep.subr.bf16.mxu0 %v3662
    %3788 = vmatpush1.bf16.msra.mxu0 %v3661
    %3789 = vmatprep.subr.bf16.mxu0 %v3666
    %3790 = vmatpush1.bf16.msra.mxu0 %v3665
    %3791 = vmatprep.subr.bf16.mxu0 %v3670
    %3792 = vmatpush1.bf16.msra.mxu0 %v3669
    %3793 = vmatprep.subr.bf16.mxu0 %v3674
    %3794 = vmatpush1.bf16.msra.mxu0 %v3673
    %3795 = vmatprep.subr.bf16.mxu0 %v3678
    %3796 = vmatpush1.bf16.msra.mxu0 %v3677
    %3797 = vmatprep.subr.bf16.mxu0 %v3682
    %3798 = vmatpush1.bf16.msra.mxu0 %v3681
    %3799 = vmatprep.subr.bf16.mxu0 %v3686
    %3800 = vmatpush1.bf16.msra.mxu0 %v3685
    %3801 = vmatprep.subr.bf16.mxu0 %v3690
    %3802 = vmatpush1.bf16.msra.mxu0 %v3689
    %3803 = vmatprep.subr.bf16.mxu0 %v3694
    %3804 = vmatpush1.bf16.msra.mxu0 %v3693
    %3805 = vmatprep.subr.bf16.mxu0 %v3698
    %3806 = vmatpush1.bf16.msra.mxu0 %v3697
    %3807 = vmatprep.subr.bf16.mxu0 %v3702
    %3808 = vmatpush1.bf16.msra.mxu0 %v3701
    %3809 = vmatprep.subr.bf16.mxu0 %v3706
    %3810 = vmatpush1.bf16.msra.mxu0 %v3705
    %3811 = vmatprep.subr.bf16.mxu0 %v3710
    %3812 = vmatpush1.bf16.msra.mxu0 %v3709
    %3813 = vmatprep.subr.bf16.mxu0 %v3714
    %3814 = vmatpush1.bf16.msra.mxu0 %v3713
    %3815 = vmatprep.subr.bf16.mxu0 %v3718
    %3816 = vmatpush1.bf16.msra.mxu0 %v3717
    %3817 = vmatprep.mubr.bf16.mxu0 %v2524
    %3818 = vmatmul.mubr.bf16.gmra.mrb[0].mxu0 %v3375
    %v3819 = vpop.f32.mrb[0].mxu0
    %v3820 = vadd.f32 %v3448, %v3819
    %v3821 = vpop.f32.mrb[0].mxu0
    %v3822 = vadd.f32 %v3452, %v3821
    %v3823 = vpop.f32.mrb[0].mxu0
    %v3824 = vadd.f32 %v3448, %v3823
    %v3825 = vpop.f32.mrb[0].mxu0
    %v3826 = vadd.f32 %v3452, %v3825
    %3827 = vmatprep.mubr.bf16.mxu0 %v2525
    %3828 = vmatmul.mubr.bf16.gmra.mrb[0].mxu0 %v3376
    %v3829 = vpop.f32.mrb[0].mxu0
    %v3830 = vadd.f32 %v3448, %v3829
    %v3831 = vpop.f32.mrb[0].mxu0
    %v3832 = vadd.f32 %v3452, %v3831
    %v3833 = vpop.f32.mrb[0].mxu0
    %v3834 = vadd.f32 %v3448, %v3833
    %v3835 = vpop.f32.mrb[0].mxu0
    %v3836 = vadd.f32 %v3452, %v3835
    %3837 = vmatprep.mubr.bf16.mxu0 %v2526
    %3838 = vmatmul.mubr.bf16.gmra.mrb[0].mxu0 %v3377
    %v3839 = vpop.f32.mrb[0].mxu0
    %v3840 = vadd.f32 %v3448, %v3839
    %v3841 = vpop.f32.mrb[0].mxu0
    %v3842 = vadd.f32 %v3452, %v3841
    %v3843 = vpop.f32.mrb[0].mxu0
    %v3844 = vadd.f32 %v3448, %v3843
    %v3845 = vpop.f32.mrb[0].mxu0
    %v3846 = vadd.f32 %v3452, %v3845
    %3847 = vmatprep.mubr.bf16.mxu0 %v2527
    %3848 = vmatmul.mubr.bf16.gmra.mrb[0].mxu0 %v3378
    %v3849 = vpop.f32.mrb[0].mxu0
    %v3850 = vadd.f32 %v3448, %v3849
    %v3851 = vpop.f32.mrb[0].mxu0
    %v3852 = vadd.f32 %v3452, %v3851
    %v3853 = vpop.f32.mrb[0].mxu0
    %v3854 = vadd.f32 %v3448, %v3853
    %v3855 = vpop.f32.mrb[0].mxu0
    %v3856 = vadd.f32 %v3452, %v3855
    %3857 = vdwg.mxu0
    %3858 = vmatprep.subr.bf16.mxu0 %v3660
    %3859 = vmatpush1.bf16.msra.mxu0 %v3659
    %3860 = vmatprep.subr.bf16.mxu0 %v3664
    %3861 = vmatpush1.bf16.msra.mxu0 %v3663
    %3862 = vmatprep.subr.bf16.mxu0 %v3668
    %3863 = vmatpush1.bf16.msra.mxu0 %v3667
    %3864 = vmatprep.subr.bf16.mxu0 %v3672
    %3865 = vmatpush1.bf16.msra.mxu0 %v3671
    %3866 = vmatprep.subr.bf16.mxu0 %v3676
    %3867 = vmatpush1.bf16.msra.mxu0 %v3675
    %3868 = vmatprep.subr.bf16.mxu0 %v3680
    %3869 = vmatpush1.bf16.msra.mxu0 %v3679
    %3870 = vmatprep.subr.bf16.mxu0 %v3684
    %3871 = vmatpush1.bf16.msra.mxu0 %v3683
    %3872 = vmatprep.subr.bf16.mxu0 %v3688
    %3873 = vmatpush1.bf16.msra.mxu0 %v3687
    %3874 = vmatprep.subr.bf16.mxu0 %v3692
    %3875 = vmatpush1.bf16.msra.mxu0 %v3691
    %3876 = vmatprep.subr.bf16.mxu0 %v3696
    %3877 = vmatpush1.bf16.msra.mxu0 %v3695
    %3878 = vmatprep.subr.bf16.mxu0 %v3700
    %3879 = vmatpush1.bf16.msra.mxu0 %v3699
    %3880 = vmatprep.subr.bf16.mxu0 %v3704
    %3881 = vmatpush1.bf16.msra.mxu0 %v3703
    %3882 = vmatprep.subr.bf16.mxu0 %v3708
    %3883 = vmatpush1.bf16.msra.mxu0 %v3707
    %3884 = vmatprep.subr.bf16.mxu0 %v3712
    %3885 = vmatpush1.bf16.msra.mxu0 %v3711
    %3886 = vmatprep.subr.bf16.mxu0 %v3716
    %3887 = vmatpush1.bf16.msra.mxu0 %v3715
    %3888 = vmatprep.subr.bf16.mxu0 %v3720
    %3889 = vmatpush1.bf16.msra.mxu0 %v3719
    %3890 = vmatprep.mubr.bf16.mxu0 %v2524
    %3891 = vmatmul.mubr.bf16.gmra.mrb[0].mxu0 %v3375
    %v3892 = vpop.f32.mrb[0].mxu0
    %v3893 = vadd.f32 %v3456, %v3892
    %v3894 = vpop.f32.mrb[0].mxu0
    %v3895 = vadd.f32 %v3460, %v3894
    %v3896 = vpop.f32.mrb[0].mxu0
    %v3897 = vadd.f32 %v3456, %v3896
    %v3898 = vpop.f32.mrb[0].mxu0
    %v3899 = vadd.f32 %v3460, %v3898
    %3900 = vmatprep.mubr.bf16.mxu0 %v2525
    %3901 = vmatmul.mubr.bf16.gmra.mrb[0].mxu0 %v3376
    %v3902 = vpop.f32.mrb[0].mxu0
    %v3903 = vadd.f32 %v3456, %v3902
    %v3904 = vpop.f32.mrb[0].mxu0
    %v3905 = vadd.f32 %v3460, %v3904
    %v3906 = vpop.f32.mrb[0].mxu0
    %v3907 = vadd.f32 %v3456, %v3906
    %v3908 = vpop.f32.mrb[0].mxu0
    %v3909 = vadd.f32 %v3460, %v3908
    %3910 = vmatprep.mubr.bf16.mxu0 %v2526
    %3911 = vmatmul.mubr.bf16.gmra.mrb[0].mxu0 %v3377
    %v3912 = vpop.f32.mrb[0].mxu0
    %v3913 = vadd.f32 %v3456, %v3912
    %v3914 = vpop.f32.mrb[0].mxu0
    %v3915 = vadd.f32 %v3460, %v3914
    %v3916 = vpop.f32.mrb[0].mxu0
    %v3917 = vadd.f32 %v3456, %v3916
    %v3918 = vpop.f32.mrb[0].mxu0
    %v3919 = vadd.f32 %v3460, %v3918
    %3920 = vmatprep.mubr.bf16.mxu0 %v2527
    %3921 = vmatmul.mubr.bf16.gmra.mrb[0].mxu0 %v3378
    %v3922 = vpop.f32.mrb[0].mxu0
    %v3923 = vadd.f32 %v3456, %v3922
    %v3924 = vpop.f32.mrb[0].mxu0
    %v3925 = vadd.f32 %v3460, %v3924
    %v3926 = vpop.f32.mrb[0].mxu0
    %v3927 = vadd.f32 %v3456, %v3926
    %v3928 = vpop.f32.mrb[0].mxu0
    %v3929 = vadd.f32 %v3460, %v3928
    %3930 = vdwg.mxu0
    %v3931 = vmul.f32 %v3820, 0.5
    %v3932 = vmul.f32 %v3824, 0.5
    %v3933 = vmul.f32 %v3830, 0.5
    %v3934 = vmul.f32 %v3834, 0.5
    %v3935 = vmul.f32 %v3840, 0.5
    %v3936 = vmul.f32 %v3844, 0.5
    %v3937 = vmul.f32 %v3850, 0.5
    %v3938 = vmul.f32 %v3854, 0.5
    %v3939 = vtanh.pop %v3931
    %v3940 = vtanh.pop %v3932
    %v3941 = vtanh.pop %v3933
    %v3942 = vtanh.pop %v3934
    %v3943 = vtanh.pop %v3935
    %v3944 = vtanh.pop %v3936
    %v3945 = vtanh.pop %v3937
    %v3946 = vtanh.pop %v3938
    %v3947 = vmul.f32 %v3939, 0.5
    %v3948 = vmul.f32 %v3940, 0.5
    %v3949 = vmul.f32 %v3941, 0.5
    %v3950 = vmul.f32 %v3942, 0.5
    %v3951 = vmul.f32 %v3943, 0.5
    %v3952 = vmul.f32 %v3944, 0.5
    %v3953 = vmul.f32 %v3945, 0.5
    %v3954 = vmul.f32 %v3946, 0.5
    %v3955 = vadd.f32 %v3947, 0.5
    %v3956 = vadd.f32 %v3948, 0.5
    %v3957 = vadd.f32 %v3949, 0.5
    %v3958 = vadd.f32 %v3950, 0.5
    %v3959 = vadd.f32 %v3951, 0.5
    %v3960 = vadd.f32 %v3952, 0.5
    %v3961 = vadd.f32 %v3953, 0.5
    %v3962 = vadd.f32 %v3954, 0.5
    %v3963 = vtanh.pop %v3893
    %v3964 = vtanh.pop %v3897
    %v3965 = vtanh.pop %v3903
    %v3966 = vtanh.pop %v3907
    %v3967 = vtanh.pop %v3913
    %v3968 = vtanh.pop %v3917
    %v3969 = vtanh.pop %v3923
    %v3970 = vtanh.pop %v3927
    %v3971 = vmul.f32 %v3895, 0.5
    %v3972 = vmul.f32 %v3899, 0.5
    %v3973 = vmul.f32 %v3905, 0.5
    %v3974 = vmul.f32 %v3909, 0.5
    %v3975 = vmul.f32 %v3915, 0.5
    %v3976 = vmul.f32 %v3919, 0.5
    %v3977 = vmul.f32 %v3925, 0.5
    %v3978 = vmul.f32 %v3929, 0.5
    %v3979 = vtanh.pop %v3971
    %v3980 = vtanh.pop %v3972
    %v3981 = vtanh.pop %v3973
    %v3982 = vtanh.pop %v3974
    %v3983 = vtanh.pop %v3975
    %v3984 = vtanh.pop %v3976
    %v3985 = vtanh.pop %v3977
    %v3986 = vtanh.pop %v3978
    %v3987 = vmul.f32 %v3979, 0.5
    %v3988 = vmul.f32 %v3980, 0.5
    %v3989 = vmul.f32 %v3981, 0.5
    %v3990 = vmul.f32 %v3982, 0.5
    %v3991 = vmul.f32 %v3983, 0.5
    %v3992 = vmul.f32 %v3984, 0.5
    %v3993 = vmul.f32 %v3985, 0.5
    %v3994 = vmul.f32 %v3986, 0.5
    %v3995 = vadd.f32 %v3987, 0.5
    %v3996 = vadd.f32 %v3988, 0.5
    %v3997 = vadd.f32 %v3989, 0.5
    %v3998 = vadd.f32 %v3990, 0.5
    %v3999 = vadd.f32 %v3991, 0.5
    %v4000 = vadd.f32 %v3992, 0.5
    %v4001 = vadd.f32 %v3993, 0.5
    %v4002 = vadd.f32 %v3994, 0.5
    %v4003 = vmul.f32 %v3822, 0.5
    %v4004 = vmul.f32 %v3826, 0.5
    %v4005 = vmul.f32 %v3832, 0.5
    %v4006 = vmul.f32 %v3836, 0.5
    %v4007 = vmul.f32 %v3842, 0.5
    %v4008 = vmul.f32 %v3846, 0.5
    %v4009 = vmul.f32 %v3852, 0.5
    %v4010 = vmul.f32 %v3856, 0.5
    %v4011 = vtanh.pop %v4003
    %v4012 = vtanh.pop %v4004
    %v4013 = vtanh.pop %v4005
    %v4014 = vtanh.pop %v4006
    %v4015 = vtanh.pop %v4007
    %v4016 = vtanh.pop %v4008
    %v4017 = vtanh.pop %v4009
    %v4018 = vtanh.pop %v4010
    %v4019 = vmul.f32 %v4011, 0.5
    %v4020 = vmul.f32 %v4012, 0.5
    %v4021 = vmul.f32 %v4013, 0.5
    %v4022 = vmul.f32 %v4014, 0.5
    %v4023 = vmul.f32 %v4015, 0.5
    %v4024 = vmul.f32 %v4016, 0.5
    %v4025 = vmul.f32 %v4017, 0.5
    %v4026 = vmul.f32 %v4018, 0.5
    %v4027 = vadd.f32 %v4019, 0.5
    %v4028 = vadd.f32 %v4020, 0.5
    %v4029 = vadd.f32 %v4021, 0.5
    %v4030 = vadd.f32 %v4022, 0.5
    %v4031 = vadd.f32 %v4023, 0.5
    %v4032 = vadd.f32 %v4024, 0.5
    %v4033 = vadd.f32 %v4025, 0.5
    %v4034 = vadd.f32 %v4026, 0.5
    %v4035 = vmul.f32 %v4027, %v2500
    %v4036 = vmul.f32 %v4028, %v2501
    %v4037 = vmul.f32 %v4029, %v2502
    %v4038 = vmul.f32 %v4030, %v2503
    %v4039 = vmul.f32 %v4031, %v2504
    %v4040 = vmul.f32 %v4032, %v2505
    %v4041 = vmul.f32 %v4033, %v2506
    %v4042 = vmul.f32 %v4034, %v2507
    %v4043 = vmul.f32 %v3955, %v3963
    %v4044 = vmul.f32 %v3956, %v3964
    %v4045 = vmul.f32 %v3957, %v3965
    %v4046 = vmul.f32 %v3958, %v3966
    %v4047 = vmul.f32 %v3959, %v3967
    %v4048 = vmul.f32 %v3960, %v3968
    %v4049 = vmul.f32 %v3961, %v3969
    %v4050 = vmul.f32 %v3962, %v3970
    %v4051 = vadd.f32 %v4035, %v4043
    %v4052 = vadd.f32 %v4036, %v4044
    %v4053 = vadd.f32 %v4037, %v4045
    %v4054 = vadd.f32 %v4038, %v4046
    %v4055 = vadd.f32 %v4039, %v4047
    %v4056 = vadd.f32 %v4040, %v4048
    %v4057 = vadd.f32 %v4041, %v4049
    %v4058 = vadd.f32 %v4042, %v4050
    %v4059 = vtanh.pop %v4051
    %v4060 = vtanh.pop %v4052
    %v4061 = vtanh.pop %v4053
    %v4062 = vtanh.pop %v4054
    %v4063 = vtanh.pop %v4055
    %v4064 = vtanh.pop %v4056
    %v4065 = vtanh.pop %v4057
    %v4066 = vtanh.pop %v4058
    %v4067 = vmul.f32 %v3995, %v4059
    %v4068 = vmul.f32 %v3996, %v4060
    %v4069 = vmul.f32 %v3997, %v4061
    %v4070 = vmul.f32 %v3998, %v4062
    %v4071 = vmul.f32 %v3999, %v4063
    %v4072 = vmul.f32 %v4000, %v4064
    %v4073 = vmul.f32 %v4001, %v4065
    %v4074 = vmul.f32 %v4002, %v4066
    %v4075 = vpack.c.bf16 %v4068, %v4067
    %v4076 = vpack.c.bf16 %v4070, %v4069
    %v4077 = vpack.c.bf16 %v4072, %v4071
    %v4078 = vpack.c.bf16 %v4074, %v4073
    %v4079 = vld [vmem:[#allocation6] sm:$0xf]
    %v4080 = vld [vmem:[#allocation6 + $0x4] sm:$0xf]
    %v4081 = vld [vmem:[#allocation6 + $0x8] sm:$0xf]
    %v4082 = vld [vmem:[#allocation6 + $0xc] sm:$0xf]
    %v4083 = vld [vmem:[#allocation6 + $0x10] sm:$0xf]
    %v4084 = vld [vmem:[#allocation6 + $0x14] sm:$0xf]
    %v4085 = vld [vmem:[#allocation6 + $0x18] sm:$0xf]
    %v4086 = vld [vmem:[#allocation6 + $0x1c] sm:$0xf]
    %v4087 = vld [vmem:[#allocation6 + $0x20] sm:$0xf]
    %v4088 = vld [vmem:[#allocation6 + $0x24] sm:$0xf]
    %v4089 = vld [vmem:[#allocation6 + $0x28] sm:$0xf]
    %v4090 = vld [vmem:[#allocation6 + $0x2c] sm:$0xf]
    %v4091 = vld [vmem:[#allocation6 + $0x30] sm:$0xf]
    %v4092 = vld [vmem:[#allocation6 + $0x34] sm:$0xf]
    %v4093 = vld [vmem:[#allocation6 + $0x38] sm:$0xf]
    %v4094 = vld [vmem:[#allocation6 + $0x3c] sm:$0xf]
    %v4095 = vld [vmem:[#allocation7 + $0x2] ss:$0 sm:$0xff]
    %v4112 = vunpack.c.l.b16 %v4079
    %v4113 = vunpack.c.l.b16 %v4080
    %v4114 = vunpack.c.l.b16 %v4081
    %v4115 = vunpack.c.l.b16 %v4082
    %v4116 = vunpack.c.l.b16 %v4083
    %v4117 = vunpack.c.l.b16 %v4084
    %v4118 = vunpack.c.l.b16 %v4085
    %v4119 = vunpack.c.l.b16 %v4086
    %v4120 = vunpack.c.l.b16 %v4087
    %v4121 = vunpack.c.l.b16 %v4088
    %v4122 = vunpack.c.l.b16 %v4089
    %v4123 = vunpack.c.l.b16 %v4090
    %v4124 = vunpack.c.l.b16 %v4091
    %v4125 = vunpack.c.l.b16 %v4092
    %v4126 = vunpack.c.l.b16 %v4093
    %v4127 = vunpack.c.l.b16 %v4094
    %v4128 = vpack.c.b16 %v4113, %v4112
    %v4129 = vpack.c.b16 %v4115, %v4114
    %v4130 = vpack.c.b16 %v4117, %v4116
    %v4131 = vpack.c.b16 %v4119, %v4118
    %v4132 = vpack.c.b16 %v4121, %v4120
    %v4133 = vpack.c.b16 %v4123, %v4122
    %v4134 = vpack.c.b16 %v4125, %v4124
    %v4135 = vpack.c.b16 %v4127, %v4126
    %4144 = vmatprep.subr.bf16.mxu0 0
    %4145 = vmatpush1.bf16.msra.mxu0 %v4128
    %4146 = vmatprep.subr.bf16.mxu0 0
    %4147 = vmatpush1.bf16.msra.mxu0 %v4129
    %4148 = vmatprep.subr.bf16.mxu0 0
    %4149 = vmatpush1.bf16.msra.mxu0 %v4130
    %4150 = vmatprep.subr.bf16.mxu0 0
    %4151 = vmatpush1.bf16.msra.mxu0 %v4131
    %4152 = vmatprep.subr.bf16.mxu0 0
    %4153 = vmatpush1.bf16.msra.mxu0 %v4132
    %4154 = vmatprep.subr.bf16.mxu0 0
    %4155 = vmatpush1.bf16.msra.mxu0 %v4133
    %4156 = vmatprep.subr.bf16.mxu0 0
    %4157 = vmatpush1.bf16.msra.mxu0 %v4134
    %4158 = vmatprep.subr.bf16.mxu0 0
    %4159 = vmatpush1.bf16.msra.mxu0 %v4135
    %4160 = vmatprep.subr.bf16.mxu0 0
    %4161 = vmatpush1.bf16.msra.mxu0 0
    %4162 = vmatprep.subr.bf16.mxu0 0
    %4163 = vmatpush1.bf16.msra.mxu0 0
    %4164 = vmatprep.subr.bf16.mxu0 0
    %4165 = vmatpush1.bf16.msra.mxu0 0
    %4166 = vmatprep.subr.bf16.mxu0 0
    %4167 = vmatpush1.bf16.msra.mxu0 0
    %4168 = vmatprep.subr.bf16.mxu0 0
    %4169 = vmatpush1.bf16.msra.mxu0 0
    %4170 = vmatprep.subr.bf16.mxu0 0
    %4171 = vmatpush1.bf16.msra.mxu0 0
    %4172 = vmatprep.subr.bf16.mxu0 0
    %4173 = vmatpush1.bf16.msra.mxu0 0
    %4174 = vmatprep.subr.bf16.mxu0 0
    %4175 = vmatpush1.bf16.msra.mxu0 0
    %4176 = vmatprep.mubr.bf16.mxu0 0
    %4177 = vmatmul.mubr.bf16.gmra.mrb[0].mxu0 %v4075
    %v4178 = vpop.f32.mrb[0].mxu0
    %v4179 = vadd.f32 %v4095, %v4178
    %v4180 = vpop.f32.mrb[0].mxu0
    %v4181 = vpop.f32.mrb[0].mxu0
    %v4182 = vadd.f32 %v4095, %v4181
    %v4183 = vpop.f32.mrb[0].mxu0
    %4184 = vmatprep.mubr.bf16.mxu0 0
    %4185 = vmatmul.mubr.bf16.gmra.mrb[0].mxu0 %v4076
    %v4186 = vpop.f32.mrb[0].mxu0
    %v4187 = vadd.f32 %v4095, %v4186
    %v4188 = vpop.f32.mrb[0].mxu0
    %v4189 = vpop.f32.mrb[0].mxu0
    %v4190 = vadd.f32 %v4095, %v4189
    %v4191 = vpop.f32.mrb[0].mxu0
    %4192 = vmatprep.mubr.bf16.mxu0 0
    %4193 = vmatmul.mubr.bf16.gmra.mrb[0].mxu0 %v4077
    %v4194 = vpop.f32.mrb[0].mxu0
    %v4195 = vadd.f32 %v4095, %v4194
    %v4196 = vpop.f32.mrb[0].mxu0
    %v4197 = vpop.f32.mrb[0].mxu0
    %v4198 = vadd.f32 %v4095, %v4197
    %v4199 = vpop.f32.mrb[0].mxu0
    %4200 = vmatprep.mubr.bf16.mxu0 0
    %4201 = vmatmul.mubr.bf16.gmra.mrb[0].mxu0 %v4078
    %v4202 = vpop.f32.mrb[0].mxu0
    %v4203 = vadd.f32 %v4095, %v4202
    %v4204 = vpop.f32.mrb[0].mxu0
    %v4205 = vpop.f32.mrb[0].mxu0
    %v4206 = vadd.f32 %v4095, %v4205
    %v4207 = vpop.f32.mrb[0].mxu0
    %4208 = vdwg.mxu0
    %s4209 = scalar_lea.vmem %s4, 128
    %4210 = vst [vmem:[%s4209] sm:$0xff] %v4179
    %4211 = vst [vmem:[%s4209 + $0x8] sm:$0xff] %v4182
    %4212 = vst [vmem:[%s4209 + $0x10] sm:$0xff] %v4187
    %4213 = vst [vmem:[%s4209 + $0x18] sm:$0xff] %v4190
    %4214 = vst [vmem:[%s4209 + $0x20] sm:$0xff] %v4195
    %4215 = vst [vmem:[%s4209 + $0x28] sm:$0xff] %v4198
    %4216 = vst [vmem:[%s4209 + $0x30] sm:$0xff] %v4203
    %4217 = vst [vmem:[%s4209 + $0x38] sm:$0xff] %v4206
    %v4218 = vld [vmem:[#allocation2] sm:$0xff]
    %v4219 = vld [vmem:[#allocation2 + $0x8] sm:$0xff]
    %v4220 = vld [vmem:[#allocation2 + $0x10] sm:$0xff]
    %v4221 = vld [vmem:[#allocation2 + $0x18] sm:$0xff]
    %v4222 = vld [vmem:[#allocation2 + $0x20] sm:$0xff]
    %v4223 = vld [vmem:[#allocation2 + $0x28] sm:$0xff]
    %v4224 = vld [vmem:[#allocation2 + $0x30] sm:$0xff]
    %v4225 = vld [vmem:[#allocation2 + $0x38] sm:$0xff]
    %v4226 = vpack.c.bf16 %v4219, %v4218
    %v4227 = vpack.c.bf16 %v4221, %v4220
    %v4228 = vpack.c.bf16 %v4223, %v4222
    %v4229 = vpack.c.bf16 %v4225, %v4224
    %v4230 = vld [vmem:[#allocation4] sm:$0xff]
    %v4231 = vld [vmem:[#allocation4 + $0x8] sm:$0xff]
    %v4232 = vld [vmem:[#allocation4 + $0x10] sm:$0xff]
    %v4233 = vld [vmem:[#allocation4 + $0x18] sm:$0xff]
    %v4234 = vld [vmem:[#allocation4 + $0x20] sm:$0xff]
    %v4235 = vld [vmem:[#allocation4 + $0x28] sm:$0xff]
    %v4236 = vld [vmem:[#allocation4 + $0x30] sm:$0xff]
    %v4237 = vld [vmem:[#allocation4 + $0x38] sm:$0xff]
    %v4238 = vld [vmem:[#allocation4 + $0x40] sm:$0xff]
    %v4239 = vld [vmem:[#allocation4 + $0x48] sm:$0xff]
    %v4240 = vld [vmem:[#allocation4 + $0x50] sm:$0xff]
    %v4241 = vld [vmem:[#allocation4 + $0x58] sm:$0xff]
    %v4242 = vld [vmem:[#allocation4 + $0x60] sm:$0xff]
    %v4243 = vld [vmem:[#allocation4 + $0x68] sm:$0xff]
    %v4244 = vld [vmem:[#allocation4 + $0x70] sm:$0xff]
    %v4245 = vld [vmem:[#allocation4 + $0x78] sm:$0xff]
    %v4246 = vld [vmem:[#allocation4 + $0x80] sm:$0xff]
    %v4247 = vld [vmem:[#allocation4 + $0x88] sm:$0xff]
    %v4248 = vld [vmem:[#allocation4 + $0x90] sm:$0xff]
    %v4249 = vld [vmem:[#allocation4 + $0x98] sm:$0xff]
    %v4250 = vld [vmem:[#allocation4 + $0xa0] sm:$0xff]
    %v4251 = vld [vmem:[#allocation4 + $0xa8] sm:$0xff]
    %v4252 = vld [vmem:[#allocation4 + $0xb0] sm:$0xff]
    %v4253 = vld [vmem:[#allocation4 + $0xb8] sm:$0xff]
    %v4254 = vld [vmem:[#allocation4 + $0xc0] sm:$0xff]
    %v4255 = vld [vmem:[#allocation4 + $0xc8] sm:$0xff]
    %v4256 = vld [vmem:[#allocation4 + $0xd0] sm:$0xff]
    %v4257 = vld [vmem:[#allocation4 + $0xd8] sm:$0xff]
    %v4258 = vld [vmem:[#allocation4 + $0xe0] sm:$0xff]
    %v4259 = vld [vmem:[#allocation4 + $0xe8] sm:$0xff]
    %v4260 = vld [vmem:[#allocation4 + $0xf0] sm:$0xff]
    %v4261 = vld [vmem:[#allocation4 + $0xf8] sm:$0xff]
    %v4262 = vld [vmem:[#allocation4 + $0x100] sm:$0xff]
    %v4263 = vld [vmem:[#allocation4 + $0x108] sm:$0xff]
    %v4264 = vld [vmem:[#allocation4 + $0x110] sm:$0xff]
    %v4265 = vld [vmem:[#allocation4 + $0x118] sm:$0xff]
    %v4266 = vld [vmem:[#allocation4 + $0x120] sm:$0xff]
    %v4267 = vld [vmem:[#allocation4 + $0x128] sm:$0xff]
    %v4268 = vld [vmem:[#allocation4 + $0x130] sm:$0xff]
    %v4269 = vld [vmem:[#allocation4 + $0x138] sm:$0xff]
    %v4270 = vld [vmem:[#allocation4 + $0x140] sm:$0xff]
    %v4271 = vld [vmem:[#allocation4 + $0x148] sm:$0xff]
    %v4272 = vld [vmem:[#allocation4 + $0x150] sm:$0xff]
    %v4273 = vld [vmem:[#allocation4 + $0x158] sm:$0xff]
    %v4274 = vld [vmem:[#allocation4 + $0x160] sm:$0xff]
    %v4275 = vld [vmem:[#allocation4 + $0x168] sm:$0xff]
    %v4276 = vld [vmem:[#allocation4 + $0x170] sm:$0xff]
    %v4277 = vld [vmem:[#allocation4 + $0x178] sm:$0xff]
    %v4278 = vld [vmem:[#allocation4 + $0x180] sm:$0xff]
    %v4279 = vld [vmem:[#allocation4 + $0x188] sm:$0xff]
    %v4280 = vld [vmem:[#allocation4 + $0x190] sm:$0xff]
    %v4281 = vld [vmem:[#allocation4 + $0x198] sm:$0xff]
    %v4282 = vld [vmem:[#allocation4 + $0x1a0] sm:$0xff]
    %v4283 = vld [vmem:[#allocation4 + $0x1a8] sm:$0xff]
    %v4284 = vld [vmem:[#allocation4 + $0x1b0] sm:$0xff]
    %v4285 = vld [vmem:[#allocation4 + $0x1b8] sm:$0xff]
    %v4286 = vld [vmem:[#allocation4 + $0x1c0] sm:$0xff]
    %v4287 = vld [vmem:[#allocation4 + $0x1c8] sm:$0xff]
    %v4288 = vld [vmem:[#allocation4 + $0x1d0] sm:$0xff]
    %v4289 = vld [vmem:[#allocation4 + $0x1d8] sm:$0xff]
    %v4290 = vld [vmem:[#allocation4 + $0x1e0] sm:$0xff]
    %v4291 = vld [vmem:[#allocation4 + $0x1e8] sm:$0xff]
    %v4292 = vld [vmem:[#allocation4 + $0x1f0] sm:$0xff]
    %v4293 = vld [vmem:[#allocation4 + $0x1f8] sm:$0xff]
    %v4294 = vld [vmem:[#allocation7] ss:$8 sm:$0xf]
    %v4296 = vlaneseq
    %v4297 = vshrl.u32 %v4296, 7
    %v4298 = vsub.s32 0, %v4297
    %v4299 = vrot.slane %v4294, %v4298
    %v4300 = vlaneseq
    %v4301 = vshrl.u32 %v4300, 7
    %v4302 = vsub.s32 1, %v4301
    %v4303 = vrot.slane %v4294, %v4302
    %v4304 = vlaneseq
    %v4305 = vshrl.u32 %v4304, 7
    %v4306 = vsub.s32 2, %v4305
    %v4307 = vrot.slane %v4294, %v4306
    %v4308 = vlaneseq
    %v4309 = vshrl.u32 %v4308, 7
    %v4310 = vsub.s32 3, %v4309
    %v4311 = vrot.slane %v4294, %v4310
    %v4380 = vunpack.c.l.b16 %v4230
    %v4381 = vunpack.c.h.b16 %v4230
    %v4382 = vunpack.c.l.b16 %v4231
    %v4383 = vunpack.c.h.b16 %v4231
    %v4384 = vunpack.c.l.b16 %v4232
    %v4385 = vunpack.c.h.b16 %v4232
    %v4386 = vunpack.c.l.b16 %v4233
    %v4387 = vunpack.c.h.b16 %v4233
    %v4388 = vunpack.c.l.b16 %v4234
    %v4389 = vunpack.c.h.b16 %v4234
    %v4390 = vunpack.c.l.b16 %v4235
    %v4391 = vunpack.c.h.b16 %v4235
    %v4392 = vunpack.c.l.b16 %v4236
    %v4393 = vunpack.c.h.b16 %v4236
    %v4394 = vunpack.c.l.b16 %v4237
    %v4395 = vunpack.c.h.b16 %v4237
    %v4396 = vunpack.c.l.b16 %v4238
    %v4397 = vunpack.c.h.b16 %v4238
    %v4398 = vunpack.c.l.b16 %v4239
    %v4399 = vunpack.c.h.b16 %v4239
    %v4400 = vunpack.c.l.b16 %v4240
    %v4401 = vunpack.c.h.b16 %v4240
    %v4402 = vunpack.c.l.b16 %v4241
    %v4403 = vunpack.c.h.b16 %v4241
    %v4404 = vunpack.c.l.b16 %v4242
    %v4405 = vunpack.c.h.b16 %v4242
    %v4406 = vunpack.c.l.b16 %v4243
    %v4407 = vunpack.c.h.b16 %v4243
    %v4408 = vunpack.c.l.b16 %v4244
    %v4409 = vunpack.c.h.b16 %v4244
    %v4410 = vunpack.c.l.b16 %v4245
    %v4411 = vunpack.c.h.b16 %v4245
    %v4412 = vunpack.c.l.b16 %v4246
    %v4413 = vunpack.c.h.b16 %v4246
    %v4414 = vunpack.c.l.b16 %v4247
    %v4415 = vunpack.c.h.b16 %v4247
    %v4416 = vunpack.c.l.b16 %v4248
    %v4417 = vunpack.c.h.b16 %v4248
    %v4418 = vunpack.c.l.b16 %v4249
    %v4419 = vunpack.c.h.b16 %v4249
    %v4420 = vunpack.c.l.b16 %v4250
    %v4421 = vunpack.c.h.b16 %v4250
    %v4422 = vunpack.c.l.b16 %v4251
    %v4423 = vunpack.c.h.b16 %v4251
    %v4424 = vunpack.c.l.b16 %v4252
    %v4425 = vunpack.c.h.b16 %v4252
    %v4426 = vunpack.c.l.b16 %v4253
    %v4427 = vunpack.c.h.b16 %v4253
    %v4428 = vunpack.c.l.b16 %v4254
    %v4429 = vunpack.c.h.b16 %v4254
    %v4430 = vunpack.c.l.b16 %v4255
    %v4431 = vunpack.c.h.b16 %v4255
    %v4432 = vunpack.c.l.b16 %v4256
    %v4433 = vunpack.c.h.b16 %v4256
    %v4434 = vunpack.c.l.b16 %v4257
    %v4435 = vunpack.c.h.b16 %v4257
    %v4436 = vunpack.c.l.b16 %v4258
    %v4437 = vunpack.c.h.b16 %v4258
    %v4438 = vunpack.c.l.b16 %v4259
    %v4439 = vunpack.c.h.b16 %v4259
    %v4440 = vunpack.c.l.b16 %v4260
    %v4441 = vunpack.c.h.b16 %v4260
    %v4442 = vunpack.c.l.b16 %v4261
    %v4443 = vunpack.c.h.b16 %v4261
    %v4444 = vunpack.c.l.b16 %v4262
    %v4445 = vunpack.c.h.b16 %v4262
    %v4446 = vunpack.c.l.b16 %v4263
    %v4447 = vunpack.c.h.b16 %v4263
    %v4448 = vunpack.c.l.b16 %v4264
    %v4449 = vunpack.c.h.b16 %v4264
    %v4450 = vunpack.c.l.b16 %v4265
    %v4451 = vunpack.c.h.b16 %v4265
    %v4452 = vunpack.c.l.b16 %v4266
    %v4453 = vunpack.c.h.b16 %v4266
    %v4454 = vunpack.c.l.b16 %v4267
    %v4455 = vunpack.c.h.b16 %v4267
    %v4456 = vunpack.c.l.b16 %v4268
    %v4457 = vunpack.c.h.b16 %v4268
    %v4458 = vunpack.c.l.b16 %v4269
    %v4459 = vunpack.c.h.b16 %v4269
    %v4460 = vunpack.c.l.b16 %v4270
    %v4461 = vunpack.c.h.b16 %v4270
    %v4462 = vunpack.c.l.b16 %v4271
    %v4463 = vunpack.c.h.b16 %v4271
    %v4464 = vunpack.c.l.b16 %v4272
    %v4465 = vunpack.c.h.b16 %v4272
    %v4466 = vunpack.c.l.b16 %v4273
    %v4467 = vunpack.c.h.b16 %v4273
    %v4468 = vunpack.c.l.b16 %v4274
    %v4469 = vunpack.c.h.b16 %v4274
    %v4470 = vunpack.c.l.b16 %v4275
    %v4471 = vunpack.c.h.b16 %v4275
    %v4472 = vunpack.c.l.b16 %v4276
    %v4473 = vunpack.c.h.b16 %v4276
    %v4474 = vunpack.c.l.b16 %v4277
    %v4475 = vunpack.c.h.b16 %v4277
    %v4476 = vunpack.c.l.b16 %v4278
    %v4477 = vunpack.c.h.b16 %v4278
    %v4478 = vunpack.c.l.b16 %v4279
    %v4479 = vunpack.c.h.b16 %v4279
    %v4480 = vunpack.c.l.b16 %v4280
    %v4481 = vunpack.c.h.b16 %v4280
    %v4482 = vunpack.c.l.b16 %v4281
    %v4483 = vunpack.c.h.b16 %v4281
    %v4484 = vunpack.c.l.b16 %v4282
    %v4485 = vunpack.c.h.b16 %v4282
    %v4486 = vunpack.c.l.b16 %v4283
    %v4487 = vunpack.c.h.b16 %v4283
    %v4488 = vunpack.c.l.b16 %v4284
    %v4489 = vunpack.c.h.b16 %v4284
    %v4490 = vunpack.c.l.b16 %v4285
    %v4491 = vunpack.c.h.b16 %v4285
    %v4492 = vunpack.c.l.b16 %v4286
    %v4493 = vunpack.c.h.b16 %v4286
    %v4494 = vunpack.c.l.b16 %v4287
    %v4495 = vunpack.c.h.b16 %v4287
    %v4496 = vunpack.c.l.b16 %v4288
    %v4497 = vunpack.c.h.b16 %v4288
    %v4498 = vunpack.c.l.b16 %v4289
    %v4499 = vunpack.c.h.b16 %v4289
    %v4500 = vunpack.c.l.b16 %v4290
    %v4501 = vunpack.c.h.b16 %v4290
    %v4502 = vunpack.c.l.b16 %v4291
    %v4503 = vunpack.c.h.b16 %v4291
    %v4504 = vunpack.c.l.b16 %v4292
    %v4505 = vunpack.c.h.b16 %v4292
    %v4506 = vunpack.c.l.b16 %v4293
    %v4507 = vunpack.c.h.b16 %v4293
    %v4508 = vpack.c.b16 %v4384, %v4380
    %v4509 = vpack.c.b16 %v4385, %v4381
    %v4510 = vpack.c.b16 %v4386, %v4382
    %v4511 = vpack.c.b16 %v4387, %v4383
    %v4512 = vpack.c.b16 %v4392, %v4388
    %v4513 = vpack.c.b16 %v4393, %v4389
    %v4514 = vpack.c.b16 %v4394, %v4390
    %v4515 = vpack.c.b16 %v4395, %v4391
    %v4516 = vpack.c.b16 %v4400, %v4396
    %v4517 = vpack.c.b16 %v4401, %v4397
    %v4518 = vpack.c.b16 %v4402, %v4398
    %v4519 = vpack.c.b16 %v4403, %v4399
    %v4520 = vpack.c.b16 %v4408, %v4404
    %v4521 = vpack.c.b16 %v4409, %v4405
    %v4522 = vpack.c.b16 %v4410, %v4406
    %v4523 = vpack.c.b16 %v4411, %v4407
    %v4524 = vpack.c.b16 %v4416, %v4412
    %v4525 = vpack.c.b16 %v4417, %v4413
    %v4526 = vpack.c.b16 %v4418, %v4414
    %v4527 = vpack.c.b16 %v4419, %v4415
    %v4528 = vpack.c.b16 %v4424, %v4420
    %v4529 = vpack.c.b16 %v4425, %v4421
    %v4530 = vpack.c.b16 %v4426, %v4422
    %v4531 = vpack.c.b16 %v4427, %v4423
    %v4532 = vpack.c.b16 %v4432, %v4428
    %v4533 = vpack.c.b16 %v4433, %v4429
    %v4534 = vpack.c.b16 %v4434, %v4430
    %v4535 = vpack.c.b16 %v4435, %v4431
    %v4536 = vpack.c.b16 %v4440, %v4436
    %v4537 = vpack.c.b16 %v4441, %v4437
    %v4538 = vpack.c.b16 %v4442, %v4438
    %v4539 = vpack.c.b16 %v4443, %v4439
    %v4540 = vpack.c.b16 %v4448, %v4444
    %v4541 = vpack.c.b16 %v4449, %v4445
    %v4542 = vpack.c.b16 %v4450, %v4446
    %v4543 = vpack.c.b16 %v4451, %v4447
    %v4544 = vpack.c.b16 %v4456, %v4452
    %v4545 = vpack.c.b16 %v4457, %v4453
    %v4546 = vpack.c.b16 %v4458, %v4454
    %v4547 = vpack.c.b16 %v4459, %v4455
    %v4548 = vpack.c.b16 %v4464, %v4460
    %v4549 = vpack.c.b16 %v4465, %v4461
    %v4550 = vpack.c.b16 %v4466, %v4462
    %v4551 = vpack.c.b16 %v4467, %v4463
    %v4552 = vpack.c.b16 %v4472, %v4468
    %v4553 = vpack.c.b16 %v4473, %v4469
    %v4554 = vpack.c.b16 %v4474, %v4470
    %v4555 = vpack.c.b16 %v4475, %v4471
    %v4556 = vpack.c.b16 %v4480, %v4476
    %v4557 = vpack.c.b16 %v4481, %v4477
    %v4558 = vpack.c.b16 %v4482, %v4478
    %v4559 = vpack.c.b16 %v4483, %v4479
    %v4560 = vpack.c.b16 %v4488, %v4484
    %v4561 = vpack.c.b16 %v4489, %v4485
    %v4562 = vpack.c.b16 %v4490, %v4486
    %v4563 = vpack.c.b16 %v4491, %v4487
    %v4564 = vpack.c.b16 %v4496, %v4492
    %v4565 = vpack.c.b16 %v4497, %v4493
    %v4566 = vpack.c.b16 %v4498, %v4494
    %v4567 = vpack.c.b16 %v4499, %v4495
    %v4568 = vpack.c.b16 %v4504, %v4500
    %v4569 = vpack.c.b16 %v4505, %v4501
    %v4570 = vpack.c.b16 %v4506, %v4502
    %v4571 = vpack.c.b16 %v4507, %v4503
    %4636 = vmatprep.subr.bf16.mxu0 %v4509
    %4637 = vmatpush1.bf16.msra.mxu0 %v4508
    %4638 = vmatprep.subr.bf16.mxu0 %v4513
    %4639 = vmatpush1.bf16.msra.mxu0 %v4512
    %4640 = vmatprep.subr.bf16.mxu0 %v4517
    %4641 = vmatpush1.bf16.msra.mxu0 %v4516
    %4642 = vmatprep.subr.bf16.mxu0 %v4521
    %4643 = vmatpush1.bf16.msra.mxu0 %v4520
    %4644 = vmatprep.subr.bf16.mxu0 %v4525
    %4645 = vmatpush1.bf16.msra.mxu0 %v4524
    %4646 = vmatprep.subr.bf16.mxu0 %v4529
    %4647 = vmatpush1.bf16.msra.mxu0 %v4528
    %4648 = vmatprep.subr.bf16.mxu0 %v4533
    %4649 = vmatpush1.bf16.msra.mxu0 %v4532
    %4650 = vmatprep.subr.bf16.mxu0 %v4537
    %4651 = vmatpush1.bf16.msra.mxu0 %v4536
    %4652 = vmatprep.subr.bf16.mxu0 %v4541
    %4653 = vmatpush1.bf16.msra.mxu0 %v4540
    %4654 = vmatprep.subr.bf16.mxu0 %v4545
    %4655 = vmatpush1.bf16.msra.mxu0 %v4544
    %4656 = vmatprep.subr.bf16.mxu0 %v4549
    %4657 = vmatpush1.bf16.msra.mxu0 %v4548
    %4658 = vmatprep.subr.bf16.mxu0 %v4553
    %4659 = vmatpush1.bf16.msra.mxu0 %v4552
    %4660 = vmatprep.subr.bf16.mxu0 %v4557
    %4661 = vmatpush1.bf16.msra.mxu0 %v4556
    %4662 = vmatprep.subr.bf16.mxu0 %v4561
    %4663 = vmatpush1.bf16.msra.mxu0 %v4560
    %4664 = vmatprep.subr.bf16.mxu0 %v4565
    %4665 = vmatpush1.bf16.msra.mxu0 %v4564
    %4666 = vmatprep.subr.bf16.mxu0 %v4569
    %4667 = vmatpush1.bf16.msra.mxu0 %v4568
    %4668 = vmatprep.mubr.bf16.mxu0 %v3375
    %4669 = vmatmul.mubr.bf16.gmra.mrb[0].mxu0 %v4226
    %v4670 = vpop.f32.mrb[0].mxu0
    %v4671 = vadd.f32 %v4299, %v4670
    %v4672 = vpop.f32.mrb[0].mxu0
    %v4673 = vadd.f32 %v4303, %v4672
    %v4674 = vpop.f32.mrb[0].mxu0
    %v4675 = vadd.f32 %v4299, %v4674
    %v4676 = vpop.f32.mrb[0].mxu0
    %v4677 = vadd.f32 %v4303, %v4676
    %4678 = vmatprep.mubr.bf16.mxu0 %v3376
    %4679 = vmatmul.mubr.bf16.gmra.mrb[0].mxu0 %v4227
    %v4680 = vpop.f32.mrb[0].mxu0
    %v4681 = vadd.f32 %v4299, %v4680
    %v4682 = vpop.f32.mrb[0].mxu0
    %v4683 = vadd.f32 %v4303, %v4682
    %v4684 = vpop.f32.mrb[0].mxu0
    %v4685 = vadd.f32 %v4299, %v4684
    %v4686 = vpop.f32.mrb[0].mxu0
    %v4687 = vadd.f32 %v4303, %v4686
    %4688 = vmatprep.mubr.bf16.mxu0 %v3377
    %4689 = vmatmul.mubr.bf16.gmra.mrb[0].mxu0 %v4228
    %v4690 = vpop.f32.mrb[0].mxu0
    %v4691 = vadd.f32 %v4299, %v4690
    %v4692 = vpop.f32.mrb[0].mxu0
    %v4693 = vadd.f32 %v4303, %v4692
    %v4694 = vpop.f32.mrb[0].mxu0
    %v4695 = vadd.f32 %v4299, %v4694
    %v4696 = vpop.f32.mrb[0].mxu0
    %v4697 = vadd.f32 %v4303, %v4696
    %4698 = vmatprep.mubr.bf16.mxu0 %v3378
    %4699 = vmatmul.mubr.bf16.gmra.mrb[0].mxu0 %v4229
    %v4700 = vpop.f32.mrb[0].mxu0
    %v4701 = vadd.f32 %v4299, %v4700
    %v4702 = vpop.f32.mrb[0].mxu0
    %v4703 = vadd.f32 %v4303, %v4702
    %v4704 = vpop.f32.mrb[0].mxu0
    %v4705 = vadd.f32 %v4299, %v4704
    %v4706 = vpop.f32.mrb[0].mxu0
    %v4707 = vadd.f32 %v4303, %v4706
    %4708 = vdwg.mxu0
    %4709 = vmatprep.subr.bf16.mxu0 %v4511
    %4710 = vmatpush1.bf16.msra.mxu0 %v4510
    %4711 = vmatprep.subr.bf16.mxu0 %v4515
    %4712 = vmatpush1.bf16.msra.mxu0 %v4514
    %4713 = vmatprep.subr.bf16.mxu0 %v4519
    %4714 = vmatpush1.bf16.msra.mxu0 %v4518
    %4715 = vmatprep.subr.bf16.mxu0 %v4523
    %4716 = vmatpush1.bf16.msra.mxu0 %v4522
    %4717 = vmatprep.subr.bf16.mxu0 %v4527
    %4718 = vmatpush1.bf16.msra.mxu0 %v4526
    %4719 = vmatprep.subr.bf16.mxu0 %v4531
    %4720 = vmatpush1.bf16.msra.mxu0 %v4530
    %4721 = vmatprep.subr.bf16.mxu0 %v4535
    %4722 = vmatpush1.bf16.msra.mxu0 %v4534
    %4723 = vmatprep.subr.bf16.mxu0 %v4539
    %4724 = vmatpush1.bf16.msra.mxu0 %v4538
    %4725 = vmatprep.subr.bf16.mxu0 %v4543
    %4726 = vmatpush1.bf16.msra.mxu0 %v4542
    %4727 = vmatprep.subr.bf16.mxu0 %v4547
    %4728 = vmatpush1.bf16.msra.mxu0 %v4546
    %4729 = vmatprep.subr.bf16.mxu0 %v4551
    %4730 = vmatpush1.bf16.msra.mxu0 %v4550
    %4731 = vmatprep.subr.bf16.mxu0 %v4555
    %4732 = vmatpush1.bf16.msra.mxu0 %v4554
    %4733 = vmatprep.subr.bf16.mxu0 %v4559
    %4734 = vmatpush1.bf16.msra.mxu0 %v4558
    %4735 = vmatprep.subr.bf16.mxu0 %v4563
    %4736 = vmatpush1.bf16.msra.mxu0 %v4562
    %4737 = vmatprep.subr.bf16.mxu0 %v4567
    %4738 = vmatpush1.bf16.msra.mxu0 %v4566
    %4739 = vmatprep.subr.bf16.mxu0 %v4571
    %4740 = vmatpush1.bf16.msra.mxu0 %v4570
    %4741 = vmatprep.mubr.bf16.mxu0 %v3375
    %4742 = vmatmul.mubr.bf16.gmra.mrb[0].mxu0 %v4226
    %v4743 = vpop.f32.mrb[0].mxu0
    %v4744 = vadd.f32 %v4307, %v4743
    %v4745 = vpop.f32.mrb[0].mxu0
    %v4746 = vadd.f32 %v4311, %v4745
    %v4747 = vpop.f32.mrb[0].mxu0
    %v4748 = vadd.f32 %v4307, %v4747
    %v4749 = vpop.f32.mrb[0].mxu0
    %v4750 = vadd.f32 %v4311, %v4749
    %4751 = vmatprep.mubr.bf16.mxu0 %v3376
    %4752 = vmatmul.mubr.bf16.gmra.mrb[0].mxu0 %v4227
    %v4753 = vpop.f32.mrb[0].mxu0
    %v4754 = vadd.f32 %v4307, %v4753
    %v4755 = vpop.f32.mrb[0].mxu0
    %v4756 = vadd.f32 %v4311, %v4755
    %v4757 = vpop.f32.mrb[0].mxu0
    %v4758 = vadd.f32 %v4307, %v4757
    %v4759 = vpop.f32.mrb[0].mxu0
    %v4760 = vadd.f32 %v4311, %v4759
    %4761 = vmatprep.mubr.bf16.mxu0 %v3377
    %4762 = vmatmul.mubr.bf16.gmra.mrb[0].mxu0 %v4228
    %v4763 = vpop.f32.mrb[0].mxu0
    %v4764 = vadd.f32 %v4307, %v4763
    %v4765 = vpop.f32.mrb[0].mxu0
    %v4766 = vadd.f32 %v4311, %v4765
    %v4767 = vpop.f32.mrb[0].mxu0
    %v4768 = vadd.f32 %v4307, %v4767
    %v4769 = vpop.f32.mrb[0].mxu0
    %v4770 = vadd.f32 %v4311, %v4769
    %4771 = vmatprep.mubr.bf16.mxu0 %v3378
    %4772 = vmatmul.mubr.bf16.gmra.mrb[0].mxu0 %v4229
    %v4773 = vpop.f32.mrb[0].mxu0
    %v4774 = vadd.f32 %v4307, %v4773
    %v4775 = vpop.f32.mrb[0].mxu0
    %v4776 = vadd.f32 %v4311, %v4775
    %v4777 = vpop.f32.mrb[0].mxu0
    %v4778 = vadd.f32 %v4307, %v4777
    %v4779 = vpop.f32.mrb[0].mxu0
    %v4780 = vadd.f32 %v4311, %v4779
    %4781 = vdwg.mxu0
    %v4782 = vmul.f32 %v4671, 0.5
    %v4783 = vmul.f32 %v4675, 0.5
    %v4784 = vmul.f32 %v4681, 0.5
    %v4785 = vmul.f32 %v4685, 0.5
    %v4786 = vmul.f32 %v4691, 0.5
    %v4787 = vmul.f32 %v4695, 0.5
    %v4788 = vmul.f32 %v4701, 0.5
    %v4789 = vmul.f32 %v4705, 0.5
    %v4790 = vtanh.pop %v4782
    %v4791 = vtanh.pop %v4783
    %v4792 = vtanh.pop %v4784
    %v4793 = vtanh.pop %v4785
    %v4794 = vtanh.pop %v4786
    %v4795 = vtanh.pop %v4787
    %v4796 = vtanh.pop %v4788
    %v4797 = vtanh.pop %v4789
    %v4798 = vmul.f32 %v4790, 0.5
    %v4799 = vmul.f32 %v4791, 0.5
    %v4800 = vmul.f32 %v4792, 0.5
    %v4801 = vmul.f32 %v4793, 0.5
    %v4802 = vmul.f32 %v4794, 0.5
    %v4803 = vmul.f32 %v4795, 0.5
    %v4804 = vmul.f32 %v4796, 0.5
    %v4805 = vmul.f32 %v4797, 0.5
    %v4806 = vadd.f32 %v4798, 0.5
    %v4807 = vadd.f32 %v4799, 0.5
    %v4808 = vadd.f32 %v4800, 0.5
    %v4809 = vadd.f32 %v4801, 0.5
    %v4810 = vadd.f32 %v4802, 0.5
    %v4811 = vadd.f32 %v4803, 0.5
    %v4812 = vadd.f32 %v4804, 0.5
    %v4813 = vadd.f32 %v4805, 0.5
    %v4814 = vtanh.pop %v4744
    %v4815 = vtanh.pop %v4748
    %v4816 = vtanh.pop %v4754
    %v4817 = vtanh.pop %v4758
    %v4818 = vtanh.pop %v4764
    %v4819 = vtanh.pop %v4768
    %v4820 = vtanh.pop %v4774
    %v4821 = vtanh.pop %v4778
    %v4822 = vmul.f32 %v4746, 0.5
    %v4823 = vmul.f32 %v4750, 0.5
    %v4824 = vmul.f32 %v4756, 0.5
    %v4825 = vmul.f32 %v4760, 0.5
    %v4826 = vmul.f32 %v4766, 0.5
    %v4827 = vmul.f32 %v4770, 0.5
    %v4828 = vmul.f32 %v4776, 0.5
    %v4829 = vmul.f32 %v4780, 0.5
    %v4830 = vtanh.pop %v4822
    %v4831 = vtanh.pop %v4823
    %v4832 = vtanh.pop %v4824
    %v4833 = vtanh.pop %v4825
    %v4834 = vtanh.pop %v4826
    %v4835 = vtanh.pop %v4827
    %v4836 = vtanh.pop %v4828
    %v4837 = vtanh.pop %v4829
    %v4838 = vmul.f32 %v4830, 0.5
    %v4839 = vmul.f32 %v4831, 0.5
    %v4840 = vmul.f32 %v4832, 0.5
    %v4841 = vmul.f32 %v4833, 0.5
    %v4842 = vmul.f32 %v4834, 0.5
    %v4843 = vmul.f32 %v4835, 0.5
    %v4844 = vmul.f32 %v4836, 0.5
    %v4845 = vmul.f32 %v4837, 0.5
    %v4846 = vadd.f32 %v4838, 0.5
    %v4847 = vadd.f32 %v4839, 0.5
    %v4848 = vadd.f32 %v4840, 0.5
    %v4849 = vadd.f32 %v4841, 0.5
    %v4850 = vadd.f32 %v4842, 0.5
    %v4851 = vadd.f32 %v4843, 0.5
    %v4852 = vadd.f32 %v4844, 0.5
    %v4853 = vadd.f32 %v4845, 0.5
    %v4854 = vmul.f32 %v4673, 0.5
    %v4855 = vmul.f32 %v4677, 0.5
    %v4856 = vmul.f32 %v4683, 0.5
    %v4857 = vmul.f32 %v4687, 0.5
    %v4858 = vmul.f32 %v4693, 0.5
    %v4859 = vmul.f32 %v4697, 0.5
    %v4860 = vmul.f32 %v4703, 0.5
    %v4861 = vmul.f32 %v4707, 0.5
    %v4862 = vtanh.pop %v4854
    %v4863 = vtanh.pop %v4855
    %v4864 = vtanh.pop %v4856
    %v4865 = vtanh.pop %v4857
    %v4866 = vtanh.pop %v4858
    %v4867 = vtanh.pop %v4859
    %v4868 = vtanh.pop %v4860
    %v4869 = vtanh.pop %v4861
    %v4870 = vmul.f32 %v4862, 0.5
    %v4871 = vmul.f32 %v4863, 0.5
    %v4872 = vmul.f32 %v4864, 0.5
    %v4873 = vmul.f32 %v4865, 0.5
    %v4874 = vmul.f32 %v4866, 0.5
    %v4875 = vmul.f32 %v4867, 0.5
    %v4876 = vmul.f32 %v4868, 0.5
    %v4877 = vmul.f32 %v4869, 0.5
    %v4878 = vadd.f32 %v4870, 0.5
    %v4879 = vadd.f32 %v4871, 0.5
    %v4880 = vadd.f32 %v4872, 0.5
    %v4881 = vadd.f32 %v4873, 0.5
    %v4882 = vadd.f32 %v4874, 0.5
    %v4883 = vadd.f32 %v4875, 0.5
    %v4884 = vadd.f32 %v4876, 0.5
    %v4885 = vadd.f32 %v4877, 0.5
    %v4886 = vmul.f32 %v4878, %v3351
    %v4887 = vmul.f32 %v4879, %v3352
    %v4888 = vmul.f32 %v4880, %v3353
    %v4889 = vmul.f32 %v4881, %v3354
    %v4890 = vmul.f32 %v4882, %v3355
    %v4891 = vmul.f32 %v4883, %v3356
    %v4892 = vmul.f32 %v4884, %v3357
    %v4893 = vmul.f32 %v4885, %v3358
    %v4894 = vmul.f32 %v4806, %v4814
    %v4895 = vmul.f32 %v4807, %v4815
    %v4896 = vmul.f32 %v4808, %v4816
    %v4897 = vmul.f32 %v4809, %v4817
    %v4898 = vmul.f32 %v4810, %v4818
    %v4899 = vmul.f32 %v4811, %v4819
    %v4900 = vmul.f32 %v4812, %v4820
    %v4901 = vmul.f32 %v4813, %v4821
    %v4902 = vadd.f32 %v4886, %v4894
    %v4903 = vadd.f32 %v4887, %v4895
    %v4904 = vadd.f32 %v4888, %v4896
    %v4905 = vadd.f32 %v4889, %v4897
    %v4906 = vadd.f32 %v4890, %v4898
    %v4907 = vadd.f32 %v4891, %v4899
    %v4908 = vadd.f32 %v4892, %v4900
    %v4909 = vadd.f32 %v4893, %v4901
    %v4910 = vtanh.pop %v4902
    %v4911 = vtanh.pop %v4903
    %v4912 = vtanh.pop %v4904
    %v4913 = vtanh.pop %v4905
    %v4914 = vtanh.pop %v4906
    %v4915 = vtanh.pop %v4907
    %v4916 = vtanh.pop %v4908
    %v4917 = vtanh.pop %v4909
    %v4918 = vmul.f32 %v4846, %v4910
    %v4919 = vmul.f32 %v4847, %v4911
    %v4920 = vmul.f32 %v4848, %v4912
    %v4921 = vmul.f32 %v4849, %v4913
    %v4922 = vmul.f32 %v4850, %v4914
    %v4923 = vmul.f32 %v4851, %v4915
    %v4924 = vmul.f32 %v4852, %v4916
    %v4925 = vmul.f32 %v4853, %v4917
    %v4926 = vpack.c.bf16 %v4919, %v4918
    %v4927 = vpack.c.bf16 %v4921, %v4920
    %v4928 = vpack.c.bf16 %v4923, %v4922
    %v4929 = vpack.c.bf16 %v4925, %v4924
    %v4930 = vld [vmem:[#allocation4 + $0x200] sm:$0xff]
    %v4931 = vld [vmem:[#allocation4 + $0x208] sm:$0xff]
    %v4932 = vld [vmem:[#allocation4 + $0x210] sm:$0xff]
    %v4933 = vld [vmem:[#allocation4 + $0x218] sm:$0xff]
    %v4934 = vld [vmem:[#allocation4 + $0x220] sm:$0xff]
    %v4935 = vld [vmem:[#allocation4 + $0x228] sm:$0xff]
    %v4936 = vld [vmem:[#allocation4 + $0x230] sm:$0xff]
    %v4937 = vld [vmem:[#allocation4 + $0x238] sm:$0xff]
    %v4938 = vld [vmem:[#allocation4 + $0x240] sm:$0xff]
    %v4939 = vld [vmem:[#allocation4 + $0x248] sm:$0xff]
    %v4940 = vld [vmem:[#allocation4 + $0x250] sm:$0xff]
    %v4941 = vld [vmem:[#allocation4 + $0x258] sm:$0xff]
    %v4942 = vld [vmem:[#allocation4 + $0x260] sm:$0xff]
    %v4943 = vld [vmem:[#allocation4 + $0x268] sm:$0xff]
    %v4944 = vld [vmem:[#allocation4 + $0x270] sm:$0xff]
    %v4945 = vld [vmem:[#allocation4 + $0x278] sm:$0xff]
    %v4946 = vld [vmem:[#allocation4 + $0x280] sm:$0xff]
    %v4947 = vld [vmem:[#allocation4 + $0x288] sm:$0xff]
    %v4948 = vld [vmem:[#allocation4 + $0x290] sm:$0xff]
    %v4949 = vld [vmem:[#allocation4 + $0x298] sm:$0xff]
    %v4950 = vld [vmem:[#allocation4 + $0x2a0] sm:$0xff]
    %v4951 = vld [vmem:[#allocation4 + $0x2a8] sm:$0xff]
    %v4952 = vld [vmem:[#allocation4 + $0x2b0] sm:$0xff]
    %v4953 = vld [vmem:[#allocation4 + $0x2b8] sm:$0xff]
    %v4954 = vld [vmem:[#allocation4 + $0x2c0] sm:$0xff]
    %v4955 = vld [vmem:[#allocation4 + $0x2c8] sm:$0xff]
    %v4956 = vld [vmem:[#allocation4 + $0x2d0] sm:$0xff]
    %v4957 = vld [vmem:[#allocation4 + $0x2d8] sm:$0xff]
    %v4958 = vld [vmem:[#allocation4 + $0x2e0] sm:$0xff]
    %v4959 = vld [vmem:[#allocation4 + $0x2e8] sm:$0xff]
    %v4960 = vld [vmem:[#allocation4 + $0x2f0] sm:$0xff]
    %v4961 = vld [vmem:[#allocation4 + $0x2f8] sm:$0xff]
    %v4962 = vld [vmem:[#allocation4 + $0x300] sm:$0xff]
    %v4963 = vld [vmem:[#allocation4 + $0x308] sm:$0xff]
    %v4964 = vld [vmem:[#allocation4 + $0x310] sm:$0xff]
    %v4965 = vld [vmem:[#allocation4 + $0x318] sm:$0xff]
    %v4966 = vld [vmem:[#allocation4 + $0x320] sm:$0xff]
    %v4967 = vld [vmem:[#allocation4 + $0x328] sm:$0xff]
    %v4968 = vld [vmem:[#allocation4 + $0x330] sm:$0xff]
    %v4969 = vld [vmem:[#allocation4 + $0x338] sm:$0xff]
    %v4970 = vld [vmem:[#allocation4 + $0x340] sm:$0xff]
    %v4971 = vld [vmem:[#allocation4 + $0x348] sm:$0xff]
    %v4972 = vld [vmem:[#allocation4 + $0x350] sm:$0xff]
    %v4973 = vld [vmem:[#allocation4 + $0x358] sm:$0xff]
    %v4974 = vld [vmem:[#allocation4 + $0x360] sm:$0xff]
    %v4975 = vld [vmem:[#allocation4 + $0x368] sm:$0xff]
    %v4976 = vld [vmem:[#allocation4 + $0x370] sm:$0xff]
    %v4977 = vld [vmem:[#allocation4 + $0x378] sm:$0xff]
    %v4978 = vld [vmem:[#allocation4 + $0x380] sm:$0xff]
    %v4979 = vld [vmem:[#allocation4 + $0x388] sm:$0xff]
    %v4980 = vld [vmem:[#allocation4 + $0x390] sm:$0xff]
    %v4981 = vld [vmem:[#allocation4 + $0x398] sm:$0xff]
    %v4982 = vld [vmem:[#allocation4 + $0x3a0] sm:$0xff]
    %v4983 = vld [vmem:[#allocation4 + $0x3a8] sm:$0xff]
    %v4984 = vld [vmem:[#allocation4 + $0x3b0] sm:$0xff]
    %v4985 = vld [vmem:[#allocation4 + $0x3b8] sm:$0xff]
    %v4986 = vld [vmem:[#allocation4 + $0x3c0] sm:$0xff]
    %v4987 = vld [vmem:[#allocation4 + $0x3c8] sm:$0xff]
    %v4988 = vld [vmem:[#allocation4 + $0x3d0] sm:$0xff]
    %v4989 = vld [vmem:[#allocation4 + $0x3d8] sm:$0xff]
    %v4990 = vld [vmem:[#allocation4 + $0x3e0] sm:$0xff]
    %v4991 = vld [vmem:[#allocation4 + $0x3e8] sm:$0xff]
    %v4992 = vld [vmem:[#allocation4 + $0x3f0] sm:$0xff]
    %v4993 = vld [vmem:[#allocation4 + $0x3f8] sm:$0xff]
    %v4994 = vld [vmem:[%s562] ss:$8 sm:$0xf]
    %v4996 = vlaneseq
    %v4997 = vshrl.u32 %v4996, 7
    %v4998 = vsub.s32 0, %v4997
    %v4999 = vrot.slane %v4994, %v4998
    %v5000 = vlaneseq
    %v5001 = vshrl.u32 %v5000, 7
    %v5002 = vsub.s32 1, %v5001
    %v5003 = vrot.slane %v4994, %v5002
    %v5004 = vlaneseq
    %v5005 = vshrl.u32 %v5004, 7
    %v5006 = vsub.s32 2, %v5005
    %v5007 = vrot.slane %v4994, %v5006
    %v5008 = vlaneseq
    %v5009 = vshrl.u32 %v5008, 7
    %v5010 = vsub.s32 3, %v5009
    %v5011 = vrot.slane %v4994, %v5010
    %v5080 = vunpack.c.l.b16 %v4930
    %v5081 = vunpack.c.h.b16 %v4930
    %v5082 = vunpack.c.l.b16 %v4931
    %v5083 = vunpack.c.h.b16 %v4931
    %v5084 = vunpack.c.l.b16 %v4932
    %v5085 = vunpack.c.h.b16 %v4932
    %v5086 = vunpack.c.l.b16 %v4933
    %v5087 = vunpack.c.h.b16 %v4933
    %v5088 = vunpack.c.l.b16 %v4934
    %v5089 = vunpack.c.h.b16 %v4934
    %v5090 = vunpack.c.l.b16 %v4935
    %v5091 = vunpack.c.h.b16 %v4935
    %v5092 = vunpack.c.l.b16 %v4936
    %v5093 = vunpack.c.h.b16 %v4936
    %v5094 = vunpack.c.l.b16 %v4937
    %v5095 = vunpack.c.h.b16 %v4937
    %v5096 = vunpack.c.l.b16 %v4938
    %v5097 = vunpack.c.h.b16 %v4938
    %v5098 = vunpack.c.l.b16 %v4939
    %v5099 = vunpack.c.h.b16 %v4939
    %v5100 = vunpack.c.l.b16 %v4940
    %v5101 = vunpack.c.h.b16 %v4940
    %v5102 = vunpack.c.l.b16 %v4941
    %v5103 = vunpack.c.h.b16 %v4941
    %v5104 = vunpack.c.l.b16 %v4942
    %v5105 = vunpack.c.h.b16 %v4942
    %v5106 = vunpack.c.l.b16 %v4943
    %v5107 = vunpack.c.h.b16 %v4943
    %v5108 = vunpack.c.l.b16 %v4944
    %v5109 = vunpack.c.h.b16 %v4944
    %v5110 = vunpack.c.l.b16 %v4945
    %v5111 = vunpack.c.h.b16 %v4945
    %v5112 = vunpack.c.l.b16 %v4946
    %v5113 = vunpack.c.h.b16 %v4946
    %v5114 = vunpack.c.l.b16 %v4947
    %v5115 = vunpack.c.h.b16 %v4947
    %v5116 = vunpack.c.l.b16 %v4948
    %v5117 = vunpack.c.h.b16 %v4948
    %v5118 = vunpack.c.l.b16 %v4949
    %v5119 = vunpack.c.h.b16 %v4949
    %v5120 = vunpack.c.l.b16 %v4950
    %v5121 = vunpack.c.h.b16 %v4950
    %v5122 = vunpack.c.l.b16 %v4951
    %v5123 = vunpack.c.h.b16 %v4951
    %v5124 = vunpack.c.l.b16 %v4952
    %v5125 = vunpack.c.h.b16 %v4952
    %v5126 = vunpack.c.l.b16 %v4953
    %v5127 = vunpack.c.h.b16 %v4953
    %v5128 = vunpack.c.l.b16 %v4954
    %v5129 = vunpack.c.h.b16 %v4954
    %v5130 = vunpack.c.l.b16 %v4955
    %v5131 = vunpack.c.h.b16 %v4955
    %v5132 = vunpack.c.l.b16 %v4956
    %v5133 = vunpack.c.h.b16 %v4956
    %v5134 = vunpack.c.l.b16 %v4957
    %v5135 = vunpack.c.h.b16 %v4957
    %v5136 = vunpack.c.l.b16 %v4958
    %v5137 = vunpack.c.h.b16 %v4958
    %v5138 = vunpack.c.l.b16 %v4959
    %v5139 = vunpack.c.h.b16 %v4959
    %v5140 = vunpack.c.l.b16 %v4960
    %v5141 = vunpack.c.h.b16 %v4960
    %v5142 = vunpack.c.l.b16 %v4961
    %v5143 = vunpack.c.h.b16 %v4961
    %v5144 = vunpack.c.l.b16 %v4962
    %v5145 = vunpack.c.h.b16 %v4962
    %v5146 = vunpack.c.l.b16 %v4963
    %v5147 = vunpack.c.h.b16 %v4963
    %v5148 = vunpack.c.l.b16 %v4964
    %v5149 = vunpack.c.h.b16 %v4964
    %v5150 = vunpack.c.l.b16 %v4965
    %v5151 = vunpack.c.h.b16 %v4965
    %v5152 = vunpack.c.l.b16 %v4966
    %v5153 = vunpack.c.h.b16 %v4966
    %v5154 = vunpack.c.l.b16 %v4967
    %v5155 = vunpack.c.h.b16 %v4967
    %v5156 = vunpack.c.l.b16 %v4968
    %v5157 = vunpack.c.h.b16 %v4968
    %v5158 = vunpack.c.l.b16 %v4969
    %v5159 = vunpack.c.h.b16 %v4969
    %v5160 = vunpack.c.l.b16 %v4970
    %v5161 = vunpack.c.h.b16 %v4970
    %v5162 = vunpack.c.l.b16 %v4971
    %v5163 = vunpack.c.h.b16 %v4971
    %v5164 = vunpack.c.l.b16 %v4972
    %v5165 = vunpack.c.h.b16 %v4972
    %v5166 = vunpack.c.l.b16 %v4973
    %v5167 = vunpack.c.h.b16 %v4973
    %v5168 = vunpack.c.l.b16 %v4974
    %v5169 = vunpack.c.h.b16 %v4974
    %v5170 = vunpack.c.l.b16 %v4975
    %v5171 = vunpack.c.h.b16 %v4975
    %v5172 = vunpack.c.l.b16 %v4976
    %v5173 = vunpack.c.h.b16 %v4976
    %v5174 = vunpack.c.l.b16 %v4977
    %v5175 = vunpack.c.h.b16 %v4977
    %v5176 = vunpack.c.l.b16 %v4978
    %v5177 = vunpack.c.h.b16 %v4978
    %v5178 = vunpack.c.l.b16 %v4979
    %v5179 = vunpack.c.h.b16 %v4979
    %v5180 = vunpack.c.l.b16 %v4980
    %v5181 = vunpack.c.h.b16 %v4980
    %v5182 = vunpack.c.l.b16 %v4981
    %v5183 = vunpack.c.h.b16 %v4981
    %v5184 = vunpack.c.l.b16 %v4982
    %v5185 = vunpack.c.h.b16 %v4982
    %v5186 = vunpack.c.l.b16 %v4983
    %v5187 = vunpack.c.h.b16 %v4983
    %v5188 = vunpack.c.l.b16 %v4984
    %v5189 = vunpack.c.h.b16 %v4984
    %v5190 = vunpack.c.l.b16 %v4985
    %v5191 = vunpack.c.h.b16 %v4985
    %v5192 = vunpack.c.l.b16 %v4986
    %v5193 = vunpack.c.h.b16 %v4986
    %v5194 = vunpack.c.l.b16 %v4987
    %v5195 = vunpack.c.h.b16 %v4987
    %v5196 = vunpack.c.l.b16 %v4988
    %v5197 = vunpack.c.h.b16 %v4988
    %v5198 = vunpack.c.l.b16 %v4989
    %v5199 = vunpack.c.h.b16 %v4989
    %v5200 = vunpack.c.l.b16 %v4990
    %v5201 = vunpack.c.h.b16 %v4990
    %v5202 = vunpack.c.l.b16 %v4991
    %v5203 = vunpack.c.h.b16 %v4991
    %v5204 = vunpack.c.l.b16 %v4992
    %v5205 = vunpack.c.h.b16 %v4992
    %v5206 = vunpack.c.l.b16 %v4993
    %v5207 = vunpack.c.h.b16 %v4993
    %v5208 = vpack.c.b16 %v5084, %v5080
    %v5209 = vpack.c.b16 %v5085, %v5081
    %v5210 = vpack.c.b16 %v5086, %v5082
    %v5211 = vpack.c.b16 %v5087, %v5083
    %v5212 = vpack.c.b16 %v5092, %v5088
    %v5213 = vpack.c.b16 %v5093, %v5089
    %v5214 = vpack.c.b16 %v5094, %v5090
    %v5215 = vpack.c.b16 %v5095, %v5091
    %v5216 = vpack.c.b16 %v5100, %v5096
    %v5217 = vpack.c.b16 %v5101, %v5097
    %v5218 = vpack.c.b16 %v5102, %v5098
    %v5219 = vpack.c.b16 %v5103, %v5099
    %v5220 = vpack.c.b16 %v5108, %v5104
    %v5221 = vpack.c.b16 %v5109, %v5105
    %v5222 = vpack.c.b16 %v5110, %v5106
    %v5223 = vpack.c.b16 %v5111, %v5107
    %v5224 = vpack.c.b16 %v5116, %v5112
    %v5225 = vpack.c.b16 %v5117, %v5113
    %v5226 = vpack.c.b16 %v5118, %v5114
    %v5227 = vpack.c.b16 %v5119, %v5115
    %v5228 = vpack.c.b16 %v5124, %v5120
    %v5229 = vpack.c.b16 %v5125, %v5121
    %v5230 = vpack.c.b16 %v5126, %v5122
    %v5231 = vpack.c.b16 %v5127, %v5123
    %v5232 = vpack.c.b16 %v5132, %v5128
    %v5233 = vpack.c.b16 %v5133, %v5129
    %v5234 = vpack.c.b16 %v5134, %v5130
    %v5235 = vpack.c.b16 %v5135, %v5131
    %v5236 = vpack.c.b16 %v5140, %v5136
    %v5237 = vpack.c.b16 %v5141, %v5137
    %v5238 = vpack.c.b16 %v5142, %v5138
    %v5239 = vpack.c.b16 %v5143, %v5139
    %v5240 = vpack.c.b16 %v5148, %v5144
    %v5241 = vpack.c.b16 %v5149, %v5145
    %v5242 = vpack.c.b16 %v5150, %v5146
    %v5243 = vpack.c.b16 %v5151, %v5147
    %v5244 = vpack.c.b16 %v5156, %v5152
    %v5245 = vpack.c.b16 %v5157, %v5153
    %v5246 = vpack.c.b16 %v5158, %v5154
    %v5247 = vpack.c.b16 %v5159, %v5155
    %v5248 = vpack.c.b16 %v5164, %v5160
    %v5249 = vpack.c.b16 %v5165, %v5161
    %v5250 = vpack.c.b16 %v5166, %v5162
    %v5251 = vpack.c.b16 %v5167, %v5163
    %v5252 = vpack.c.b16 %v5172, %v5168
    %v5253 = vpack.c.b16 %v5173, %v5169
    %v5254 = vpack.c.b16 %v5174, %v5170
    %v5255 = vpack.c.b16 %v5175, %v5171
    %v5256 = vpack.c.b16 %v5180, %v5176
    %v5257 = vpack.c.b16 %v5181, %v5177
    %v5258 = vpack.c.b16 %v5182, %v5178
    %v5259 = vpack.c.b16 %v5183, %v5179
    %v5260 = vpack.c.b16 %v5188, %v5184
    %v5261 = vpack.c.b16 %v5189, %v5185
    %v5262 = vpack.c.b16 %v5190, %v5186
    %v5263 = vpack.c.b16 %v5191, %v5187
    %v5264 = vpack.c.b16 %v5196, %v5192
    %v5265 = vpack.c.b16 %v5197, %v5193
    %v5266 = vpack.c.b16 %v5198, %v5194
    %v5267 = vpack.c.b16 %v5199, %v5195
    %v5268 = vpack.c.b16 %v5204, %v5200
    %v5269 = vpack.c.b16 %v5205, %v5201
    %v5270 = vpack.c.b16 %v5206, %v5202
    %v5271 = vpack.c.b16 %v5207, %v5203
    %5336 = vmatprep.subr.bf16.mxu0 %v5209
    %5337 = vmatpush1.bf16.msra.mxu0 %v5208
    %5338 = vmatprep.subr.bf16.mxu0 %v5213
    %5339 = vmatpush1.bf16.msra.mxu0 %v5212
    %5340 = vmatprep.subr.bf16.mxu0 %v5217
    %5341 = vmatpush1.bf16.msra.mxu0 %v5216
    %5342 = vmatprep.subr.bf16.mxu0 %v5221
    %5343 = vmatpush1.bf16.msra.mxu0 %v5220
    %5344 = vmatprep.subr.bf16.mxu0 %v5225
    %5345 = vmatpush1.bf16.msra.mxu0 %v5224
    %5346 = vmatprep.subr.bf16.mxu0 %v5229
    %5347 = vmatpush1.bf16.msra.mxu0 %v5228
    %5348 = vmatprep.subr.bf16.mxu0 %v5233
    %5349 = vmatpush1.bf16.msra.mxu0 %v5232
    %5350 = vmatprep.subr.bf16.mxu0 %v5237
    %5351 = vmatpush1.bf16.msra.mxu0 %v5236
    %5352 = vmatprep.subr.bf16.mxu0 %v5241
    %5353 = vmatpush1.bf16.msra.mxu0 %v5240
    %5354 = vmatprep.subr.bf16.mxu0 %v5245
    %5355 = vmatpush1.bf16.msra.mxu0 %v5244
    %5356 = vmatprep.subr.bf16.mxu0 %v5249
    %5357 = vmatpush1.bf16.msra.mxu0 %v5248
    %5358 = vmatprep.subr.bf16.mxu0 %v5253
    %5359 = vmatpush1.bf16.msra.mxu0 %v5252
    %5360 = vmatprep.subr.bf16.mxu0 %v5257
    %5361 = vmatpush1.bf16.msra.mxu0 %v5256
    %5362 = vmatprep.subr.bf16.mxu0 %v5261
    %5363 = vmatpush1.bf16.msra.mxu0 %v5260
    %5364 = vmatprep.subr.bf16.mxu0 %v5265
    %5365 = vmatpush1.bf16.msra.mxu0 %v5264
    %5366 = vmatprep.subr.bf16.mxu0 %v5269
    %5367 = vmatpush1.bf16.msra.mxu0 %v5268
    %5368 = vmatprep.mubr.bf16.mxu0 %v4075
    %5369 = vmatmul.mubr.bf16.gmra.mrb[0].mxu0 %v4926
    %v5370 = vpop.f32.mrb[0].mxu0
    %v5371 = vadd.f32 %v4999, %v5370
    %v5372 = vpop.f32.mrb[0].mxu0
    %v5373 = vadd.f32 %v5003, %v5372
    %v5374 = vpop.f32.mrb[0].mxu0
    %v5375 = vadd.f32 %v4999, %v5374
    %v5376 = vpop.f32.mrb[0].mxu0
    %v5377 = vadd.f32 %v5003, %v5376
    %5378 = vmatprep.mubr.bf16.mxu0 %v4076
    %5379 = vmatmul.mubr.bf16.gmra.mrb[0].mxu0 %v4927
    %v5380 = vpop.f32.mrb[0].mxu0
    %v5381 = vadd.f32 %v4999, %v5380
    %v5382 = vpop.f32.mrb[0].mxu0
    %v5383 = vadd.f32 %v5003, %v5382
    %v5384 = vpop.f32.mrb[0].mxu0
    %v5385 = vadd.f32 %v4999, %v5384
    %v5386 = vpop.f32.mrb[0].mxu0
    %v5387 = vadd.f32 %v5003, %v5386
    %5388 = vmatprep.mubr.bf16.mxu0 %v4077
    %5389 = vmatmul.mubr.bf16.gmra.mrb[0].mxu0 %v4928
    %v5390 = vpop.f32.mrb[0].mxu0
    %v5391 = vadd.f32 %v4999, %v5390
    %v5392 = vpop.f32.mrb[0].mxu0
    %v5393 = vadd.f32 %v5003, %v5392
    %v5394 = vpop.f32.mrb[0].mxu0
    %v5395 = vadd.f32 %v4999, %v5394
    %v5396 = vpop.f32.mrb[0].mxu0
    %v5397 = vadd.f32 %v5003, %v5396
    %5398 = vmatprep.mubr.bf16.mxu0 %v4078
    %5399 = vmatmul.mubr.bf16.gmra.mrb[0].mxu0 %v4929
    %v5400 = vpop.f32.mrb[0].mxu0
    %v5401 = vadd.f32 %v4999, %v5400
    %v5402 = vpop.f32.mrb[0].mxu0
    %v5403 = vadd.f32 %v5003, %v5402
    %v5404 = vpop.f32.mrb[0].mxu0
    %v5405 = vadd.f32 %v4999, %v5404
    %v5406 = vpop.f32.mrb[0].mxu0
    %v5407 = vadd.f32 %v5003, %v5406
    %5408 = vdwg.mxu0
    %5409 = vmatprep.subr.bf16.mxu0 %v5211
    %5410 = vmatpush1.bf16.msra.mxu0 %v5210
    %5411 = vmatprep.subr.bf16.mxu0 %v5215
    %5412 = vmatpush1.bf16.msra.mxu0 %v5214
    %5413 = vmatprep.subr.bf16.mxu0 %v5219
    %5414 = vmatpush1.bf16.msra.mxu0 %v5218
    %5415 = vmatprep.subr.bf16.mxu0 %v5223
    %5416 = vmatpush1.bf16.msra.mxu0 %v5222
    %5417 = vmatprep.subr.bf16.mxu0 %v5227
    %5418 = vmatpush1.bf16.msra.mxu0 %v5226
    %5419 = vmatprep.subr.bf16.mxu0 %v5231
    %5420 = vmatpush1.bf16.msra.mxu0 %v5230
    %5421 = vmatprep.subr.bf16.mxu0 %v5235
    %5422 = vmatpush1.bf16.msra.mxu0 %v5234
    %5423 = vmatprep.subr.bf16.mxu0 %v5239
    %5424 = vmatpush1.bf16.msra.mxu0 %v5238
    %5425 = vmatprep.subr.bf16.mxu0 %v5243
    %5426 = vmatpush1.bf16.msra.mxu0 %v5242
    %5427 = vmatprep.subr.bf16.mxu0 %v5247
    %5428 = vmatpush1.bf16.msra.mxu0 %v5246
    %5429 = vmatprep.subr.bf16.mxu0 %v5251
    %5430 = vmatpush1.bf16.msra.mxu0 %v5250
    %5431 = vmatprep.subr.bf16.mxu0 %v5255
    %5432 = vmatpush1.bf16.msra.mxu0 %v5254
    %5433 = vmatprep.subr.bf16.mxu0 %v5259
    %5434 = vmatpush1.bf16.msra.mxu0 %v5258
    %5435 = vmatprep.subr.bf16.mxu0 %v5263
    %5436 = vmatpush1.bf16.msra.mxu0 %v5262
    %5437 = vmatprep.subr.bf16.mxu0 %v5267
    %5438 = vmatpush1.bf16.msra.mxu0 %v5266
    %5439 = vmatprep.subr.bf16.mxu0 %v5271
    %5440 = vmatpush1.bf16.msra.mxu0 %v5270
    %5441 = vmatprep.mubr.bf16.mxu0 %v4075
    %5442 = vmatmul.mubr.bf16.gmra.mrb[0].mxu0 %v4926
    %v5443 = vpop.f32.mrb[0].mxu0
    %v5444 = vadd.f32 %v5007, %v5443
    %v5445 = vpop.f32.mrb[0].mxu0
    %v5446 = vadd.f32 %v5011, %v5445
    %v5447 = vpop.f32.mrb[0].mxu0
    %v5448 = vadd.f32 %v5007, %v5447
    %v5449 = vpop.f32.mrb[0].mxu0
    %v5450 = vadd.f32 %v5011, %v5449
    %5451 = vmatprep.mubr.bf16.mxu0 %v4076
    %5452 = vmatmul.mubr.bf16.gmra.mrb[0].mxu0 %v4927
    %v5453 = vpop.f32.mrb[0].mxu0
    %v5454 = vadd.f32 %v5007, %v5453
    %v5455 = vpop.f32.mrb[0].mxu0
    %v5456 = vadd.f32 %v5011, %v5455
    %v5457 = vpop.f32.mrb[0].mxu0
    %v5458 = vadd.f32 %v5007, %v5457
    %v5459 = vpop.f32.mrb[0].mxu0
    %v5460 = vadd.f32 %v5011, %v5459
    %5461 = vmatprep.mubr.bf16.mxu0 %v4077
    %5462 = vmatmul.mubr.bf16.gmra.mrb[0].mxu0 %v4928
    %v5463 = vpop.f32.mrb[0].mxu0
    %v5464 = vadd.f32 %v5007, %v5463
    %v5465 = vpop.f32.mrb[0].mxu0
    %v5466 = vadd.f32 %v5011, %v5465
    %v5467 = vpop.f32.mrb[0].mxu0
    %v5468 = vadd.f32 %v5007, %v5467
    %v5469 = vpop.f32.mrb[0].mxu0
    %v5470 = vadd.f32 %v5011, %v5469
    %5471 = vmatprep.mubr.bf16.mxu0 %v4078
    %5472 = vmatmul.mubr.bf16.gmra.mrb[0].mxu0 %v4929
    %v5473 = vpop.f32.mrb[0].mxu0
    %v5474 = vadd.f32 %v5007, %v5473
    %v5475 = vpop.f32.mrb[0].mxu0
    %v5476 = vadd.f32 %v5011, %v5475
    %v5477 = vpop.f32.mrb[0].mxu0
    %v5478 = vadd.f32 %v5007, %v5477
    %v5479 = vpop.f32.mrb[0].mxu0
    %v5480 = vadd.f32 %v5011, %v5479
    %5481 = vdwg.mxu0
    %v5482 = vmul.f32 %v5371, 0.5
    %v5483 = vmul.f32 %v5375, 0.5
    %v5484 = vmul.f32 %v5381, 0.5
    %v5485 = vmul.f32 %v5385, 0.5
    %v5486 = vmul.f32 %v5391, 0.5
    %v5487 = vmul.f32 %v5395, 0.5
    %v5488 = vmul.f32 %v5401, 0.5
    %v5489 = vmul.f32 %v5405, 0.5
    %v5490 = vtanh.pop %v5482
    %v5491 = vtanh.pop %v5483
    %v5492 = vtanh.pop %v5484
    %v5493 = vtanh.pop %v5485
    %v5494 = vtanh.pop %v5486
    %v5495 = vtanh.pop %v5487
    %v5496 = vtanh.pop %v5488
    %v5497 = vtanh.pop %v5489
    %v5498 = vmul.f32 %v5490, 0.5
    %v5499 = vmul.f32 %v5491, 0.5
    %v5500 = vmul.f32 %v5492, 0.5
    %v5501 = vmul.f32 %v5493, 0.5
    %v5502 = vmul.f32 %v5494, 0.5
    %v5503 = vmul.f32 %v5495, 0.5
    %v5504 = vmul.f32 %v5496, 0.5
    %v5505 = vmul.f32 %v5497, 0.5
    %v5506 = vadd.f32 %v5498, 0.5
    %v5507 = vadd.f32 %v5499, 0.5
    %v5508 = vadd.f32 %v5500, 0.5
    %v5509 = vadd.f32 %v5501, 0.5
    %v5510 = vadd.f32 %v5502, 0.5
    %v5511 = vadd.f32 %v5503, 0.5
    %v5512 = vadd.f32 %v5504, 0.5
    %v5513 = vadd.f32 %v5505, 0.5
    %v5514 = vtanh.pop %v5444
    %v5515 = vtanh.pop %v5448
    %v5516 = vtanh.pop %v5454
    %v5517 = vtanh.pop %v5458
    %v5518 = vtanh.pop %v5464
    %v5519 = vtanh.pop %v5468
    %v5520 = vtanh.pop %v5474
    %v5521 = vtanh.pop %v5478
    %v5522 = vmul.f32 %v5446, 0.5
    %v5523 = vmul.f32 %v5450, 0.5
    %v5524 = vmul.f32 %v5456, 0.5
    %v5525 = vmul.f32 %v5460, 0.5
    %v5526 = vmul.f32 %v5466, 0.5
    %v5527 = vmul.f32 %v5470, 0.5
    %v5528 = vmul.f32 %v5476, 0.5
    %v5529 = vmul.f32 %v5480, 0.5
    %v5530 = vtanh.pop %v5522
    %v5531 = vtanh.pop %v5523
    %v5532 = vtanh.pop %v5524
    %v5533 = vtanh.pop %v5525
    %v5534 = vtanh.pop %v5526
    %v5535 = vtanh.pop %v5527
    %v5536 = vtanh.pop %v5528
    %v5537 = vtanh.pop %v5529
    %v5538 = vmul.f32 %v5530, 0.5
    %v5539 = vmul.f32 %v5531, 0.5
    %v5540 = vmul.f32 %v5532, 0.5
    %v5541 = vmul.f32 %v5533, 0.5
    %v5542 = vmul.f32 %v5534, 0.5
    %v5543 = vmul.f32 %v5535, 0.5
    %v5544 = vmul.f32 %v5536, 0.5
    %v5545 = vmul.f32 %v5537, 0.5
    %v5546 = vadd.f32 %v5538, 0.5
    %v5547 = vadd.f32 %v5539, 0.5
    %v5548 = vadd.f32 %v5540, 0.5
    %v5549 = vadd.f32 %v5541, 0.5
    %v5550 = vadd.f32 %v5542, 0.5
    %v5551 = vadd.f32 %v5543, 0.5
    %v5552 = vadd.f32 %v5544, 0.5
    %v5553 = vadd.f32 %v5545, 0.5
    %v5554 = vmul.f32 %v5373, 0.5
    %v5555 = vmul.f32 %v5377, 0.5
    %v5556 = vmul.f32 %v5383, 0.5
    %v5557 = vmul.f32 %v5387, 0.5
    %v5558 = vmul.f32 %v5393, 0.5
    %v5559 = vmul.f32 %v5397, 0.5
    %v5560 = vmul.f32 %v5403, 0.5
    %v5561 = vmul.f32 %v5407, 0.5
    %v5562 = vtanh.pop %v5554
    %v5563 = vtanh.pop %v5555
    %v5564 = vtanh.pop %v5556
    %v5565 = vtanh.pop %v5557
    %v5566 = vtanh.pop %v5558
    %v5567 = vtanh.pop %v5559
    %v5568 = vtanh.pop %v5560
    %v5569 = vtanh.pop %v5561
    %v5570 = vmul.f32 %v5562, 0.5
    %v5571 = vmul.f32 %v5563, 0.5
    %v5572 = vmul.f32 %v5564, 0.5
    %v5573 = vmul.f32 %v5565, 0.5
    %v5574 = vmul.f32 %v5566, 0.5
    %v5575 = vmul.f32 %v5567, 0.5
    %v5576 = vmul.f32 %v5568, 0.5
    %v5577 = vmul.f32 %v5569, 0.5
    %v5578 = vadd.f32 %v5570, 0.5
    %v5579 = vadd.f32 %v5571, 0.5
    %v5580 = vadd.f32 %v5572, 0.5
    %v5581 = vadd.f32 %v5573, 0.5
    %v5582 = vadd.f32 %v5574, 0.5
    %v5583 = vadd.f32 %v5575, 0.5
    %v5584 = vadd.f32 %v5576, 0.5
    %v5585 = vadd.f32 %v5577, 0.5
    %v5586 = vmul.f32 %v5578, %v4051
    %v5587 = vmul.f32 %v5579, %v4052
    %v5588 = vmul.f32 %v5580, %v4053
    %v5589 = vmul.f32 %v5581, %v4054
    %v5590 = vmul.f32 %v5582, %v4055
    %v5591 = vmul.f32 %v5583, %v4056
    %v5592 = vmul.f32 %v5584, %v4057
    %v5593 = vmul.f32 %v5585, %v4058
    %v5594 = vmul.f32 %v5506, %v5514
    %v5595 = vmul.f32 %v5507, %v5515
    %v5596 = vmul.f32 %v5508, %v5516
    %v5597 = vmul.f32 %v5509, %v5517
    %v5598 = vmul.f32 %v5510, %v5518
    %v5599 = vmul.f32 %v5511, %v5519
    %v5600 = vmul.f32 %v5512, %v5520
    %v5601 = vmul.f32 %v5513, %v5521
    %v5602 = vadd.f32 %v5586, %v5594
    %v5603 = vadd.f32 %v5587, %v5595
    %v5604 = vadd.f32 %v5588, %v5596
    %v5605 = vadd.f32 %v5589, %v5597
    %v5606 = vadd.f32 %v5590, %v5598
    %v5607 = vadd.f32 %v5591, %v5599
    %v5608 = vadd.f32 %v5592, %v5600
    %v5609 = vadd.f32 %v5593, %v5601
    %v5610 = vtanh.pop %v5602
    %v5611 = vtanh.pop %v5603
    %v5612 = vtanh.pop %v5604
    %v5613 = vtanh.pop %v5605
    %v5614 = vtanh.pop %v5606
    %v5615 = vtanh.pop %v5607
    %v5616 = vtanh.pop %v5608
    %v5617 = vtanh.pop %v5609
    %v5618 = vmul.f32 %v5546, %v5610
    %v5619 = vmul.f32 %v5547, %v5611
    %v5620 = vmul.f32 %v5548, %v5612
    %v5621 = vmul.f32 %v5549, %v5613
    %v5622 = vmul.f32 %v5550, %v5614
    %v5623 = vmul.f32 %v5551, %v5615
    %v5624 = vmul.f32 %v5552, %v5616
    %v5625 = vmul.f32 %v5553, %v5617
    %v5626 = vpack.c.bf16 %v5619, %v5618
    %v5627 = vpack.c.bf16 %v5621, %v5620
    %v5628 = vpack.c.bf16 %v5623, %v5622
    %v5629 = vpack.c.bf16 %v5625, %v5624
    %v5630 = vld [vmem:[#allocation6] sm:$0xf]
    %v5631 = vld [vmem:[#allocation6 + $0x4] sm:$0xf]
    %v5632 = vld [vmem:[#allocation6 + $0x8] sm:$0xf]
    %v5633 = vld [vmem:[#allocation6 + $0xc] sm:$0xf]
    %v5634 = vld [vmem:[#allocation6 + $0x10] sm:$0xf]
    %v5635 = vld [vmem:[#allocation6 + $0x14] sm:$0xf]
    %v5636 = vld [vmem:[#allocation6 + $0x18] sm:$0xf]
    %v5637 = vld [vmem:[#allocation6 + $0x1c] sm:$0xf]
    %v5638 = vld [vmem:[#allocation6 + $0x20] sm:$0xf]
    %v5639 = vld [vmem:[#allocation6 + $0x24] sm:$0xf]
    %v5640 = vld [vmem:[#allocation6 + $0x28] sm:$0xf]
    %v5641 = vld [vmem:[#allocation6 + $0x2c] sm:$0xf]
    %v5642 = vld [vmem:[#allocation6 + $0x30] sm:$0xf]
    %v5643 = vld [vmem:[#allocation6 + $0x34] sm:$0xf]
    %v5644 = vld [vmem:[#allocation6 + $0x38] sm:$0xf]
    %v5645 = vld [vmem:[#allocation6 + $0x3c] sm:$0xf]
    %v5646 = vld [vmem:[#allocation7 + $0x2] ss:$0 sm:$0xff]
    %v5663 = vunpack.c.l.b16 %v5630
    %v5664 = vunpack.c.l.b16 %v5631
    %v5665 = vunpack.c.l.b16 %v5632
    %v5666 = vunpack.c.l.b16 %v5633
    %v5667 = vunpack.c.l.b16 %v5634
    %v5668 = vunpack.c.l.b16 %v5635
    %v5669 = vunpack.c.l.b16 %v5636
    %v5670 = vunpack.c.l.b16 %v5637
    %v5671 = vunpack.c.l.b16 %v5638
    %v5672 = vunpack.c.l.b16 %v5639
    %v5673 = vunpack.c.l.b16 %v5640
    %v5674 = vunpack.c.l.b16 %v5641
    %v5675 = vunpack.c.l.b16 %v5642
    %v5676 = vunpack.c.l.b16 %v5643
    %v5677 = vunpack.c.l.b16 %v5644
    %v5678 = vunpack.c.l.b16 %v5645
    %v5679 = vpack.c.b16 %v5664, %v5663
    %v5680 = vpack.c.b16 %v5666, %v5665
    %v5681 = vpack.c.b16 %v5668, %v5667
    %v5682 = vpack.c.b16 %v5670, %v5669
    %v5683 = vpack.c.b16 %v5672, %v5671
    %v5684 = vpack.c.b16 %v5674, %v5673
    %v5685 = vpack.c.b16 %v5676, %v5675
    %v5686 = vpack.c.b16 %v5678, %v5677
    %5695 = vmatprep.subr.bf16.mxu0 0
    %5696 = vmatpush1.bf16.msra.mxu0 %v5679
    %5697 = vmatprep.subr.bf16.mxu0 0
    %5698 = vmatpush1.bf16.msra.mxu0 %v5680
    %5699 = vmatprep.subr.bf16.mxu0 0
    %5700 = vmatpush1.bf16.msra.mxu0 %v5681
    %5701 = vmatprep.subr.bf16.mxu0 0
    %5702 = vmatpush1.bf16.msra.mxu0 %v5682
    %5703 = vmatprep.subr.bf16.mxu0 0
    %5704 = vmatpush1.bf16.msra.mxu0 %v5683
    %5705 = vmatprep.subr.bf16.mxu0 0
    %5706 = vmatpush1.bf16.msra.mxu0 %v5684
    %5707 = vmatprep.subr.bf16.mxu0 0
    %5708 = vmatpush1.bf16.msra.mxu0 %v5685
    %5709 = vmatprep.subr.bf16.mxu0 0
    %5710 = vmatpush1.bf16.msra.mxu0 %v5686
    %5711 = vmatprep.subr.bf16.mxu0 0
    %5712 = vmatpush1.bf16.msra.mxu0 0
    %5713 = vmatprep.subr.bf16.mxu0 0
    %5714 = vmatpush1.bf16.msra.mxu0 0
    %5715 = vmatprep.subr.bf16.mxu0 0
    %5716 = vmatpush1.bf16.msra.mxu0 0
    %5717 = vmatprep.subr.bf16.mxu0 0
    %5718 = vmatpush1.bf16.msra.mxu0 0
    %5719 = vmatprep.subr.bf16.mxu0 0
    %5720 = vmatpush1.bf16.msra.mxu0 0
    %5721 = vmatprep.subr.bf16.mxu0 0
    %5722 = vmatpush1.bf16.msra.mxu0 0
    %5723 = vmatprep.subr.bf16.mxu0 0
    %5724 = vmatpush1.bf16.msra.mxu0 0
    %5725 = vmatprep.subr.bf16.mxu0 0
    %5726 = vmatpush1.bf16.msra.mxu0 0
    %5727 = vmatprep.mubr.bf16.mxu0 0
    %5728 = vmatmul.mubr.bf16.gmra.mrb[0].mxu0 %v5626
    %v5729 = vpop.f32.mrb[0].mxu0
    %v5730 = vadd.f32 %v5646, %v5729
    %v5731 = vpop.f32.mrb[0].mxu0
    %v5732 = vpop.f32.mrb[0].mxu0
    %v5733 = vadd.f32 %v5646, %v5732
    %v5734 = vpop.f32.mrb[0].mxu0
    %5735 = vmatprep.mubr.bf16.mxu0 0
    %5736 = vmatmul.mubr.bf16.gmra.mrb[0].mxu0 %v5627
    %v5737 = vpop.f32.mrb[0].mxu0
    %v5738 = vadd.f32 %v5646, %v5737
    %v5739 = vpop.f32.mrb[0].mxu0
    %v5740 = vpop.f32.mrb[0].mxu0
    %v5741 = vadd.f32 %v5646, %v5740
    %v5742 = vpop.f32.mrb[0].mxu0
    %5743 = vmatprep.mubr.bf16.mxu0 0
    %5744 = vmatmul.mubr.bf16.gmra.mrb[0].mxu0 %v5628
    %v5745 = vpop.f32.mrb[0].mxu0
    %v5746 = vadd.f32 %v5646, %v5745
    %v5747 = vpop.f32.mrb[0].mxu0
    %v5748 = vpop.f32.mrb[0].mxu0
    %v5749 = vadd.f32 %v5646, %v5748
    %v5750 = vpop.f32.mrb[0].mxu0
    %5751 = vmatprep.mubr.bf16.mxu0 0
    %5752 = vmatmul.mubr.bf16.gmra.mrb[0].mxu0 %v5629
    %v5753 = vpop.f32.mrb[0].mxu0
    %v5754 = vadd.f32 %v5646, %v5753
    %v5755 = vpop.f32.mrb[0].mxu0
    %v5756 = vpop.f32.mrb[0].mxu0
    %v5757 = vadd.f32 %v5646, %v5756
    %v5758 = vpop.f32.mrb[0].mxu0
    %5759 = vdwg.mxu0
    %s5760 = scalar_lea.vmem %s4, 192
    %5761 = vst [vmem:[%s5760] sm:$0xff] %v5730
    %5762 = vst [vmem:[%s5760 + $0x8] sm:$0xff] %v5733
    %5763 = vst [vmem:[%s5760 + $0x10] sm:$0xff] %v5738
    %5764 = vst [vmem:[%s5760 + $0x18] sm:$0xff] %v5741
    %5765 = vst [vmem:[%s5760 + $0x20] sm:$0xff] %v5746
    %5766 = vst [vmem:[%s5760 + $0x28] sm:$0xff] %v5749
    %5767 = vst [vmem:[%s5760 + $0x30] sm:$0xff] %v5754
    %5768 = vst [vmem:[%s5760 + $0x38] sm:$0xff] %v5757
    // Predicated region
    $region34: #{decoder_forward_packed.1} parent=1 // pred_check
      _
    $region35: #{decoder_forward_packed.1} parent=1 // pred_check_branch
      %5770 = sbr.rel (0) target = $region37
    $region36: #{decoder_forward_packed.1} parent=1 // pred_region
      _
    $region37: #{decoder_forward_packed.1} parent=1 // pred_fallthru
      _
    // Predicated region
    $region38: #{decoder_forward_packed.1} parent=1 // pred_check
      _
    $region39: #{decoder_forward_packed.1} parent=1 // pred_check_branch
      %5772 = sbr.rel (0) target = $region41
    $region40: #{decoder_forward_packed.1} parent=1 // pred_region
      _
    $region41: #{decoder_forward_packed.1} parent=1 // pred_fallthru
      _
    %5773 = vsyncpa [#allocation3], 1
    %5774 = vsyncpa [#allocation5], 1
    %5775 = vsyncpa [#allocation8], 1

</llo_original>
